<compile_context>
chip_gen: v7x
topology: tpu7x:2x2x1
jax: 0.10.0
libtpu: 0.0.40
codegen_flags: <defaults>
</compile_context>

<pallas_src>
import functools
import jax
import jax.numpy as jnp
from jax.experimental import pallas as pl
from jax.experimental.pallas import tpu as pltpu

# Set to jnp.bfloat16 on v6e/v7x for MXU throughput; kept f32 for exact parity.
MATMUL_DTYPE = jnp.float32


def _mm(x, w):
    # matmul with f32 accumulation; operands cast to the weight dtype.
    return jnp.dot(x.astype(w.dtype), w, preferred_element_type=jnp.float32)


# ------------------------------ fused kernel -------------------------------

def _decoder_layer_kernel(
        # activations (one batch element per grid step)
        tgt_ref, mem_ref, qpos_ref, pos_ref,
        # self-attention params (pre-transposed, q pre-scaled)
        sa_wqk_ref, sa_bqk_ref, sa_wv_ref, sa_bv_ref, sa_wo_ref, sa_bo_ref,
        # cross-attention params (pre-transposed, q pre-scaled)
        ca_wq_ref, ca_bq_ref, ca_wk_ref, ca_bk_ref, ca_wv_ref, ca_bv_ref,
        ca_wo_ref, ca_bo_ref,
        # FFN params
        w1_ref, b1_ref, w2_ref, b2_ref,
        # LayerNorm params
        g1_ref, be1_ref, g2_ref, be2_ref, g3_ref, be3_ref,
        # output
        out_ref,
        *, nhead, eps):
    e = tgt_ref.shape[-1]
    dh = e // nhead

    def layernorm(z, g_ref, b_ref):
        mu = jnp.mean(z, axis=-1, keepdims=True)
        d = z - mu
        var = jnp.mean(d * d, axis=-1, keepdims=True)
        return d * jax.lax.rsqrt(var + eps) * g_ref[...] + b_ref[...]

    def attend_project(q, k, v, wo_ref):
        # sum_h softmax(q_h k_h^T) v_h @ W_o[h]   (q is pre-scaled by 1/sqrt(dh))
        out = None
        for h in range(nhead):
            sl = slice(h * dh, (h + 1) * dh)
            s = jax.lax.dot_general(                      # q_h @ k_h^T  (Lq, Lk)
                q[:, sl], k[:, sl], (((1,), (1,)), ((), ())),
                preferred_element_type=jnp.float32)
            m = jnp.max(s, axis=-1, keepdims=True)
            p = jnp.exp(s - m)
            p = p * pl.reciprocal(jnp.sum(p, axis=-1, keepdims=True), approx=True)
            o_h = jnp.dot(p, v[:, sl], preferred_element_type=jnp.float32)
            contrib = jnp.dot(o_h, wo_ref[sl, :],
                              preferred_element_type=jnp.float32)
            out = contrib if out is None else out + contrib
        return out
    # TODO(synk): for long memory sequences, tile the key axis with an
    # online-softmax (flash-style) accumulator instead of (Lq, Lk) scores.

    # ------------------------- self-attention block -------------------------
    x = tgt_ref[0]                                   # (T, E)
    qp = qpos_ref[0]
    xq = x + qp                                      # q = k = tgt + query_pos
    qk = _mm(xq, sa_wqk_ref[...]) + sa_bqk_ref[...]  # fused (q|k) proj, q scaled
    v = _mm(x, sa_wv_ref[...]) + sa_bv_ref[...]      # value = tgt
    a = attend_project(qk[:, :e], qk[:, e:], v, sa_wo_ref) + sa_bo_ref[...]
    t1 = layernorm(x + a, g1_ref, be1_ref)

    # ------------------------ cross-attention block --------------------------
    mem = mem_ref[0]                                 # (S, E)
    mp = mem + pos_ref[0]
    q2 = _mm(t1 + qp, ca_wq_ref[...]) + ca_bq_ref[...]
    k2 = _mm(mp, ca_wk_ref[...]) + ca_bk_ref[...]
    v2 = _mm(mem, ca_wv_ref[...]) + ca_bv_ref[...]
    a2 = attend_project(q2, k2, v2, ca_wo_ref) + ca_bo_ref[...]
    t2 = layernorm(t1 + a2, g2_ref, be2_ref)

    # --------------------------- feed-forward block --------------------------
    h1 = jnp.maximum(_mm(t2, w1_ref[...]) + b1_ref[...], 0.0)   # relu
    f = _mm(h1, w2_ref[...]) + b2_ref[...]
    out_ref[0] = layernorm(t2 + f, g3_ref, be3_ref)


# --------------------------- module-level wrapper ---------------------------

def decoder_layer(tgt, memory, params, nhead, pos=None, query_pos=None, eps=1e-5):
    T, B, E = tgt.shape
    S = memory.shape[0]
    dh = E // nhead
    scale = 1.0 / (dh ** 0.5)
    md = MATMUL_DTYPE

    # boundary layout: (L, B, E) -> (B, L, E); E (all heads) stays the lane axis.
    tgt_b = jnp.transpose(tgt, (1, 0, 2)).astype(jnp.float32)
    mem_b = jnp.transpose(memory, (1, 0, 2)).astype(jnp.float32)
    qpos_b = (jnp.zeros_like(tgt_b) if query_pos is None
              else jnp.transpose(query_pos, (1, 0, 2)).astype(jnp.float32))
    pos_b = (jnp.zeros_like(mem_b) if pos is None
             else jnp.transpose(pos, (1, 0, 2)).astype(jnp.float32))

    sa, ca = params['self_attn'], params['cross_attn']

    # self-attn: fused (q|k) projection, pre-transposed, scale folded into q half
    wq, wk, wv = jnp.split(sa['in_proj_weight'], 3, axis=0)
    bq, bk, bv = jnp.split(sa['in_proj_bias'], 3)
    sa_wqk = jnp.concatenate([(wq * scale).T, wk.T], axis=1).astype(md)   # (E, 2E)
    sa_bqk = jnp.concatenate([bq * scale, bk]).reshape(1, 2 * E)
    sa_wv = wv.T.astype(md)
    sa_bv = bv.reshape(1, E)
    sa_wo = sa['out_proj_weight'].T.astype(md)
    sa_bo = sa['out_proj_bias'].reshape(1, E)

    # cross-attn: pre-transposed, scale folded into q
    cwq, cwk, cwv = jnp.split(ca['in_proj_weight'], 3, axis=0)
    cbq, cbk, cbv = jnp.split(ca['in_proj_bias'], 3)
    ca_wq = (cwq * scale).T.astype(md)
    ca_bq = (cbq * scale).reshape(1, E)
    ca_wk = cwk.T.astype(md)
    ca_bk = cbk.reshape(1, E)
    ca_wv = cwv.T.astype(md)
    ca_bv = cbv.reshape(1, E)
    ca_wo = ca['out_proj_weight'].T.astype(md)
    ca_bo = ca['out_proj_bias'].reshape(1, E)

    # FFN (pre-transposed)
    w1t = params['w1'].T.astype(md)
    b1f = params['b1'].reshape(1, -1)
    w2t = params['w2'].T.astype(md)
    b2f = params['b2'].reshape(1, -1)

    g1 = params['norm1_g'].reshape(1, E); be1 = params['norm1_b'].reshape(1, E)
    g2 = params['norm2_g'].reshape(1, E); be2 = params['norm2_b'].reshape(1, E)
    g3 = params['norm3_g'].reshape(1, E); be3 = params['norm3_b'].reshape(1, E)

    acts = [tgt_b, mem_b, qpos_b, pos_b]
    weights = [sa_wqk, sa_bqk, sa_wv, sa_bv, sa_wo, sa_bo,
               ca_wq, ca_bq, ca_wk, ca_bk, ca_wv, ca_bv, ca_wo, ca_bo,
               w1t, b1f, w2t, b2f,
               g1, be1, g2, be2, g3, be3]

    def act_spec(arr):
        _, L, D = arr.shape
        return pl.BlockSpec((1, L, D), lambda b: (b, 0, 0))

    def param_spec(arr):
        # constant index_map -> block stays VMEM-resident across grid steps
        return pl.BlockSpec(arr.shape, lambda b: (0, 0))

    in_specs = [act_spec(a) for a in acts] + [param_spec(w) for w in weights]

    out_b = pl.pallas_call(
        functools.partial(_decoder_layer_kernel, nhead=nhead, eps=eps),
        out_shape=jax.ShapeDtypeStruct((B, T, E), jnp.float32),
        grid=(B,),
        in_specs=in_specs,
        out_specs=pl.BlockSpec((1, T, E), lambda b: (b, 0, 0)),
        compiler_params=pltpu.CompilerParams(
            dimension_semantics=("parallel",),        # shards batch over v7x's 2 TCs
            vmem_limit_bytes=32 * 1024 * 1024),
    )(*acts, *weights)

    return jnp.transpose(out_b, (1, 0, 2))            # back to (T, B, E)


# -------------------------------- parameters --------------------------------

def init_params(key, d_model, nhead, dim_feedforward):
    ks = jax.random.split(key, 12)
    s = 0.05

    def mha_params(k0, k1, k2, k3):
        return {
            'in_proj_weight': s * jax.random.normal(k0, (3 * d_model, d_model), jnp.float32),
            'in_proj_bias':   s * jax.random.normal(k1, (3 * d_model,), jnp.float32),
            'out_proj_weight': s * jax.random.normal(k2, (d_model, d_model), jnp.float32),
            'out_proj_bias':   s * jax.random.normal(k3, (d_model,), jnp.float32),
        }

    return {
        'self_attn':  mha_params(ks[0], ks[1], ks[2], ks[3]),
        'cross_attn': mha_params(ks[4], ks[5], ks[6], ks[7]),
        'w1': s * jax.random.normal(ks[8], (dim_feedforward, d_model), jnp.float32),
        'b1': s * jax.random.normal(ks[9], (dim_feedforward,), jnp.float32),
        'w2': s * jax.random.normal(ks[10], (d_model, dim_feedforward), jnp.float32),
        'b2': s * jax.random.normal(ks[11], (d_model,), jnp.float32),
        'norm1_g': jnp.ones((d_model,), jnp.float32),
        'norm1_b': jnp.zeros((d_model,), jnp.float32),
        'norm2_g': jnp.ones((d_model,), jnp.float32),
        'norm2_b': jnp.zeros((d_model,), jnp.float32),
        'norm3_g': jnp.ones((d_model,), jnp.float32),
        'norm3_b': jnp.zeros((d_model,), jnp.float32),
    }


if __name__ == "__main__":
    d_model, nhead, dim_ff = 32, 4, 64
    T, S, B = 8, 16, 2

    key = jax.random.PRNGKey(0)
    k_tgt, k_mem, k_pos, k_qpos, k_par = jax.random.split(key, 5)

    tgt = jax.random.normal(k_tgt, (T, B, d_model), jnp.float32)
    memory = jax.random.normal(k_mem, (S, B, d_model), jnp.float32)
    pos = jax.random.normal(k_pos, (S, B, d_model), jnp.float32)
    query_pos = jax.random.normal(k_qpos, (T, B, d_model), jnp.float32)

    params = init_params(k_par, d_model, nhead, dim_ff)

    out = decoder_layer(tgt, memory, params, nhead, pos=pos, query_pos=query_pos)
    out = jax.block_until_ready(out)
    assert out.shape == (T, B, d_model)
    assert bool(jnp.all(jnp.isfinite(out)))
    print("KERNEL_OK")
</pallas_src>

<mosaic_0001>
module attributes {stable_mosaic.version = 11 : i64} {
  func.func @_decoder_layer_kernel(%arg0: i32, %arg1: memref<1x8x32xf32, #tpu.memory_space<vmem>>, %arg2: memref<1x16x32xf32, #tpu.memory_space<vmem>>, %arg3: memref<1x8x32xf32, #tpu.memory_space<vmem>>, %arg4: memref<1x16x32xf32, #tpu.memory_space<vmem>>, %arg5: memref<32x64xf32, #tpu.memory_space<vmem>>, %arg6: memref<1x64xf32, #tpu.memory_space<vmem>>, %arg7: memref<32x32xf32, #tpu.memory_space<vmem>>, %arg8: memref<1x32xf32, #tpu.memory_space<vmem>>, %arg9: memref<32x32xf32, #tpu.memory_space<vmem>>, %arg10: memref<1x32xf32, #tpu.memory_space<vmem>>, %arg11: memref<32x32xf32, #tpu.memory_space<vmem>>, %arg12: memref<1x32xf32, #tpu.memory_space<vmem>>, %arg13: memref<32x32xf32, #tpu.memory_space<vmem>>, %arg14: memref<1x32xf32, #tpu.memory_space<vmem>>, %arg15: memref<32x32xf32, #tpu.memory_space<vmem>>, %arg16: memref<1x32xf32, #tpu.memory_space<vmem>>, %arg17: memref<32x32xf32, #tpu.memory_space<vmem>>, %arg18: memref<1x32xf32, #tpu.memory_space<vmem>>, %arg19: memref<32x64xf32, #tpu.memory_space<vmem>>, %arg20: memref<1x64xf32, #tpu.memory_space<vmem>>, %arg21: memref<64x32xf32, #tpu.memory_space<vmem>>, %arg22: memref<1x32xf32, #tpu.memory_space<vmem>>, %arg23: memref<1x32xf32, #tpu.memory_space<vmem>>, %arg24: memref<1x32xf32, #tpu.memory_space<vmem>>, %arg25: memref<1x32xf32, #tpu.memory_space<vmem>>, %arg26: memref<1x32xf32, #tpu.memory_space<vmem>>, %arg27: memref<1x32xf32, #tpu.memory_space<vmem>>, %arg28: memref<1x32xf32, #tpu.memory_space<vmem>>, %arg29: memref<1x8x32xf32, #tpu.memory_space<vmem>>) attributes {dimension_semantics = [#tpu.dimension_semantics<parallel>], iteration_bounds = array<i64: 2>, scalar_prefetch = 0 : i64, scratch_operands = 0 : i64, tpu.core_type = #tpu.core_type<tc>, window_params = [{transform_indices = @transform_0, window_bounds = array<i64: 1, 8, 32>}, {transform_indices = @transform_1, window_bounds = array<i64: 1, 16, 32>}, {transform_indices = @transform_2, window_bounds = array<i64: 1, 8, 32>}, {transform_indices = @transform_3, window_bounds = array<i64: 1, 16, 32>}, {pipeline_mode = #tpu.pipeline_mode<synchronous>, transform_indices = @transform_4, window_bounds = array<i64: 32, 64>}, {pipeline_mode = #tpu.pipeline_mode<synchronous>, transform_indices = @transform_5, window_bounds = array<i64: 1, 64>}, {pipeline_mode = #tpu.pipeline_mode<synchronous>, transform_indices = @transform_6, window_bounds = array<i64: 32, 32>}, {pipeline_mode = #tpu.pipeline_mode<synchronous>, transform_indices = @transform_7, window_bounds = array<i64: 1, 32>}, {pipeline_mode = #tpu.pipeline_mode<synchronous>, transform_indices = @transform_8, window_bounds = array<i64: 32, 32>}, {pipeline_mode = #tpu.pipeline_mode<synchronous>, transform_indices = @transform_9, window_bounds = array<i64: 1, 32>}, {pipeline_mode = #tpu.pipeline_mode<synchronous>, transform_indices = @transform_10, window_bounds = array<i64: 32, 32>}, {pipeline_mode = #tpu.pipeline_mode<synchronous>, transform_indices = @transform_11, window_bounds = array<i64: 1, 32>}, {pipeline_mode = #tpu.pipeline_mode<synchronous>, transform_indices = @transform_12, window_bounds = array<i64: 32, 32>}, {pipeline_mode = #tpu.pipeline_mode<synchronous>, transform_indices = @transform_13, window_bounds = array<i64: 1, 32>}, {pipeline_mode = #tpu.pipeline_mode<synchronous>, transform_indices = @transform_14, window_bounds = array<i64: 32, 32>}, {pipeline_mode = #tpu.pipeline_mode<synchronous>, transform_indices = @transform_15, window_bounds = array<i64: 1, 32>}, {pipeline_mode = #tpu.pipeline_mode<synchronous>, transform_indices = @transform_16, window_bounds = array<i64: 32, 32>}, {pipeline_mode = #tpu.pipeline_mode<synchronous>, transform_indices = @transform_17, window_bounds = array<i64: 1, 32>}, {pipeline_mode = #tpu.pipeline_mode<synchronous>, transform_indices = @transform_18, window_bounds = array<i64: 32, 64>}, {pipeline_mode = #tpu.pipeline_mode<synchronous>, transform_indices = @transform_19, window_bounds = array<i64: 1, 64>}, {pipeline_mode = #tpu.pipeline_mode<synchronous>, transform_indices = @transform_20, window_bounds = array<i64: 64, 32>}, {pipeline_mode = #tpu.pipeline_mode<synchronous>, transform_indices = @transform_21, window_bounds = array<i64: 1, 32>}, {pipeline_mode = #tpu.pipeline_mode<synchronous>, transform_indices = @transform_22, window_bounds = array<i64: 1, 32>}, {pipeline_mode = #tpu.pipeline_mode<synchronous>, transform_indices = @transform_23, window_bounds = array<i64: 1, 32>}, {pipeline_mode = #tpu.pipeline_mode<synchronous>, transform_indices = @transform_24, window_bounds = array<i64: 1, 32>}, {pipeline_mode = #tpu.pipeline_mode<synchronous>, transform_indices = @transform_25, window_bounds = array<i64: 1, 32>}, {pipeline_mode = #tpu.pipeline_mode<synchronous>, transform_indices = @transform_26, window_bounds = array<i64: 1, 32>}, {pipeline_mode = #tpu.pipeline_mode<synchronous>, transform_indices = @transform_27, window_bounds = array<i64: 1, 32>}, {transform_indices = @transform_28, window_bounds = array<i64: 1, 8, 32>}]} {
    %c0 = arith.constant 0 : index
    %c0_0 = arith.constant 0 : index
    %c0_1 = arith.constant 0 : index
    %0 = vector.load %arg1[%c0, %c0_0, %c0_1] : memref<1x8x32xf32, #tpu.memory_space<vmem>>, vector<1x8x32xf32>
    %1 = vector.shape_cast %0 : vector<1x8x32xf32> to vector<8x32xf32>
    %c0_2 = arith.constant 0 : index
    %c0_3 = arith.constant 0 : index
    %c0_4 = arith.constant 0 : index
    %2 = vector.load %arg3[%c0_2, %c0_3, %c0_4] : memref<1x8x32xf32, #tpu.memory_space<vmem>>, vector<1x8x32xf32>
    %3 = vector.shape_cast %2 : vector<1x8x32xf32> to vector<8x32xf32>
    %4 = arith.addf %1, %3 : vector<8x32xf32>
    %c0_5 = arith.constant 0 : index
    %c0_6 = arith.constant 0 : index
    %5 = vector.load %arg5[%c0_5, %c0_6] : memref<32x64xf32, #tpu.memory_space<vmem>>, vector<32x64xf32>
    %cst = arith.constant dense<0.000000e+00> : vector<8x64xf32>
    %6 = tpu.matmul %4, %5, %cst {dimension_numbers = #tpu.dot_dimension_numbers<[1], [0], [0], [1], [0, 0, 1, 1], [], []>} : vector<8x32xf32>, vector<32x64xf32>, vector<8x64xf32> -> vector<8x64xf32>
    %c0_7 = arith.constant 0 : index
    %c0_8 = arith.constant 0 : index
    %7 = vector.load %arg6[%c0_7, %c0_8] : memref<1x64xf32, #tpu.memory_space<vmem>>, vector<1x64xf32>
    %8 = vector.broadcast %7 : vector<1x64xf32> to vector<8x64xf32>
    %9 = arith.addf %6, %8 : vector<8x64xf32>
    %c0_9 = arith.constant 0 : index
    %c0_10 = arith.constant 0 : index
    %10 = vector.load %arg7[%c0_9, %c0_10] : memref<32x32xf32, #tpu.memory_space<vmem>>, vector<32x32xf32>
    %cst_11 = arith.constant dense<0.000000e+00> : vector<8x32xf32>
    %11 = tpu.matmul %1, %10, %cst_11 {dimension_numbers = #tpu.dot_dimension_numbers<[1], [0], [0], [1], [0, 0, 1, 1], [], []>} : vector<8x32xf32>, vector<32x32xf32>, vector<8x32xf32> -> vector<8x32xf32>
    %c0_12 = arith.constant 0 : index
    %c0_13 = arith.constant 0 : index
    %12 = vector.load %arg8[%c0_12, %c0_13] : memref<1x32xf32, #tpu.memory_space<vmem>>, vector<1x32xf32>
    %13 = vector.broadcast %12 : vector<1x32xf32> to vector<8x32xf32>
    %14 = arith.addf %11, %13 : vector<8x32xf32>
    %15 = vector.extract_strided_slice %9 {offsets = [0, 0], sizes = [8, 32], strides = [1, 1]} : vector<8x64xf32> to vector<8x32xf32>
    %16 = vector.extract_strided_slice %9 {offsets = [0, 32], sizes = [8, 32], strides = [1, 1]} : vector<8x64xf32> to vector<8x32xf32>
    %17 = vector.extract_strided_slice %15 {offsets = [0, 0], sizes = [8, 8], strides = [1, 1]} : vector<8x32xf32> to vector<8x8xf32>
    %18 = vector.extract_strided_slice %16 {offsets = [0, 0], sizes = [8, 8], strides = [1, 1]} : vector<8x32xf32> to vector<8x8xf32>
    %cst_14 = arith.constant dense<0.000000e+00> : vector<8x8xf32>
    %19 = tpu.matmul %17, %18, %cst_14 {dimension_numbers = #tpu.dot_dimension_numbers<[1], [1], [0], [0], [0, 0, 1, 0], [], []>} : vector<8x8xf32>, vector<8x8xf32>, vector<8x8xf32> -> vector<8x8xf32>
    %cst_15 = arith.constant dense<0xFF800000> : vector<8xf32>
    %20 = vector.multi_reduction <maximumf>, %19, %cst_15 [1] : vector<8x8xf32> to vector<8xf32>
    %21 = vector.shape_cast %20 : vector<8xf32> to vector<8x1xf32>
    %22 = vector.broadcast %21 : vector<8x1xf32> to vector<8x8xf32>
    %23 = arith.subf %19, %22 : vector<8x8xf32>
    %24 = math.exp %23 : vector<8x8xf32>
    %cst_16 = arith.constant dense<0.000000e+00> : vector<8xf32>
    %25 = vector.multi_reduction <add>, %24, %cst_16 [1] : vector<8x8xf32> to vector<8xf32>
    %26 = vector.shape_cast %25 : vector<8xf32> to vector<8x1xf32>
    %27 = tpu.reciprocal %26 {approx = true} : vector<8x1xf32> -> vector<8x1xf32>
    %28 = vector.broadcast %27 : vector<8x1xf32> to vector<8x8xf32>
    %29 = arith.mulf %24, %28 : vector<8x8xf32>
    %30 = vector.extract_strided_slice %14 {offsets = [0, 0], sizes = [8, 8], strides = [1, 1]} : vector<8x32xf32> to vector<8x8xf32>
    %cst_17 = arith.constant dense<0.000000e+00> : vector<8x8xf32>
    %31 = tpu.matmul %29, %30, %cst_17 {dimension_numbers = #tpu.dot_dimension_numbers<[1], [0], [0], [1], [0, 0, 1, 1], [], []>} : vector<8x8xf32>, vector<8x8xf32>, vector<8x8xf32> -> vector<8x8xf32>
    %c0_18 = arith.constant 0 : index
    %c0_19 = arith.constant 0 : index
    %32 = vector.load %arg9[%c0_18, %c0_19] : memref<32x32xf32, #tpu.memory_space<vmem>>, vector<8x32xf32>
    %cst_20 = arith.constant dense<0.000000e+00> : vector<8x32xf32>
    %33 = tpu.matmul %31, %32, %cst_20 {dimension_numbers = #tpu.dot_dimension_numbers<[1], [0], [0], [1], [0, 0, 1, 1], [], []>} : vector<8x8xf32>, vector<8x32xf32>, vector<8x32xf32> -> vector<8x32xf32>
    %34 = vector.extract_strided_slice %15 {offsets = [0, 8], sizes = [8, 8], strides = [1, 1]} : vector<8x32xf32> to vector<8x8xf32>
    %35 = vector.extract_strided_slice %16 {offsets = [0, 8], sizes = [8, 8], strides = [1, 1]} : vector<8x32xf32> to vector<8x8xf32>
    %cst_21 = arith.constant dense<0.000000e+00> : vector<8x8xf32>
    %36 = tpu.matmul %34, %35, %cst_21 {dimension_numbers = #tpu.dot_dimension_numbers<[1], [1], [0], [0], [0, 0, 1, 0], [], []>} : vector<8x8xf32>, vector<8x8xf32>, vector<8x8xf32> -> vector<8x8xf32>
    %cst_22 = arith.constant dense<0xFF800000> : vector<8xf32>
    %37 = vector.multi_reduction <maximumf>, %36, %cst_22 [1] : vector<8x8xf32> to vector<8xf32>
    %38 = vector.shape_cast %37 : vector<8xf32> to vector<8x1xf32>
    %39 = vector.broadcast %38 : vector<8x1xf32> to vector<8x8xf32>
    %40 = arith.subf %36, %39 : vector<8x8xf32>
    %41 = math.exp %40 : vector<8x8xf32>
    %cst_23 = arith.constant dense<0.000000e+00> : vector<8xf32>
    %42 = vector.multi_reduction <add>, %41, %cst_23 [1] : vector<8x8xf32> to vector<8xf32>
    %43 = vector.shape_cast %42 : vector<8xf32> to vector<8x1xf32>
    %44 = tpu.reciprocal %43 {approx = true} : vector<8x1xf32> -> vector<8x1xf32>
    %45 = vector.broadcast %44 : vector<8x1xf32> to vector<8x8xf32>
    %46 = arith.mulf %41, %45 : vector<8x8xf32>
    %47 = vector.extract_strided_slice %14 {offsets = [0, 8], sizes = [8, 8], strides = [1, 1]} : vector<8x32xf32> to vector<8x8xf32>
    %cst_24 = arith.constant dense<0.000000e+00> : vector<8x8xf32>
    %48 = tpu.matmul %46, %47, %cst_24 {dimension_numbers = #tpu.dot_dimension_numbers<[1], [0], [0], [1], [0, 0, 1, 1], [], []>} : vector<8x8xf32>, vector<8x8xf32>, vector<8x8xf32> -> vector<8x8xf32>
    %c8 = arith.constant 8 : index
    %c0_25 = arith.constant 0 : index
    %49 = vector.load %arg9[%c8, %c0_25] : memref<32x32xf32, #tpu.memory_space<vmem>>, vector<8x32xf32>
    %cst_26 = arith.constant dense<0.000000e+00> : vector<8x32xf32>
    %50 = tpu.matmul %48, %49, %cst_26 {dimension_numbers = #tpu.dot_dimension_numbers<[1], [0], [0], [1], [0, 0, 1, 1], [], []>} : vector<8x8xf32>, vector<8x32xf32>, vector<8x32xf32> -> vector<8x32xf32>
    %51 = arith.addf %33, %50 : vector<8x32xf32>
    %52 = vector.extract_strided_slice %15 {offsets = [0, 16], sizes = [8, 8], strides = [1, 1]} : vector<8x32xf32> to vector<8x8xf32>
    %53 = vector.extract_strided_slice %16 {offsets = [0, 16], sizes = [8, 8], strides = [1, 1]} : vector<8x32xf32> to vector<8x8xf32>
    %cst_27 = arith.constant dense<0.000000e+00> : vector<8x8xf32>
    %54 = tpu.matmul %52, %53, %cst_27 {dimension_numbers = #tpu.dot_dimension_numbers<[1], [1], [0], [0], [0, 0, 1, 0], [], []>} : vector<8x8xf32>, vector<8x8xf32>, vector<8x8xf32> -> vector<8x8xf32>
    %cst_28 = arith.constant dense<0xFF800000> : vector<8xf32>
    %55 = vector.multi_reduction <maximumf>, %54, %cst_28 [1] : vector<8x8xf32> to vector<8xf32>
    %56 = vector.shape_cast %55 : vector<8xf32> to vector<8x1xf32>
    %57 = vector.broadcast %56 : vector<8x1xf32> to vector<8x8xf32>
    %58 = arith.subf %54, %57 : vector<8x8xf32>
    %59 = math.exp %58 : vector<8x8xf32>
    %cst_29 = arith.constant dense<0.000000e+00> : vector<8xf32>
    %60 = vector.multi_reduction <add>, %59, %cst_29 [1] : vector<8x8xf32> to vector<8xf32>
    %61 = vector.shape_cast %60 : vector<8xf32> to vector<8x1xf32>
    %62 = tpu.reciprocal %61 {approx = true} : vector<8x1xf32> -> vector<8x1xf32>
    %63 = vector.broadcast %62 : vector<8x1xf32> to vector<8x8xf32>
    %64 = arith.mulf %59, %63 : vector<8x8xf32>
    %65 = vector.extract_strided_slice %14 {offsets = [0, 16], sizes = [8, 8], strides = [1, 1]} : vector<8x32xf32> to vector<8x8xf32>
    %cst_30 = arith.constant dense<0.000000e+00> : vector<8x8xf32>
    %66 = tpu.matmul %64, %65, %cst_30 {dimension_numbers = #tpu.dot_dimension_numbers<[1], [0], [0], [1], [0, 0, 1, 1], [], []>} : vector<8x8xf32>, vector<8x8xf32>, vector<8x8xf32> -> vector<8x8xf32>
    %c16 = arith.constant 16 : index
    %c0_31 = arith.constant 0 : index
    %67 = vector.load %arg9[%c16, %c0_31] : memref<32x32xf32, #tpu.memory_space<vmem>>, vector<8x32xf32>
    %cst_32 = arith.constant dense<0.000000e+00> : vector<8x32xf32>
    %68 = tpu.matmul %66, %67, %cst_32 {dimension_numbers = #tpu.dot_dimension_numbers<[1], [0], [0], [1], [0, 0, 1, 1], [], []>} : vector<8x8xf32>, vector<8x32xf32>, vector<8x32xf32> -> vector<8x32xf32>
    %69 = arith.addf %51, %68 : vector<8x32xf32>
    %70 = vector.extract_strided_slice %15 {offsets = [0, 24], sizes = [8, 8], strides = [1, 1]} : vector<8x32xf32> to vector<8x8xf32>
    %71 = vector.extract_strided_slice %16 {offsets = [0, 24], sizes = [8, 8], strides = [1, 1]} : vector<8x32xf32> to vector<8x8xf32>
    %cst_33 = arith.constant dense<0.000000e+00> : vector<8x8xf32>
    %72 = tpu.matmul %70, %71, %cst_33 {dimension_numbers = #tpu.dot_dimension_numbers<[1], [1], [0], [0], [0, 0, 1, 0], [], []>} : vector<8x8xf32>, vector<8x8xf32>, vector<8x8xf32> -> vector<8x8xf32>
    %cst_34 = arith.constant dense<0xFF800000> : vector<8xf32>
    %73 = vector.multi_reduction <maximumf>, %72, %cst_34 [1] : vector<8x8xf32> to vector<8xf32>
    %74 = vector.shape_cast %73 : vector<8xf32> to vector<8x1xf32>
    %75 = vector.broadcast %74 : vector<8x1xf32> to vector<8x8xf32>
    %76 = arith.subf %72, %75 : vector<8x8xf32>
    %77 = math.exp %76 : vector<8x8xf32>
    %cst_35 = arith.constant dense<0.000000e+00> : vector<8xf32>
    %78 = vector.multi_reduction <add>, %77, %cst_35 [1] : vector<8x8xf32> to vector<8xf32>
    %79 = vector.shape_cast %78 : vector<8xf32> to vector<8x1xf32>
    %80 = tpu.reciprocal %79 {approx = true} : vector<8x1xf32> -> vector<8x1xf32>
    %81 = vector.broadcast %80 : vector<8x1xf32> to vector<8x8xf32>
    %82 = arith.mulf %77, %81 : vector<8x8xf32>
    %83 = vector.extract_strided_slice %14 {offsets = [0, 24], sizes = [8, 8], strides = [1, 1]} : vector<8x32xf32> to vector<8x8xf32>
    %cst_36 = arith.constant dense<0.000000e+00> : vector<8x8xf32>
    %84 = tpu.matmul %82, %83, %cst_36 {dimension_numbers = #tpu.dot_dimension_numbers<[1], [0], [0], [1], [0, 0, 1, 1], [], []>} : vector<8x8xf32>, vector<8x8xf32>, vector<8x8xf32> -> vector<8x8xf32>
    %c24 = arith.constant 24 : index
    %c0_37 = arith.constant 0 : index
    %85 = vector.load %arg9[%c24, %c0_37] : memref<32x32xf32, #tpu.memory_space<vmem>>, vector<8x32xf32>
    %cst_38 = arith.constant dense<0.000000e+00> : vector<8x32xf32>
    %86 = tpu.matmul %84, %85, %cst_38 {dimension_numbers = #tpu.dot_dimension_numbers<[1], [0], [0], [1], [0, 0, 1, 1], [], []>} : vector<8x8xf32>, vector<8x32xf32>, vector<8x32xf32> -> vector<8x32xf32>
    %87 = arith.addf %69, %86 : vector<8x32xf32>
    %c0_39 = arith.constant 0 : index
    %c0_40 = arith.constant 0 : index
    %88 = vector.load %arg10[%c0_39, %c0_40] : memref<1x32xf32, #tpu.memory_space<vmem>>, vector<1x32xf32>
    %89 = vector.broadcast %88 : vector<1x32xf32> to vector<8x32xf32>
    %90 = arith.addf %87, %89 : vector<8x32xf32>
    %91 = arith.addf %1, %90 : vector<8x32xf32>
    %cst_41 = arith.constant dense<0.000000e+00> : vector<8xf32>
    %92 = vector.multi_reduction <add>, %91, %cst_41 [1] : vector<8x32xf32> to vector<8xf32>
    %93 = vector.shape_cast %92 : vector<8xf32> to vector<8x1xf32>
    %cst_42 = arith.constant 3.200000e+01 : f32
    %94 = vector.broadcast %cst_42 : f32 to vector<8x1xf32>
    %95 = arith.divf %93, %94 : vector<8x1xf32>
    %96 = vector.broadcast %95 : vector<8x1xf32> to vector<8x32xf32>
    %97 = arith.subf %91, %96 : vector<8x32xf32>
    %98 = arith.mulf %97, %97 : vector<8x32xf32>
    %cst_43 = arith.constant dense<0.000000e+00> : vector<8xf32>
    %99 = vector.multi_reduction <add>, %98, %cst_43 [1] : vector<8x32xf32> to vector<8xf32>
    %100 = vector.shape_cast %99 : vector<8xf32> to vector<8x1xf32>
    %cst_44 = arith.constant 3.200000e+01 : f32
    %101 = vector.broadcast %cst_44 : f32 to vector<8x1xf32>
    %102 = arith.divf %100, %101 : vector<8x1xf32>
    %cst_45 = arith.constant 9.99999974E-6 : f32
    %103 = vector.broadcast %cst_45 : f32 to vector<8x1xf32>
    %104 = arith.addf %102, %103 : vector<8x1xf32>
    %105 = math.rsqrt %104 : vector<8x1xf32>
    %106 = vector.broadcast %105 : vector<8x1xf32> to vector<8x32xf32>
    %107 = arith.mulf %97, %106 : vector<8x32xf32>
    %c0_46 = arith.constant 0 : index
    %c0_47 = arith.constant 0 : index
    %108 = vector.load %arg23[%c0_46, %c0_47] : memref<1x32xf32, #tpu.memory_space<vmem>>, vector<1x32xf32>
    %109 = vector.broadcast %108 : vector<1x32xf32> to vector<8x32xf32>
    %110 = arith.mulf %107, %109 : vector<8x32xf32>
    %c0_48 = arith.constant 0 : index
    %c0_49 = arith.constant 0 : index
    %111 = vector.load %arg24[%c0_48, %c0_49] : memref<1x32xf32, #tpu.memory_space<vmem>>, vector<1x32xf32>
    %112 = vector.broadcast %111 : vector<1x32xf32> to vector<8x32xf32>
    %113 = arith.addf %110, %112 : vector<8x32xf32>
    %c0_50 = arith.constant 0 : index
    %c0_51 = arith.constant 0 : index
    %c0_52 = arith.constant 0 : index
    %114 = vector.load %arg2[%c0_50, %c0_51, %c0_52] : memref<1x16x32xf32, #tpu.memory_space<vmem>>, vector<1x16x32xf32>
    %115 = vector.shape_cast %114 : vector<1x16x32xf32> to vector<16x32xf32>
    %c0_53 = arith.constant 0 : index
    %c0_54 = arith.constant 0 : index
    %c0_55 = arith.constant 0 : index
    %116 = vector.load %arg4[%c0_53, %c0_54, %c0_55] : memref<1x16x32xf32, #tpu.memory_space<vmem>>, vector<1x16x32xf32>
    %117 = vector.shape_cast %116 : vector<1x16x32xf32> to vector<16x32xf32>
    %118 = arith.addf %115, %117 : vector<16x32xf32>
    %119 = arith.addf %113, %3 : vector<8x32xf32>
    %c0_56 = arith.constant 0 : index
    %c0_57 = arith.constant 0 : index
    %120 = vector.load %arg11[%c0_56, %c0_57] : memref<32x32xf32, #tpu.memory_space<vmem>>, vector<32x32xf32>
    %cst_58 = arith.constant dense<0.000000e+00> : vector<8x32xf32>
    %121 = tpu.matmul %119, %120, %cst_58 {dimension_numbers = #tpu.dot_dimension_numbers<[1], [0], [0], [1], [0, 0, 1, 1], [], []>} : vector<8x32xf32>, vector<32x32xf32>, vector<8x32xf32> -> vector<8x32xf32>
    %c0_59 = arith.constant 0 : index
    %c0_60 = arith.constant 0 : index
    %122 = vector.load %arg12[%c0_59, %c0_60] : memref<1x32xf32, #tpu.memory_space<vmem>>, vector<1x32xf32>
    %123 = vector.broadcast %122 : vector<1x32xf32> to vector<8x32xf32>
    %124 = arith.addf %121, %123 : vector<8x32xf32>
    %c0_61 = arith.constant 0 : index
    %c0_62 = arith.constant 0 : index
    %125 = vector.load %arg13[%c0_61, %c0_62] : memref<32x32xf32, #tpu.memory_space<vmem>>, vector<32x32xf32>
    %cst_63 = arith.constant dense<0.000000e+00> : vector<16x32xf32>
    %126 = tpu.matmul %118, %125, %cst_63 {dimension_numbers = #tpu.dot_dimension_numbers<[1], [0], [0], [1], [0, 0, 1, 1], [], []>} : vector<16x32xf32>, vector<32x32xf32>, vector<16x32xf32> -> vector<16x32xf32>
    %c0_64 = arith.constant 0 : index
    %c0_65 = arith.constant 0 : index
    %127 = vector.load %arg14[%c0_64, %c0_65] : memref<1x32xf32, #tpu.memory_space<vmem>>, vector<1x32xf32>
    %128 = vector.broadcast %127 : vector<1x32xf32> to vector<16x32xf32>
    %129 = arith.addf %126, %128 : vector<16x32xf32>
    %c0_66 = arith.constant 0 : index
    %c0_67 = arith.constant 0 : index
    %130 = vector.load %arg15[%c0_66, %c0_67] : memref<32x32xf32, #tpu.memory_space<vmem>>, vector<32x32xf32>
    %cst_68 = arith.constant dense<0.000000e+00> : vector<16x32xf32>
    %131 = tpu.matmul %115, %130, %cst_68 {dimension_numbers = #tpu.dot_dimension_numbers<[1], [0], [0], [1], [0, 0, 1, 1], [], []>} : vector<16x32xf32>, vector<32x32xf32>, vector<16x32xf32> -> vector<16x32xf32>
    %c0_69 = arith.constant 0 : index
    %c0_70 = arith.constant 0 : index
    %132 = vector.load %arg16[%c0_69, %c0_70] : memref<1x32xf32, #tpu.memory_space<vmem>>, vector<1x32xf32>
    %133 = vector.broadcast %132 : vector<1x32xf32> to vector<16x32xf32>
    %134 = arith.addf %131, %133 : vector<16x32xf32>
    %135 = vector.extract_strided_slice %124 {offsets = [0, 0], sizes = [8, 8], strides = [1, 1]} : vector<8x32xf32> to vector<8x8xf32>
    %136 = vector.extract_strided_slice %129 {offsets = [0, 0], sizes = [16, 8], strides = [1, 1]} : vector<16x32xf32> to vector<16x8xf32>
    %cst_71 = arith.constant dense<0.000000e+00> : vector<8x16xf32>
    %137 = tpu.matmul %135, %136, %cst_71 {dimension_numbers = #tpu.dot_dimension_numbers<[1], [1], [0], [0], [0, 0, 1, 0], [], []>} : vector<8x8xf32>, vector<16x8xf32>, vector<8x16xf32> -> vector<8x16xf32>
    %cst_72 = arith.constant dense<0xFF800000> : vector<8xf32>
    %138 = vector.multi_reduction <maximumf>, %137, %cst_72 [1] : vector<8x16xf32> to vector<8xf32>
    %139 = vector.shape_cast %138 : vector<8xf32> to vector<8x1xf32>
    %140 = vector.broadcast %139 : vector<8x1xf32> to vector<8x16xf32>
    %141 = arith.subf %137, %140 : vector<8x16xf32>
    %142 = math.exp %141 : vector<8x16xf32>
    %cst_73 = arith.constant dense<0.000000e+00> : vector<8xf32>
    %143 = vector.multi_reduction <add>, %142, %cst_73 [1] : vector<8x16xf32> to vector<8xf32>
    %144 = vector.shape_cast %143 : vector<8xf32> to vector<8x1xf32>
    %145 = tpu.reciprocal %144 {approx = true} : vector<8x1xf32> -> vector<8x1xf32>
    %146 = vector.broadcast %145 : vector<8x1xf32> to vector<8x16xf32>
    %147 = arith.mulf %142, %146 : vector<8x16xf32>
    %148 = vector.extract_strided_slice %134 {offsets = [0, 0], sizes = [16, 8], strides = [1, 1]} : vector<16x32xf32> to vector<16x8xf32>
    %cst_74 = arith.constant dense<0.000000e+00> : vector<8x8xf32>
    %149 = tpu.matmul %147, %148, %cst_74 {dimension_numbers = #tpu.dot_dimension_numbers<[1], [0], [0], [1], [0, 0, 1, 1], [], []>} : vector<8x16xf32>, vector<16x8xf32>, vector<8x8xf32> -> vector<8x8xf32>
    %c0_75 = arith.constant 0 : index
    %c0_76 = arith.constant 0 : index
    %150 = vector.load %arg17[%c0_75, %c0_76] : memref<32x32xf32, #tpu.memory_space<vmem>>, vector<8x32xf32>
    %cst_77 = arith.constant dense<0.000000e+00> : vector<8x32xf32>
    %151 = tpu.matmul %149, %150, %cst_77 {dimension_numbers = #tpu.dot_dimension_numbers<[1], [0], [0], [1], [0, 0, 1, 1], [], []>} : vector<8x8xf32>, vector<8x32xf32>, vector<8x32xf32> -> vector<8x32xf32>
    %152 = vector.extract_strided_slice %124 {offsets = [0, 8], sizes = [8, 8], strides = [1, 1]} : vector<8x32xf32> to vector<8x8xf32>
    %153 = vector.extract_strided_slice %129 {offsets = [0, 8], sizes = [16, 8], strides = [1, 1]} : vector<16x32xf32> to vector<16x8xf32>
    %cst_78 = arith.constant dense<0.000000e+00> : vector<8x16xf32>
    %154 = tpu.matmul %152, %153, %cst_78 {dimension_numbers = #tpu.dot_dimension_numbers<[1], [1], [0], [0], [0, 0, 1, 0], [], []>} : vector<8x8xf32>, vector<16x8xf32>, vector<8x16xf32> -> vector<8x16xf32>
    %cst_79 = arith.constant dense<0xFF800000> : vector<8xf32>
    %155 = vector.multi_reduction <maximumf>, %154, %cst_79 [1] : vector<8x16xf32> to vector<8xf32>
    %156 = vector.shape_cast %155 : vector<8xf32> to vector<8x1xf32>
    %157 = vector.broadcast %156 : vector<8x1xf32> to vector<8x16xf32>
    %158 = arith.subf %154, %157 : vector<8x16xf32>
    %159 = math.exp %158 : vector<8x16xf32>
    %cst_80 = arith.constant dense<0.000000e+00> : vector<8xf32>
    %160 = vector.multi_reduction <add>, %159, %cst_80 [1] : vector<8x16xf32> to vector<8xf32>
    %161 = vector.shape_cast %160 : vector<8xf32> to vector<8x1xf32>
    %162 = tpu.reciprocal %161 {approx = true} : vector<8x1xf32> -> vector<8x1xf32>
    %163 = vector.broadcast %162 : vector<8x1xf32> to vector<8x16xf32>
    %164 = arith.mulf %159, %163 : vector<8x16xf32>
    %165 = vector.extract_strided_slice %134 {offsets = [0, 8], sizes = [16, 8], strides = [1, 1]} : vector<16x32xf32> to vector<16x8xf32>
    %cst_81 = arith.constant dense<0.000000e+00> : vector<8x8xf32>
    %166 = tpu.matmul %164, %165, %cst_81 {dimension_numbers = #tpu.dot_dimension_numbers<[1], [0], [0], [1], [0, 0, 1, 1], [], []>} : vector<8x16xf32>, vector<16x8xf32>, vector<8x8xf32> -> vector<8x8xf32>
    %c8_82 = arith.constant 8 : index
    %c0_83 = arith.constant 0 : index
    %167 = vector.load %arg17[%c8_82, %c0_83] : memref<32x32xf32, #tpu.memory_space<vmem>>, vector<8x32xf32>
    %cst_84 = arith.constant dense<0.000000e+00> : vector<8x32xf32>
    %168 = tpu.matmul %166, %167, %cst_84 {dimension_numbers = #tpu.dot_dimension_numbers<[1], [0], [0], [1], [0, 0, 1, 1], [], []>} : vector<8x8xf32>, vector<8x32xf32>, vector<8x32xf32> -> vector<8x32xf32>
    %169 = arith.addf %151, %168 : vector<8x32xf32>
    %170 = vector.extract_strided_slice %124 {offsets = [0, 16], sizes = [8, 8], strides = [1, 1]} : vector<8x32xf32> to vector<8x8xf32>
    %171 = vector.extract_strided_slice %129 {offsets = [0, 16], sizes = [16, 8], strides = [1, 1]} : vector<16x32xf32> to vector<16x8xf32>
    %cst_85 = arith.constant dense<0.000000e+00> : vector<8x16xf32>
    %172 = tpu.matmul %170, %171, %cst_85 {dimension_numbers = #tpu.dot_dimension_numbers<[1], [1], [0], [0], [0, 0, 1, 0], [], []>} : vector<8x8xf32>, vector<16x8xf32>, vector<8x16xf32> -> vector<8x16xf32>
    %cst_86 = arith.constant dense<0xFF800000> : vector<8xf32>
    %173 = vector.multi_reduction <maximumf>, %172, %cst_86 [1] : vector<8x16xf32> to vector<8xf32>
    %174 = vector.shape_cast %173 : vector<8xf32> to vector<8x1xf32>
    %175 = vector.broadcast %174 : vector<8x1xf32> to vector<8x16xf32>
    %176 = arith.subf %172, %175 : vector<8x16xf32>
    %177 = math.exp %176 : vector<8x16xf32>
    %cst_87 = arith.constant dense<0.000000e+00> : vector<8xf32>
    %178 = vector.multi_reduction <add>, %177, %cst_87 [1] : vector<8x16xf32> to vector<8xf32>
    %179 = vector.shape_cast %178 : vector<8xf32> to vector<8x1xf32>
    %180 = tpu.reciprocal %179 {approx = true} : vector<8x1xf32> -> vector<8x1xf32>
    %181 = vector.broadcast %180 : vector<8x1xf32> to vector<8x16xf32>
    %182 = arith.mulf %177, %181 : vector<8x16xf32>
    %183 = vector.extract_strided_slice %134 {offsets = [0, 16], sizes = [16, 8], strides = [1, 1]} : vector<16x32xf32> to vector<16x8xf32>
    %cst_88 = arith.constant dense<0.000000e+00> : vector<8x8xf32>
    %184 = tpu.matmul %182, %183, %cst_88 {dimension_numbers = #tpu.dot_dimension_numbers<[1], [0], [0], [1], [0, 0, 1, 1], [], []>} : vector<8x16xf32>, vector<16x8xf32>, vector<8x8xf32> -> vector<8x8xf32>
    %c16_89 = arith.constant 16 : index
    %c0_90 = arith.constant 0 : index
    %185 = vector.load %arg17[%c16_89, %c0_90] : memref<32x32xf32, #tpu.memory_space<vmem>>, vector<8x32xf32>
    %cst_91 = arith.constant dense<0.000000e+00> : vector<8x32xf32>
    %186 = tpu.matmul %184, %185, %cst_91 {dimension_numbers = #tpu.dot_dimension_numbers<[1], [0], [0], [1], [0, 0, 1, 1], [], []>} : vector<8x8xf32>, vector<8x32xf32>, vector<8x32xf32> -> vector<8x32xf32>
    %187 = arith.addf %169, %186 : vector<8x32xf32>
    %188 = vector.extract_strided_slice %124 {offsets = [0, 24], sizes = [8, 8], strides = [1, 1]} : vector<8x32xf32> to vector<8x8xf32>
    %189 = vector.extract_strided_slice %129 {offsets = [0, 24], sizes = [16, 8], strides = [1, 1]} : vector<16x32xf32> to vector<16x8xf32>
    %cst_92 = arith.constant dense<0.000000e+00> : vector<8x16xf32>
    %190 = tpu.matmul %188, %189, %cst_92 {dimension_numbers = #tpu.dot_dimension_numbers<[1], [1], [0], [0], [0, 0, 1, 0], [], []>} : vector<8x8xf32>, vector<16x8xf32>, vector<8x16xf32> -> vector<8x16xf32>
    %cst_93 = arith.constant dense<0xFF800000> : vector<8xf32>
    %191 = vector.multi_reduction <maximumf>, %190, %cst_93 [1] : vector<8x16xf32> to vector<8xf32>
    %192 = vector.shape_cast %191 : vector<8xf32> to vector<8x1xf32>
    %193 = vector.broadcast %192 : vector<8x1xf32> to vector<8x16xf32>
    %194 = arith.subf %190, %193 : vector<8x16xf32>
    %195 = math.exp %194 : vector<8x16xf32>
    %cst_94 = arith.constant dense<0.000000e+00> : vector<8xf32>
    %196 = vector.multi_reduction <add>, %195, %cst_94 [1] : vector<8x16xf32> to vector<8xf32>
    %197 = vector.shape_cast %196 : vector<8xf32> to vector<8x1xf32>
    %198 = tpu.reciprocal %197 {approx = true} : vector<8x1xf32> -> vector<8x1xf32>
    %199 = vector.broadcast %198 : vector<8x1xf32> to vector<8x16xf32>
    %200 = arith.mulf %195, %199 : vector<8x16xf32>
    %201 = vector.extract_strided_slice %134 {offsets = [0, 24], sizes = [16, 8], strides = [1, 1]} : vector<16x32xf32> to vector<16x8xf32>
    %cst_95 = arith.constant dense<0.000000e+00> : vector<8x8xf32>
    %202 = tpu.matmul %200, %201, %cst_95 {dimension_numbers = #tpu.dot_dimension_numbers<[1], [0], [0], [1], [0, 0, 1, 1], [], []>} : vector<8x16xf32>, vector<16x8xf32>, vector<8x8xf32> -> vector<8x8xf32>
    %c24_96 = arith.constant 24 : index
    %c0_97 = arith.constant 0 : index
    %203 = vector.load %arg17[%c24_96, %c0_97] : memref<32x32xf32, #tpu.memory_space<vmem>>, vector<8x32xf32>
    %cst_98 = arith.constant dense<0.000000e+00> : vector<8x32xf32>
    %204 = tpu.matmul %202, %203, %cst_98 {dimension_numbers = #tpu.dot_dimension_numbers<[1], [0], [0], [1], [0, 0, 1, 1], [], []>} : vector<8x8xf32>, vector<8x32xf32>, vector<8x32xf32> -> vector<8x32xf32>
    %205 = arith.addf %187, %204 : vector<8x32xf32>
    %c0_99 = arith.constant 0 : index
    %c0_100 = arith.constant 0 : index
    %206 = vector.load %arg18[%c0_99, %c0_100] : memref<1x32xf32, #tpu.memory_space<vmem>>, vector<1x32xf32>
    %207 = vector.broadcast %206 : vector<1x32xf32> to vector<8x32xf32>
    %208 = arith.addf %205, %207 : vector<8x32xf32>
    %209 = arith.addf %113, %208 : vector<8x32xf32>
    %cst_101 = arith.constant dense<0.000000e+00> : vector<8xf32>
    %210 = vector.multi_reduction <add>, %209, %cst_101 [1] : vector<8x32xf32> to vector<8xf32>
    %211 = vector.shape_cast %210 : vector<8xf32> to vector<8x1xf32>
    %cst_102 = arith.constant 3.200000e+01 : f32
    %212 = vector.broadcast %cst_102 : f32 to vector<8x1xf32>
    %213 = arith.divf %211, %212 : vector<8x1xf32>
    %214 = vector.broadcast %213 : vector<8x1xf32> to vector<8x32xf32>
    %215 = arith.subf %209, %214 : vector<8x32xf32>
    %216 = arith.mulf %215, %215 : vector<8x32xf32>
    %cst_103 = arith.constant dense<0.000000e+00> : vector<8xf32>
    %217 = vector.multi_reduction <add>, %216, %cst_103 [1] : vector<8x32xf32> to vector<8xf32>
    %218 = vector.shape_cast %217 : vector<8xf32> to vector<8x1xf32>
    %cst_104 = arith.constant 3.200000e+01 : f32
    %219 = vector.broadcast %cst_104 : f32 to vector<8x1xf32>
    %220 = arith.divf %218, %219 : vector<8x1xf32>
    %cst_105 = arith.constant 9.99999974E-6 : f32
    %221 = vector.broadcast %cst_105 : f32 to vector<8x1xf32>
    %222 = arith.addf %220, %221 : vector<8x1xf32>
    %223 = math.rsqrt %222 : vector<8x1xf32>
    %224 = vector.broadcast %223 : vector<8x1xf32> to vector<8x32xf32>
    %225 = arith.mulf %215, %224 : vector<8x32xf32>
    %c0_106 = arith.constant 0 : index
    %c0_107 = arith.constant 0 : index
    %226 = vector.load %arg25[%c0_106, %c0_107] : memref<1x32xf32, #tpu.memory_space<vmem>>, vector<1x32xf32>
    %227 = vector.broadcast %226 : vector<1x32xf32> to vector<8x32xf32>
    %228 = arith.mulf %225, %227 : vector<8x32xf32>
    %c0_108 = arith.constant 0 : index
    %c0_109 = arith.constant 0 : index
    %229 = vector.load %arg26[%c0_108, %c0_109] : memref<1x32xf32, #tpu.memory_space<vmem>>, vector<1x32xf32>
    %230 = vector.broadcast %229 : vector<1x32xf32> to vector<8x32xf32>
    %231 = arith.addf %228, %230 : vector<8x32xf32>
    %c0_110 = arith.constant 0 : index
    %c0_111 = arith.constant 0 : index
    %232 = vector.load %arg19[%c0_110, %c0_111] : memref<32x64xf32, #tpu.memory_space<vmem>>, vector<32x64xf32>
    %cst_112 = arith.constant dense<0.000000e+00> : vector<8x64xf32>
    %233 = tpu.matmul %231, %232, %cst_112 {dimension_numbers = #tpu.dot_dimension_numbers<[1], [0], [0], [1], [0, 0, 1, 1], [], []>} : vector<8x32xf32>, vector<32x64xf32>, vector<8x64xf32> -> vector<8x64xf32>
    %c0_113 = arith.constant 0 : index
    %c0_114 = arith.constant 0 : index
    %234 = vector.load %arg20[%c0_113, %c0_114] : memref<1x64xf32, #tpu.memory_space<vmem>>, vector<1x64xf32>
    %235 = vector.broadcast %234 : vector<1x64xf32> to vector<8x64xf32>
    %236 = arith.addf %233, %235 : vector<8x64xf32>
    %cst_115 = arith.constant 0.000000e+00 : f32
    %237 = vector.broadcast %cst_115 : f32 to vector<8x64xf32>
    %238 = arith.maximumf %236, %237 : vector<8x64xf32>
    %c0_116 = arith.constant 0 : index
    %c0_117 = arith.constant 0 : index
    %239 = vector.load %arg21[%c0_116, %c0_117] : memref<64x32xf32, #tpu.memory_space<vmem>>, vector<64x32xf32>
    %cst_118 = arith.constant dense<0.000000e+00> : vector<8x32xf32>
    %240 = tpu.matmul %238, %239, %cst_118 {dimension_numbers = #tpu.dot_dimension_numbers<[1], [0], [0], [1], [0, 0, 1, 1], [], []>} : vector<8x64xf32>, vector<64x32xf32>, vector<8x32xf32> -> vector<8x32xf32>
    %c0_119 = arith.constant 0 : index
    %c0_120 = arith.constant 0 : index
    %241 = vector.load %arg22[%c0_119, %c0_120] : memref<1x32xf32, #tpu.memory_space<vmem>>, vector<1x32xf32>
    %242 = vector.broadcast %241 : vector<1x32xf32> to vector<8x32xf32>
    %243 = arith.addf %240, %242 : vector<8x32xf32>
    %244 = arith.addf %231, %243 : vector<8x32xf32>
    %cst_121 = arith.constant dense<0.000000e+00> : vector<8xf32>
    %245 = vector.multi_reduction <add>, %244, %cst_121 [1] : vector<8x32xf32> to vector<8xf32>
    %246 = vector.shape_cast %245 : vector<8xf32> to vector<8x1xf32>
    %cst_122 = arith.constant 3.200000e+01 : f32
    %247 = vector.broadcast %cst_122 : f32 to vector<8x1xf32>
    %248 = arith.divf %246, %247 : vector<8x1xf32>
    %249 = vector.broadcast %248 : vector<8x1xf32> to vector<8x32xf32>
    %250 = arith.subf %244, %249 : vector<8x32xf32>
    %251 = arith.mulf %250, %250 : vector<8x32xf32>
    %cst_123 = arith.constant dense<0.000000e+00> : vector<8xf32>
    %252 = vector.multi_reduction <add>, %251, %cst_123 [1] : vector<8x32xf32> to vector<8xf32>
    %253 = vector.shape_cast %252 : vector<8xf32> to vector<8x1xf32>
    %cst_124 = arith.constant 3.200000e+01 : f32
    %254 = vector.broadcast %cst_124 : f32 to vector<8x1xf32>
    %255 = arith.divf %253, %254 : vector<8x1xf32>
    %cst_125 = arith.constant 9.99999974E-6 : f32
    %256 = vector.broadcast %cst_125 : f32 to vector<8x1xf32>
    %257 = arith.addf %255, %256 : vector<8x1xf32>
    %258 = math.rsqrt %257 : vector<8x1xf32>
    %259 = vector.broadcast %258 : vector<8x1xf32> to vector<8x32xf32>
    %260 = arith.mulf %250, %259 : vector<8x32xf32>
    %c0_126 = arith.constant 0 : index
    %c0_127 = arith.constant 0 : index
    %261 = vector.load %arg27[%c0_126, %c0_127] : memref<1x32xf32, #tpu.memory_space<vmem>>, vector<1x32xf32>
    %262 = vector.broadcast %261 : vector<1x32xf32> to vector<8x32xf32>
    %263 = arith.mulf %260, %262 : vector<8x32xf32>
    %c0_128 = arith.constant 0 : index
    %c0_129 = arith.constant 0 : index
    %264 = vector.load %arg28[%c0_128, %c0_129] : memref<1x32xf32, #tpu.memory_space<vmem>>, vector<1x32xf32>
    %265 = vector.broadcast %264 : vector<1x32xf32> to vector<8x32xf32>
    %266 = arith.addf %263, %265 : vector<8x32xf32>
    %c0_130 = arith.constant 0 : index
    %c0_131 = arith.constant 0 : index
    %c0_132 = arith.constant 0 : index
    %267 = vector.load %arg29[%c0_130, %c0_131, %c0_132] : memref<1x8x32xf32, #tpu.memory_space<vmem>>, vector<1x8x32xf32>
    %268 = vector.shape_cast %267 : vector<1x8x32xf32> to vector<8x32xf32>
    %269 = vector.shape_cast %266 : vector<8x32xf32> to vector<1x8x32xf32>
    tpu.vector_store %arg29[%c0_130, %c0_131, %c0_132], %269 {strides = array<i32>} : memref<1x8x32xf32, #tpu.memory_space<vmem>>, vector<1x8x32xf32>,
    return
  }
  func.func @transform_0(%arg0: i32) -> (i32, i32, i32) {
    %c0_i32 = arith.constant 0 : i32
    %c0_i32_0 = arith.constant 0 : i32
    %c0_i32_1 = arith.constant 0 : i32
    return %arg0, %c0_i32, %c0_i32_0 : i32, i32, i32
  }
  func.func @transform_1(%arg0: i32) -> (i32, i32, i32) {
    %c0_i32 = arith.constant 0 : i32
    %c0_i32_0 = arith.constant 0 : i32
    %c0_i32_1 = arith.constant 0 : i32
    return %arg0, %c0_i32, %c0_i32_0 : i32, i32, i32
  }
  func.func @transform_2(%arg0: i32) -> (i32, i32, i32) {
    %c0_i32 = arith.constant 0 : i32
    %c0_i32_0 = arith.constant 0 : i32
    %c0_i32_1 = arith.constant 0 : i32
    return %arg0, %c0_i32, %c0_i32_0 : i32, i32, i32
  }
  func.func @transform_3(%arg0: i32) -> (i32, i32, i32) {
    %c0_i32 = arith.constant 0 : i32
    %c0_i32_0 = arith.constant 0 : i32
    %c0_i32_1 = arith.constant 0 : i32
    return %arg0, %c0_i32, %c0_i32_0 : i32, i32, i32
  }
  func.func @transform_4(%arg0: i32) -> (i32, i32) {
    %c0_i32 = arith.constant 0 : i32
    %c0_i32_0 = arith.constant 0 : i32
    %c0_i32_1 = arith.constant 0 : i32
    return %c0_i32, %c0_i32_0 : i32, i32
  }
  func.func @transform_5(%arg0: i32) -> (i32, i32) {
    %c0_i32 = arith.constant 0 : i32
    %c0_i32_0 = arith.constant 0 : i32
    %c0_i32_1 = arith.constant 0 : i32
    return %c0_i32, %c0_i32_0 : i32, i32
  }
  func.func @transform_6(%arg0: i32) -> (i32, i32) {
    %c0_i32 = arith.constant 0 : i32
    %c0_i32_0 = arith.constant 0 : i32
    %c0_i32_1 = arith.constant 0 : i32
    return %c0_i32, %c0_i32_0 : i32, i32
  }
  func.func @transform_7(%arg0: i32) -> (i32, i32) {
    %c0_i32 = arith.constant 0 : i32
    %c0_i32_0 = arith.constant 0 : i32
    %c0_i32_1 = arith.constant 0 : i32
    return %c0_i32, %c0_i32_0 : i32, i32
  }
  func.func @transform_8(%arg0: i32) -> (i32, i32) {
    %c0_i32 = arith.constant 0 : i32
    %c0_i32_0 = arith.constant 0 : i32
    %c0_i32_1 = arith.constant 0 : i32
    return %c0_i32, %c0_i32_0 : i32, i32
  }
  func.func @transform_9(%arg0: i32) -> (i32, i32) {
    %c0_i32 = arith.constant 0 : i32
    %c0_i32_0 = arith.constant 0 : i32
    %c0_i32_1 = arith.constant 0 : i32
    return %c0_i32, %c0_i32_0 : i32, i32
  }
  func.func @transform_10(%arg0: i32) -> (i32, i32) {
    %c0_i32 = arith.constant 0 : i32
    %c0_i32_0 = arith.constant 0 : i32
    %c0_i32_1 = arith.constant 0 : i32
    return %c0_i32, %c0_i32_0 : i32, i32
  }
  func.func @transform_11(%arg0: i32) -> (i32, i32) {
    %c0_i32 = arith.constant 0 : i32
    %c0_i32_0 = arith.constant 0 : i32
    %c0_i32_1 = arith.constant 0 : i32
    return %c0_i32, %c0_i32_0 : i32, i32
  }
  func.func @transform_12(%arg0: i32) -> (i32, i32) {
    %c0_i32 = arith.constant 0 : i32
    %c0_i32_0 = arith.constant 0 : i32
    %c0_i32_1 = arith.constant 0 : i32
    return %c0_i32, %c0_i32_0 : i32, i32
  }
  func.func @transform_13(%arg0: i32) -> (i32, i32) {
    %c0_i32 = arith.constant 0 : i32
    %c0_i32_0 = arith.constant 0 : i32
    %c0_i32_1 = arith.constant 0 : i32
    return %c0_i32, %c0_i32_0 : i32, i32
  }
  func.func @transform_14(%arg0: i32) -> (i32, i32) {
    %c0_i32 = arith.constant 0 : i32
    %c0_i32_0 = arith.constant 0 : i32
    %c0_i32_1 = arith.constant 0 : i32
    return %c0_i32, %c0_i32_0 : i32, i32
  }
  func.func @transform_15(%arg0: i32) -> (i32, i32) {
    %c0_i32 = arith.constant 0 : i32
    %c0_i32_0 = arith.constant 0 : i32
    %c0_i32_1 = arith.constant 0 : i32
    return %c0_i32, %c0_i32_0 : i32, i32
  }
  func.func @transform_16(%arg0: i32) -> (i32, i32) {
    %c0_i32 = arith.constant 0 : i32
    %c0_i32_0 = arith.constant 0 : i32
    %c0_i32_1 = arith.constant 0 : i32
    return %c0_i32, %c0_i32_0 : i32, i32
  }
  func.func @transform_17(%arg0: i32) -> (i32, i32) {
    %c0_i32 = arith.constant 0 : i32
    %c0_i32_0 = arith.constant 0 : i32
    %c0_i32_1 = arith.constant 0 : i32
    return %c0_i32, %c0_i32_0 : i32, i32
  }
  func.func @transform_18(%arg0: i32) -> (i32, i32) {
    %c0_i32 = arith.constant 0 : i32
    %c0_i32_0 = arith.constant 0 : i32
    %c0_i32_1 = arith.constant 0 : i32
    return %c0_i32, %c0_i32_0 : i32, i32
  }
  func.func @transform_19(%arg0: i32) -> (i32, i32) {
    %c0_i32 = arith.constant 0 : i32
    %c0_i32_0 = arith.constant 0 : i32
    %c0_i32_1 = arith.constant 0 : i32
    return %c0_i32, %c0_i32_0 : i32, i32
  }
  func.func @transform_20(%arg0: i32) -> (i32, i32) {
    %c0_i32 = arith.constant 0 : i32
    %c0_i32_0 = arith.constant 0 : i32
    %c0_i32_1 = arith.constant 0 : i32
    return %c0_i32, %c0_i32_0 : i32, i32
  }
  func.func @transform_21(%arg0: i32) -> (i32, i32) {
    %c0_i32 = arith.constant 0 : i32
    %c0_i32_0 = arith.constant 0 : i32
    %c0_i32_1 = arith.constant 0 : i32
    return %c0_i32, %c0_i32_0 : i32, i32
  }
  func.func @transform_22(%arg0: i32) -> (i32, i32) {
    %c0_i32 = arith.constant 0 : i32
    %c0_i32_0 = arith.constant 0 : i32
    %c0_i32_1 = arith.constant 0 : i32
    return %c0_i32, %c0_i32_0 : i32, i32
  }
  func.func @transform_23(%arg0: i32) -> (i32, i32) {
    %c0_i32 = arith.constant 0 : i32
    %c0_i32_0 = arith.constant 0 : i32
    %c0_i32_1 = arith.constant 0 : i32
    return %c0_i32, %c0_i32_0 : i32, i32
  }
  func.func @transform_24(%arg0: i32) -> (i32, i32) {
    %c0_i32 = arith.constant 0 : i32
    %c0_i32_0 = arith.constant 0 : i32
    %c0_i32_1 = arith.constant 0 : i32
    return %c0_i32, %c0_i32_0 : i32, i32
  }
  func.func @transform_25(%arg0: i32) -> (i32, i32) {
    %c0_i32 = arith.constant 0 : i32
    %c0_i32_0 = arith.constant 0 : i32
    %c0_i32_1 = arith.constant 0 : i32
    return %c0_i32, %c0_i32_0 : i32, i32
  }
  func.func @transform_26(%arg0: i32) -> (i32, i32) {
    %c0_i32 = arith.constant 0 : i32
    %c0_i32_0 = arith.constant 0 : i32
    %c0_i32_1 = arith.constant 0 : i32
    return %c0_i32, %c0_i32_0 : i32, i32
  }
  func.func @transform_27(%arg0: i32) -> (i32, i32) {
    %c0_i32 = arith.constant 0 : i32
    %c0_i32_0 = arith.constant 0 : i32
    %c0_i32_1 = arith.constant 0 : i32
    return %c0_i32, %c0_i32_0 : i32, i32
  }
  func.func @transform_28(%arg0: i32) -> (i32, i32, i32) {
    %c0_i32 = arith.constant 0 : i32
    %c0_i32_0 = arith.constant 0 : i32
    %c0_i32_1 = arith.constant 0 : i32
    return %arg0, %c0_i32, %c0_i32_0 : i32, i32, i32
  }
}

</mosaic_0001>

<llo_original>
// kernel: tpu_custom_call.1
$region0: #{tpu_custom_call.1}
  #allocation0 [shape = 'u32[]', space=smem, size = 0x4, offset = 0x4, fixed_abs, tag = 'smem constant byte address 0x4 - core index']
  #allocation1 [shape = 'u32[144,128]{1,0:T(1,128)}', space=vmem, size = 0x12000, scoped, tag = 'internal scratch']
  %s0 = inlined_call_operand.hbm [shape: f32[2,8,32], index: 0, kind: input, shape index: {}]
  %s1 = inlined_call_operand.vmem [shape: f32[2,16,32], index: 1, kind: input, shape index: {}]
  %s2 = inlined_call_operand.hbm [shape: f32[2,8,32], index: 2, kind: input, shape index: {}]
  %s3 = inlined_call_operand.vmem [shape: f32[2,16,32], index: 3, kind: input, shape index: {}]
  %s4 = inlined_call_operand.vmem [shape: f32[32,64], index: 4, kind: input, shape index: {}]
  %s5 = inlined_call_operand.hbm [shape: f32[1,64], index: 5, kind: input, shape index: {}]
  %s6 = inlined_call_operand.hbm [shape: f32[32,32], index: 6, kind: input, shape index: {}]
  %s7 = inlined_call_operand.hbm [shape: f32[1,32], index: 7, kind: input, shape index: {}]
  %s8 = inlined_call_operand.hbm [shape: f32[32,32], index: 8, kind: input, shape index: {}]
  %s9 = inlined_call_operand.hbm [shape: f32[1,32], index: 9, kind: input, shape index: {}]
  %s10 = inlined_call_operand.vmem [shape: f32[32,32], index: 10, kind: input, shape index: {}]
  %s11 = inlined_call_operand.hbm [shape: f32[1,32], index: 11, kind: input, shape index: {}]
  %s12 = inlined_call_operand.hbm [shape: f32[32,32], index: 12, kind: input, shape index: {}]
  %s13 = inlined_call_operand.hbm [shape: f32[1,32], index: 13, kind: input, shape index: {}]
  %s14 = inlined_call_operand.hbm [shape: f32[32,32], index: 14, kind: input, shape index: {}]
  %s15 = inlined_call_operand.hbm [shape: f32[1,32], index: 15, kind: input, shape index: {}]
  %s16 = inlined_call_operand.hbm [shape: f32[32,32], index: 16, kind: input, shape index: {}]
  %s17 = inlined_call_operand.hbm [shape: f32[1,32], index: 17, kind: input, shape index: {}]
  %s18 = inlined_call_operand.hbm [shape: f32[32,64], index: 18, kind: input, shape index: {}]
  %s19 = inlined_call_operand.vmem [shape: f32[1,64], index: 19, kind: input, shape index: {}]
  %s20 = inlined_call_operand.vmem [shape: f32[64,32], index: 20, kind: input, shape index: {}]
  %s21 = inlined_call_operand.vmem [shape: f32[1,32], index: 21, kind: input, shape index: {}]
  %s22 = inlined_call_operand.vmem [shape: f32[1,32], index: 22, kind: input, shape index: {}]
  %s23 = inlined_call_operand.vmem [shape: f32[1,32], index: 23, kind: input, shape index: {}]
  %s24 = inlined_call_operand.vmem [shape: f32[1,32], index: 24, kind: input, shape index: {}]
  %s25 = inlined_call_operand.vmem [shape: f32[1,32], index: 25, kind: input, shape index: {}]
  %s26 = inlined_call_operand.vmem [shape: f32[1,32], index: 26, kind: input, shape index: {}]
  %s27 = inlined_call_operand.vmem [shape: f32[1,32], index: 27, kind: input, shape index: {}]
  %s28 = inlined_call_operand.hbm [shape: f32[2,8,32], index: 28, kind: output, shape index: {}]
  %s29 = sld [smem:[#allocation0]]
  $region205: #{tpu_custom_call.1} parent=0
    _
  %s31 = ssub.s32 1, %s29
  %s32 = scalar_select 0, %s31, %s29
  $region1: #{tpu_custom_call.1} parent=0
    #allocation2 [shape = 'u8[8192]{0}', space=vmem, size = 0x2000, scoped, tag = 'input window, operand 0']
    #allocation3 [shape = 's32[2]{0}', space=sflag, size = 0x8, scoped, tag = 'scoped memory for tpu_custom_call.1']
    #allocation4 [shape = 's32[2]{0}', space=sflag, size = 0x8, scoped, tag = 'scoped memory for tpu_custom_call.1']
    #allocation5 [shape = 'u8[8192]{0}', space=vmem, size = 0x2000, scoped, tag = 'input window, operand 2']
    #allocation6 [shape = 's32[2]{0}', space=sflag, size = 0x8, scoped, tag = 'scoped memory for tpu_custom_call.1']
    #allocation7 [shape = 'u8[512]{0}', space=vmem, size = 0x400, scoped, tag = 'input window, operand 5, single buffered']
    #allocation8 [shape = 'u8[16384]{0}', space=vmem, size = 0x4000, scoped, tag = 'input window, operand 6, single buffered']
    #allocation9 [shape = 's32[1]{0}', space=sflag, size = 0x4, scoped, tag = 'scoped memory for tpu_custom_call.1']
    #allocation10 [shape = 'u8[512]{0}', space=vmem, size = 0x400, scoped, tag = 'input window, operand 7, single buffered']
    #allocation11 [shape = 'u8[16384]{0}', space=vmem, size = 0x4000, scoped, tag = 'input window, operand 8, single buffered']
    #allocation12 [shape = 's32[1]{0}', space=sflag, size = 0x4, scoped, tag = 'scoped memory for tpu_custom_call.1']
    #allocation13 [shape = 'u8[512]{0}', space=vmem, size = 0x400, scoped, tag = 'input window, operand 9, single buffered']
    #allocation14 [shape = 'u8[512]{0}', space=vmem, size = 0x400, scoped, tag = 'input window, operand 11, single buffered']
    #allocation15 [shape = 's32[1]{0}', space=sflag, size = 0x4, scoped, tag = 'scoped memory for tpu_custom_call.1']
    #allocation16 [shape = 'u8[16384]{0}', space=vmem, size = 0x4000, scoped, tag = 'input window, operand 12, single buffered']
    #allocation17 [shape = 'u8[512]{0}', space=vmem, size = 0x400, scoped, tag = 'input window, operand 13, single buffered']
    #allocation18 [shape = 's32[1]{0}', space=sflag, size = 0x4, scoped, tag = 'scoped memory for tpu_custom_call.1']
    #allocation19 [shape = 'u8[16384]{0}', space=vmem, size = 0x4000, scoped, tag = 'input window, operand 14, single buffered']
    #allocation20 [shape = 'u8[512]{0}', space=vmem, size = 0x400, scoped, tag = 'input window, operand 15, single buffered']
    #allocation21 [shape = 's32[1]{0}', space=sflag, size = 0x4, scoped, tag = 'scoped memory for tpu_custom_call.1']
    #allocation22 [shape = 'u8[16384]{0}', space=vmem, size = 0x4000, scoped, tag = 'input window, operand 16, single buffered']
    #allocation23 [shape = 'u8[512]{0}', space=vmem, size = 0x400, scoped, tag = 'input window, operand 17, single buffered']
    #allocation24 [shape = 's32[1]{0}', space=sflag, size = 0x4, scoped, tag = 'scoped memory for tpu_custom_call.1']
    #allocation25 [shape = 'u8[16384]{0}', space=vmem, size = 0x4000, scoped, tag = 'input window, operand 18, single buffered']
    #allocation26 [shape = 'u8[8192]{0}', space=vmem, size = 0x2000, scoped, tag = 'output window, operand 0']
    %33 = vsyncpa [#allocation3], 0
    %s34 = scalar_lea.sflag [#allocation3], 1
    %35 = vsyncpa %s34, 0
    %36 = vsyncpa [#allocation6], 0
    %s37 = scalar_lea.sflag [#allocation6], 1
    %38 = vsyncpa %s37, 0
    %39 = vsyncpa [#allocation9], 0
    %40 = vsyncpa [#allocation12], 0
    %41 = vsyncpa [#allocation15], 0
    %42 = vsyncpa [#allocation18], 0
    %43 = vsyncpa [#allocation21], 0
    %44 = vsyncpa [#allocation24], 0
    %45 = vsyncpa [#allocation4], 0
    %s46 = scalar_lea.sflag [#allocation4], 1
    %47 = vsyncpa %s46, 0
    loop: start=0, step=1, limit=4
    $region2: #{tpu_custom_call.1} parent=1 // loop_pre_header
      _
    $region3: #{tpu_custom_call.1} parent=1 // loop_header
      %s49 = sphi 0, %s53
      %p50 = scmp.ge.s32.totalorder %s49, 4
      %s59 = sphi 0, %s61
      %s62 = sphi 0, %s59
      %s63 = sphi 0, %s62
      %s79 = sphi 0, %s63
      %s85 = sphi 0, %s87
      %s88 = sphi 0, %s85
      %s89 = sphi 0, %s88
      %s105 = sphi 0, %s89
      %s111 = sphi 0, %s113
      %s114 = sphi 0, %s111
      %s115 = sphi 0, %s114
      %s131 = sphi 0, %s115
      %s137 = sphi 0, %s139
      %s140 = sphi 0, %s137
      %s141 = sphi 0, %s140
      %s157 = sphi 0, %s141
      %s161 = sphi 0, %s161
      %s163 = sphi 0, %s161
      %s164 = sphi 0, %s163
      %s178 = sphi 0, %s164
      %s182 = sphi 0, %s182
      %s184 = sphi 0, %s182
      %s185 = sphi 0, %s184
      %s199 = sphi 0, %s185
      %s203 = sphi 0, %s203
      %s205 = sphi 0, %s203
      %s206 = sphi 0, %s205
      %s220 = sphi 0, %s206
      %s224 = sphi 0, %s224
      %s226 = sphi 0, %s224
      %s227 = sphi 0, %s226
      %s241 = sphi 0, %s227
      %s245 = sphi 0, %s245
      %s247 = sphi 0, %s245
      %s248 = sphi 0, %s247
      %s262 = sphi 0, %s248
      %s266 = sphi 0, %s266
      %s268 = sphi 0, %s266
      %s269 = sphi 0, %s268
      %s283 = sphi 0, %s269
      %s287 = sphi 0, %s287
      %s289 = sphi 0, %s287
      %s290 = sphi 0, %s289
      %s304 = sphi 0, %s290
      %s308 = sphi 0, %s308
      %s310 = sphi 0, %s308
      %s311 = sphi 0, %s310
      %s325 = sphi 0, %s311
      %s329 = sphi 0, %s329
      %s331 = sphi 0, %s329
      %s332 = sphi 0, %s331
      %s346 = sphi 0, %s332
      %s350 = sphi 0, %s350
      %s352 = sphi 0, %s350
      %s353 = sphi 0, %s352
      %s367 = sphi 0, %s353
      %s371 = sphi 0, %s371
      %s373 = sphi 0, %s371
      %s374 = sphi 0, %s373
      %s388 = sphi 0, %s374
      %s392 = sphi 0, %s392
      %s394 = sphi 0, %s392
      %s395 = sphi 0, %s394
      %s409 = sphi 0, %s395
      %s413 = sphi 0, %s413
      %s415 = sphi 0, %s413
      %s416 = sphi 0, %s415
      %s430 = sphi 0, %s416
      %s434 = sphi 0, %s434
      %s436 = sphi 0, %s434
      %s437 = sphi 0, %s436
      %s451 = sphi 0, %s437
      %s455 = sphi 0, %s455
      %s457 = sphi 0, %s455
      %s458 = sphi 0, %s457
      %s472 = sphi 0, %s458
      %s476 = sphi 0, %s476
      %s478 = sphi 0, %s476
      %s479 = sphi 0, %s478
      %s493 = sphi 0, %s479
      %s497 = sphi 0, %s497
      %s499 = sphi 0, %s497
      %s500 = sphi 0, %s499
      %s514 = sphi 0, %s500
      %s518 = sphi 0, %s518
      %s520 = sphi 0, %s518
      %s521 = sphi 0, %s520
      %s535 = sphi 0, %s521
      %s539 = sphi 0, %s539
      %s541 = sphi 0, %s539
      %s542 = sphi 0, %s541
      %s556 = sphi 0, %s542
      %s560 = sphi 0, %s560
      %s562 = sphi 0, %s560
      %s563 = sphi 0, %s562
      %s577 = sphi 0, %s563
      %s581 = sphi 0, %s581
      %s583 = sphi 0, %s581
      %s584 = sphi 0, %s583
      %s598 = sphi 0, %s584
      %s602 = sphi 0, %s602
      %s604 = sphi 0, %s602
      %s605 = sphi 0, %s604
      %s619 = sphi 0, %s605
      %s623 = sphi 0, %s623
      %s625 = sphi 0, %s623
      %s626 = sphi 0, %s625
      %s640 = sphi 0, %s626
      %s644 = sphi 0, %s644
      %s646 = sphi 0, %s644
      %s647 = sphi 0, %s646
      %s661 = sphi 0, %s647
      %s667 = sphi 0, %s669
      %s670 = sphi 0, %s667
      %s671 = sphi 0, %s670
      %s687 = sphi 0, %s671
    $region4: #{tpu_custom_call.1} parent=1 // loop_header_branch
      %52 = sbr.rel (%p50) target = $region8
    $region5: #{tpu_custom_call.1} parent=1 // loop_body
      %s54 = ssub.s32 %s49, 1
      %s55 = ssub.s32 %s49, 2
      %s56 = sadd.s32 %s49, 1
      %s57 = ssub.s32 %s49, %s56
      %p58 = scmp.eq.s32.totalorder %s57, 0
      %s60 = sadd.s32 %s59, 1
      %s61 = scalar_select %p58, %s59, %s60
      %p64 = pneg %p58
      %p65 = scmp.eq.s32.totalorder %s49, 1
      %p66 = por %p64, %p65
      %p67 = scmp.ne.s32.totalorder %s59, %s62
      %p68 = scmp.eq.s32.totalorder %s49, 0
      %p69 = por %p67, %p68
      %p70 = scmp.ne.s32.totalorder %s59, %s62
      %p71 = scmp.eq.s32.totalorder %s54, 1
      %p72 = por %p70, %p71
      %p73 = scmp.ne.s32.totalorder %s62, %s63
      %p74 = scmp.eq.s32.totalorder %s54, 0
      %p75 = por %p73, %p74
      %p76 = scmp.ne.s32.totalorder %s62, %s63
      %p77 = scmp.eq.s32.totalorder %s55, 1
      %p78 = por %p76, %p77
      %p80 = scmp.ne.s32.totalorder %s63, %s79
      %p81 = scmp.eq.s32.totalorder %s55, 0
      %p82 = por %p80, %p81
      %s83 = ssub.s32 %s49, %s56
      %p84 = scmp.eq.s32.totalorder %s83, 0
      %s86 = sadd.s32 %s85, 1
      %s87 = scalar_select %p84, %s85, %s86
      %p90 = pneg %p84
      %p91 = scmp.eq.s32.totalorder %s49, 1
      %p92 = por %p90, %p91
      %p93 = scmp.ne.s32.totalorder %s85, %s88
      %p94 = scmp.eq.s32.totalorder %s49, 0
      %p95 = por %p93, %p94
      %p96 = scmp.ne.s32.totalorder %s85, %s88
      %p97 = scmp.eq.s32.totalorder %s54, 1
      %p98 = por %p96, %p97
      %p99 = scmp.ne.s32.totalorder %s88, %s89
      %p100 = scmp.eq.s32.totalorder %s54, 0
      %p101 = por %p99, %p100
      %p102 = scmp.ne.s32.totalorder %s88, %s89
      %p103 = scmp.eq.s32.totalorder %s55, 1
      %p104 = por %p102, %p103
      %p106 = scmp.ne.s32.totalorder %s89, %s105
      %p107 = scmp.eq.s32.totalorder %s55, 0
      %p108 = por %p106, %p107
      %s109 = ssub.s32 %s49, %s56
      %p110 = scmp.eq.s32.totalorder %s109, 0
      %s112 = sadd.s32 %s111, 1
      %s113 = scalar_select %p110, %s111, %s112
      %p116 = pneg %p110
      %p117 = scmp.eq.s32.totalorder %s49, 1
      %p118 = por %p116, %p117
      %p119 = scmp.ne.s32.totalorder %s111, %s114
      %p120 = scmp.eq.s32.totalorder %s49, 0
      %p121 = por %p119, %p120
      %p122 = scmp.ne.s32.totalorder %s111, %s114
      %p123 = scmp.eq.s32.totalorder %s54, 1
      %p124 = por %p122, %p123
      %p125 = scmp.ne.s32.totalorder %s114, %s115
      %p126 = scmp.eq.s32.totalorder %s54, 0
      %p127 = por %p125, %p126
      %p128 = scmp.ne.s32.totalorder %s114, %s115
      %p129 = scmp.eq.s32.totalorder %s55, 1
      %p130 = por %p128, %p129
      %p132 = scmp.ne.s32.totalorder %s115, %s131
      %p133 = scmp.eq.s32.totalorder %s55, 0
      %p134 = por %p132, %p133
      %s135 = ssub.s32 %s49, %s56
      %p136 = scmp.eq.s32.totalorder %s135, 0
      %s138 = sadd.s32 %s137, 1
      %s139 = scalar_select %p136, %s137, %s138
      %p142 = pneg %p136
      %p143 = scmp.eq.s32.totalorder %s49, 1
      %p144 = por %p142, %p143
      %p145 = scmp.ne.s32.totalorder %s137, %s140
      %p146 = scmp.eq.s32.totalorder %s49, 0
      %p147 = por %p145, %p146
      %p148 = scmp.ne.s32.totalorder %s137, %s140
      %p149 = scmp.eq.s32.totalorder %s54, 1
      %p150 = por %p148, %p149
      %p151 = scmp.ne.s32.totalorder %s140, %s141
      %p152 = scmp.eq.s32.totalorder %s54, 0
      %p153 = por %p151, %p152
      %p154 = scmp.ne.s32.totalorder %s140, %s141
      %p155 = scmp.eq.s32.totalorder %s55, 1
      %p156 = por %p154, %p155
      %p158 = scmp.ne.s32.totalorder %s141, %s157
      %p159 = scmp.eq.s32.totalorder %s55, 0
      %p160 = por %p158, %p159
      %s162 = sadd.s32 %s161, 1
      %p165 = scmp.eq.s32.totalorder %s49, 1
      %p166 = scmp.ne.s32.totalorder %s161, %s163
      %p167 = scmp.eq.s32.totalorder %s49, 0
      %p168 = por %p166, %p167
      %p169 = scmp.ne.s32.totalorder %s161, %s163
      %p170 = scmp.eq.s32.totalorder %s54, 1
      %p171 = por %p169, %p170
      %p172 = scmp.ne.s32.totalorder %s163, %s164
      %p173 = scmp.eq.s32.totalorder %s54, 0
      %p174 = por %p172, %p173
      %p175 = scmp.ne.s32.totalorder %s163, %s164
      %p176 = scmp.eq.s32.totalorder %s55, 1
      %p177 = por %p175, %p176
      %p179 = scmp.ne.s32.totalorder %s164, %s178
      %p180 = scmp.eq.s32.totalorder %s55, 0
      %p181 = por %p179, %p180
      %s183 = sadd.s32 %s182, 1
      %p186 = scmp.eq.s32.totalorder %s49, 1
      %p187 = scmp.ne.s32.totalorder %s182, %s184
      %p188 = scmp.eq.s32.totalorder %s49, 0
      %p189 = por %p187, %p188
      %p190 = scmp.ne.s32.totalorder %s182, %s184
      %p191 = scmp.eq.s32.totalorder %s54, 1
      %p192 = por %p190, %p191
      %p193 = scmp.ne.s32.totalorder %s184, %s185
      %p194 = scmp.eq.s32.totalorder %s54, 0
      %p195 = por %p193, %p194
      %p196 = scmp.ne.s32.totalorder %s184, %s185
      %p197 = scmp.eq.s32.totalorder %s55, 1
      %p198 = por %p196, %p197
      %p200 = scmp.ne.s32.totalorder %s185, %s199
      %p201 = scmp.eq.s32.totalorder %s55, 0
      %p202 = por %p200, %p201
      %s204 = sadd.s32 %s203, 1
      %p207 = scmp.eq.s32.totalorder %s49, 1
      %p208 = scmp.ne.s32.totalorder %s203, %s205
      %p209 = scmp.eq.s32.totalorder %s49, 0
      %p210 = por %p208, %p209
      %p211 = scmp.ne.s32.totalorder %s203, %s205
      %p212 = scmp.eq.s32.totalorder %s54, 1
      %p213 = por %p211, %p212
      %p214 = scmp.ne.s32.totalorder %s205, %s206
      %p215 = scmp.eq.s32.totalorder %s54, 0
      %p216 = por %p214, %p215
      %p217 = scmp.ne.s32.totalorder %s205, %s206
      %p218 = scmp.eq.s32.totalorder %s55, 1
      %p219 = por %p217, %p218
      %p221 = scmp.ne.s32.totalorder %s206, %s220
      %p222 = scmp.eq.s32.totalorder %s55, 0
      %p223 = por %p221, %p222
      %s225 = sadd.s32 %s224, 1
      %p228 = scmp.eq.s32.totalorder %s49, 1
      %p229 = scmp.ne.s32.totalorder %s224, %s226
      %p230 = scmp.eq.s32.totalorder %s49, 0
      %p231 = por %p229, %p230
      %p232 = scmp.ne.s32.totalorder %s224, %s226
      %p233 = scmp.eq.s32.totalorder %s54, 1
      %p234 = por %p232, %p233
      %p235 = scmp.ne.s32.totalorder %s226, %s227
      %p236 = scmp.eq.s32.totalorder %s54, 0
      %p237 = por %p235, %p236
      %p238 = scmp.ne.s32.totalorder %s226, %s227
      %p239 = scmp.eq.s32.totalorder %s55, 1
      %p240 = por %p238, %p239
      %p242 = scmp.ne.s32.totalorder %s227, %s241
      %p243 = scmp.eq.s32.totalorder %s55, 0
      %p244 = por %p242, %p243
      %s246 = sadd.s32 %s245, 1
      %p249 = scmp.eq.s32.totalorder %s49, 1
      %p250 = scmp.ne.s32.totalorder %s245, %s247
      %p251 = scmp.eq.s32.totalorder %s49, 0
      %p252 = por %p250, %p251
      %p253 = scmp.ne.s32.totalorder %s245, %s247
      %p254 = scmp.eq.s32.totalorder %s54, 1
      %p255 = por %p253, %p254
      %p256 = scmp.ne.s32.totalorder %s247, %s248
      %p257 = scmp.eq.s32.totalorder %s54, 0
      %p258 = por %p256, %p257
      %p259 = scmp.ne.s32.totalorder %s247, %s248
      %p260 = scmp.eq.s32.totalorder %s55, 1
      %p261 = por %p259, %p260
      %p263 = scmp.ne.s32.totalorder %s248, %s262
      %p264 = scmp.eq.s32.totalorder %s55, 0
      %p265 = por %p263, %p264
      %s267 = sadd.s32 %s266, 1
      %p270 = scmp.eq.s32.totalorder %s49, 1
      %p271 = scmp.ne.s32.totalorder %s266, %s268
      %p272 = scmp.eq.s32.totalorder %s49, 0
      %p273 = por %p271, %p272
      %p274 = scmp.ne.s32.totalorder %s266, %s268
      %p275 = scmp.eq.s32.totalorder %s54, 1
      %p276 = por %p274, %p275
      %p277 = scmp.ne.s32.totalorder %s268, %s269
      %p278 = scmp.eq.s32.totalorder %s54, 0
      %p279 = por %p277, %p278
      %p280 = scmp.ne.s32.totalorder %s268, %s269
      %p281 = scmp.eq.s32.totalorder %s55, 1
      %p282 = por %p280, %p281
      %p284 = scmp.ne.s32.totalorder %s269, %s283
      %p285 = scmp.eq.s32.totalorder %s55, 0
      %p286 = por %p284, %p285
      %s288 = sadd.s32 %s287, 1
      %p291 = scmp.eq.s32.totalorder %s49, 1
      %p292 = scmp.ne.s32.totalorder %s287, %s289
      %p293 = scmp.eq.s32.totalorder %s49, 0
      %p294 = por %p292, %p293
      %p295 = scmp.ne.s32.totalorder %s287, %s289
      %p296 = scmp.eq.s32.totalorder %s54, 1
      %p297 = por %p295, %p296
      %p298 = scmp.ne.s32.totalorder %s289, %s290
      %p299 = scmp.eq.s32.totalorder %s54, 0
      %p300 = por %p298, %p299
      %p301 = scmp.ne.s32.totalorder %s289, %s290
      %p302 = scmp.eq.s32.totalorder %s55, 1
      %p303 = por %p301, %p302
      %p305 = scmp.ne.s32.totalorder %s290, %s304
      %p306 = scmp.eq.s32.totalorder %s55, 0
      %p307 = por %p305, %p306
      %s309 = sadd.s32 %s308, 1
      %p312 = scmp.eq.s32.totalorder %s49, 1
      %p313 = scmp.ne.s32.totalorder %s308, %s310
      %p314 = scmp.eq.s32.totalorder %s49, 0
      %p315 = por %p313, %p314
      %p316 = scmp.ne.s32.totalorder %s308, %s310
      %p317 = scmp.eq.s32.totalorder %s54, 1
      %p318 = por %p316, %p317
      %p319 = scmp.ne.s32.totalorder %s310, %s311
      %p320 = scmp.eq.s32.totalorder %s54, 0
      %p321 = por %p319, %p320
      %p322 = scmp.ne.s32.totalorder %s310, %s311
      %p323 = scmp.eq.s32.totalorder %s55, 1
      %p324 = por %p322, %p323
      %p326 = scmp.ne.s32.totalorder %s311, %s325
      %p327 = scmp.eq.s32.totalorder %s55, 0
      %p328 = por %p326, %p327
      %s330 = sadd.s32 %s329, 1
      %p333 = scmp.eq.s32.totalorder %s49, 1
      %p334 = scmp.ne.s32.totalorder %s329, %s331
      %p335 = scmp.eq.s32.totalorder %s49, 0
      %p336 = por %p334, %p335
      %p337 = scmp.ne.s32.totalorder %s329, %s331
      %p338 = scmp.eq.s32.totalorder %s54, 1
      %p339 = por %p337, %p338
      %p340 = scmp.ne.s32.totalorder %s331, %s332
      %p341 = scmp.eq.s32.totalorder %s54, 0
      %p342 = por %p340, %p341
      %p343 = scmp.ne.s32.totalorder %s331, %s332
      %p344 = scmp.eq.s32.totalorder %s55, 1
      %p345 = por %p343, %p344
      %p347 = scmp.ne.s32.totalorder %s332, %s346
      %p348 = scmp.eq.s32.totalorder %s55, 0
      %p349 = por %p347, %p348
      %s351 = sadd.s32 %s350, 1
      %p354 = scmp.eq.s32.totalorder %s49, 1
      %p355 = scmp.ne.s32.totalorder %s350, %s352
      %p356 = scmp.eq.s32.totalorder %s49, 0
      %p357 = por %p355, %p356
      %p358 = scmp.ne.s32.totalorder %s350, %s352
      %p359 = scmp.eq.s32.totalorder %s54, 1
      %p360 = por %p358, %p359
      %p361 = scmp.ne.s32.totalorder %s352, %s353
      %p362 = scmp.eq.s32.totalorder %s54, 0
      %p363 = por %p361, %p362
      %p364 = scmp.ne.s32.totalorder %s352, %s353
      %p365 = scmp.eq.s32.totalorder %s55, 1
      %p366 = por %p364, %p365
      %p368 = scmp.ne.s32.totalorder %s353, %s367
      %p369 = scmp.eq.s32.totalorder %s55, 0
      %p370 = por %p368, %p369
      %s372 = sadd.s32 %s371, 1
      %p375 = scmp.eq.s32.totalorder %s49, 1
      %p376 = scmp.ne.s32.totalorder %s371, %s373
      %p377 = scmp.eq.s32.totalorder %s49, 0
      %p378 = por %p376, %p377
      %p379 = scmp.ne.s32.totalorder %s371, %s373
      %p380 = scmp.eq.s32.totalorder %s54, 1
      %p381 = por %p379, %p380
      %p382 = scmp.ne.s32.totalorder %s373, %s374
      %p383 = scmp.eq.s32.totalorder %s54, 0
      %p384 = por %p382, %p383
      %p385 = scmp.ne.s32.totalorder %s373, %s374
      %p386 = scmp.eq.s32.totalorder %s55, 1
      %p387 = por %p385, %p386
      %p389 = scmp.ne.s32.totalorder %s374, %s388
      %p390 = scmp.eq.s32.totalorder %s55, 0
      %p391 = por %p389, %p390
      %s393 = sadd.s32 %s392, 1
      %p396 = scmp.eq.s32.totalorder %s49, 1
      %p397 = scmp.ne.s32.totalorder %s392, %s394
      %p398 = scmp.eq.s32.totalorder %s49, 0
      %p399 = por %p397, %p398
      %p400 = scmp.ne.s32.totalorder %s392, %s394
      %p401 = scmp.eq.s32.totalorder %s54, 1
      %p402 = por %p400, %p401
      %p403 = scmp.ne.s32.totalorder %s394, %s395
      %p404 = scmp.eq.s32.totalorder %s54, 0
      %p405 = por %p403, %p404
      %p406 = scmp.ne.s32.totalorder %s394, %s395
      %p407 = scmp.eq.s32.totalorder %s55, 1
      %p408 = por %p406, %p407
      %p410 = scmp.ne.s32.totalorder %s395, %s409
      %p411 = scmp.eq.s32.totalorder %s55, 0
      %p412 = por %p410, %p411
      %s414 = sadd.s32 %s413, 1
      %p417 = scmp.eq.s32.totalorder %s49, 1
      %p418 = scmp.ne.s32.totalorder %s413, %s415
      %p419 = scmp.eq.s32.totalorder %s49, 0
      %p420 = por %p418, %p419
      %p421 = scmp.ne.s32.totalorder %s413, %s415
      %p422 = scmp.eq.s32.totalorder %s54, 1
      %p423 = por %p421, %p422
      %p424 = scmp.ne.s32.totalorder %s415, %s416
      %p425 = scmp.eq.s32.totalorder %s54, 0
      %p426 = por %p424, %p425
      %p427 = scmp.ne.s32.totalorder %s415, %s416
      %p428 = scmp.eq.s32.totalorder %s55, 1
      %p429 = por %p427, %p428
      %p431 = scmp.ne.s32.totalorder %s416, %s430
      %p432 = scmp.eq.s32.totalorder %s55, 0
      %p433 = por %p431, %p432
      %s435 = sadd.s32 %s434, 1
      %p438 = scmp.eq.s32.totalorder %s49, 1
      %p439 = scmp.ne.s32.totalorder %s434, %s436
      %p440 = scmp.eq.s32.totalorder %s49, 0
      %p441 = por %p439, %p440
      %p442 = scmp.ne.s32.totalorder %s434, %s436
      %p443 = scmp.eq.s32.totalorder %s54, 1
      %p444 = por %p442, %p443
      %p445 = scmp.ne.s32.totalorder %s436, %s437
      %p446 = scmp.eq.s32.totalorder %s54, 0
      %p447 = por %p445, %p446
      %p448 = scmp.ne.s32.totalorder %s436, %s437
      %p449 = scmp.eq.s32.totalorder %s55, 1
      %p450 = por %p448, %p449
      %p452 = scmp.ne.s32.totalorder %s437, %s451
      %p453 = scmp.eq.s32.totalorder %s55, 0
      %p454 = por %p452, %p453
      %s456 = sadd.s32 %s455, 1
      %p459 = scmp.eq.s32.totalorder %s49, 1
      %p460 = scmp.ne.s32.totalorder %s455, %s457
      %p461 = scmp.eq.s32.totalorder %s49, 0
      %p462 = por %p460, %p461
      %p463 = scmp.ne.s32.totalorder %s455, %s457
      %p464 = scmp.eq.s32.totalorder %s54, 1
      %p465 = por %p463, %p464
      %p466 = scmp.ne.s32.totalorder %s457, %s458
      %p467 = scmp.eq.s32.totalorder %s54, 0
      %p468 = por %p466, %p467
      %p469 = scmp.ne.s32.totalorder %s457, %s458
      %p470 = scmp.eq.s32.totalorder %s55, 1
      %p471 = por %p469, %p470
      %p473 = scmp.ne.s32.totalorder %s458, %s472
      %p474 = scmp.eq.s32.totalorder %s55, 0
      %p475 = por %p473, %p474
      %s477 = sadd.s32 %s476, 1
      %p480 = scmp.eq.s32.totalorder %s49, 1
      %p481 = scmp.ne.s32.totalorder %s476, %s478
      %p482 = scmp.eq.s32.totalorder %s49, 0
      %p483 = por %p481, %p482
      %p484 = scmp.ne.s32.totalorder %s476, %s478
      %p485 = scmp.eq.s32.totalorder %s54, 1
      %p486 = por %p484, %p485
      %p487 = scmp.ne.s32.totalorder %s478, %s479
      %p488 = scmp.eq.s32.totalorder %s54, 0
      %p489 = por %p487, %p488
      %p490 = scmp.ne.s32.totalorder %s478, %s479
      %p491 = scmp.eq.s32.totalorder %s55, 1
      %p492 = por %p490, %p491
      %p494 = scmp.ne.s32.totalorder %s479, %s493
      %p495 = scmp.eq.s32.totalorder %s55, 0
      %p496 = por %p494, %p495
      %s498 = sadd.s32 %s497, 1
      %p501 = scmp.eq.s32.totalorder %s49, 1
      %p502 = scmp.ne.s32.totalorder %s497, %s499
      %p503 = scmp.eq.s32.totalorder %s49, 0
      %p504 = por %p502, %p503
      %p505 = scmp.ne.s32.totalorder %s497, %s499
      %p506 = scmp.eq.s32.totalorder %s54, 1
      %p507 = por %p505, %p506
      %p508 = scmp.ne.s32.totalorder %s499, %s500
      %p509 = scmp.eq.s32.totalorder %s54, 0
      %p510 = por %p508, %p509
      %p511 = scmp.ne.s32.totalorder %s499, %s500
      %p512 = scmp.eq.s32.totalorder %s55, 1
      %p513 = por %p511, %p512
      %p515 = scmp.ne.s32.totalorder %s500, %s514
      %p516 = scmp.eq.s32.totalorder %s55, 0
      %p517 = por %p515, %p516
      %s519 = sadd.s32 %s518, 1
      %p522 = scmp.eq.s32.totalorder %s49, 1
      %p523 = scmp.ne.s32.totalorder %s518, %s520
      %p524 = scmp.eq.s32.totalorder %s49, 0
      %p525 = por %p523, %p524
      %p526 = scmp.ne.s32.totalorder %s518, %s520
      %p527 = scmp.eq.s32.totalorder %s54, 1
      %p528 = por %p526, %p527
      %p529 = scmp.ne.s32.totalorder %s520, %s521
      %p530 = scmp.eq.s32.totalorder %s54, 0
      %p531 = por %p529, %p530
      %p532 = scmp.ne.s32.totalorder %s520, %s521
      %p533 = scmp.eq.s32.totalorder %s55, 1
      %p534 = por %p532, %p533
      %p536 = scmp.ne.s32.totalorder %s521, %s535
      %p537 = scmp.eq.s32.totalorder %s55, 0
      %p538 = por %p536, %p537
      %s540 = sadd.s32 %s539, 1
      %p543 = scmp.eq.s32.totalorder %s49, 1
      %p544 = scmp.ne.s32.totalorder %s539, %s541
      %p545 = scmp.eq.s32.totalorder %s49, 0
      %p546 = por %p544, %p545
      %p547 = scmp.ne.s32.totalorder %s539, %s541
      %p548 = scmp.eq.s32.totalorder %s54, 1
      %p549 = por %p547, %p548
      %p550 = scmp.ne.s32.totalorder %s541, %s542
      %p551 = scmp.eq.s32.totalorder %s54, 0
      %p552 = por %p550, %p551
      %p553 = scmp.ne.s32.totalorder %s541, %s542
      %p554 = scmp.eq.s32.totalorder %s55, 1
      %p555 = por %p553, %p554
      %p557 = scmp.ne.s32.totalorder %s542, %s556
      %p558 = scmp.eq.s32.totalorder %s55, 0
      %p559 = por %p557, %p558
      %s561 = sadd.s32 %s560, 1
      %p564 = scmp.eq.s32.totalorder %s49, 1
      %p565 = scmp.ne.s32.totalorder %s560, %s562
      %p566 = scmp.eq.s32.totalorder %s49, 0
      %p567 = por %p565, %p566
      %p568 = scmp.ne.s32.totalorder %s560, %s562
      %p569 = scmp.eq.s32.totalorder %s54, 1
      %p570 = por %p568, %p569
      %p571 = scmp.ne.s32.totalorder %s562, %s563
      %p572 = scmp.eq.s32.totalorder %s54, 0
      %p573 = por %p571, %p572
      %p574 = scmp.ne.s32.totalorder %s562, %s563
      %p575 = scmp.eq.s32.totalorder %s55, 1
      %p576 = por %p574, %p575
      %p578 = scmp.ne.s32.totalorder %s563, %s577
      %p579 = scmp.eq.s32.totalorder %s55, 0
      %p580 = por %p578, %p579
      %s582 = sadd.s32 %s581, 1
      %p585 = scmp.eq.s32.totalorder %s49, 1
      %p586 = scmp.ne.s32.totalorder %s581, %s583
      %p587 = scmp.eq.s32.totalorder %s49, 0
      %p588 = por %p586, %p587
      %p589 = scmp.ne.s32.totalorder %s581, %s583
      %p590 = scmp.eq.s32.totalorder %s54, 1
      %p591 = por %p589, %p590
      %p592 = scmp.ne.s32.totalorder %s583, %s584
      %p593 = scmp.eq.s32.totalorder %s54, 0
      %p594 = por %p592, %p593
      %p595 = scmp.ne.s32.totalorder %s583, %s584
      %p596 = scmp.eq.s32.totalorder %s55, 1
      %p597 = por %p595, %p596
      %p599 = scmp.ne.s32.totalorder %s584, %s598
      %p600 = scmp.eq.s32.totalorder %s55, 0
      %p601 = por %p599, %p600
      %s603 = sadd.s32 %s602, 1
      %p606 = scmp.eq.s32.totalorder %s49, 1
      %p607 = scmp.ne.s32.totalorder %s602, %s604
      %p608 = scmp.eq.s32.totalorder %s49, 0
      %p609 = por %p607, %p608
      %p610 = scmp.ne.s32.totalorder %s602, %s604
      %p611 = scmp.eq.s32.totalorder %s54, 1
      %p612 = por %p610, %p611
      %p613 = scmp.ne.s32.totalorder %s604, %s605
      %p614 = scmp.eq.s32.totalorder %s54, 0
      %p615 = por %p613, %p614
      %p616 = scmp.ne.s32.totalorder %s604, %s605
      %p617 = scmp.eq.s32.totalorder %s55, 1
      %p618 = por %p616, %p617
      %p620 = scmp.ne.s32.totalorder %s605, %s619
      %p621 = scmp.eq.s32.totalorder %s55, 0
      %p622 = por %p620, %p621
      %s624 = sadd.s32 %s623, 1
      %p627 = scmp.eq.s32.totalorder %s49, 1
      %p628 = scmp.ne.s32.totalorder %s623, %s625
      %p629 = scmp.eq.s32.totalorder %s49, 0
      %p630 = por %p628, %p629
      %p631 = scmp.ne.s32.totalorder %s623, %s625
      %p632 = scmp.eq.s32.totalorder %s54, 1
      %p633 = por %p631, %p632
      %p634 = scmp.ne.s32.totalorder %s625, %s626
      %p635 = scmp.eq.s32.totalorder %s54, 0
      %p636 = por %p634, %p635
      %p637 = scmp.ne.s32.totalorder %s625, %s626
      %p638 = scmp.eq.s32.totalorder %s55, 1
      %p639 = por %p637, %p638
      %p641 = scmp.ne.s32.totalorder %s626, %s640
      %p642 = scmp.eq.s32.totalorder %s55, 0
      %p643 = por %p641, %p642
      %s645 = sadd.s32 %s644, 1
      %p648 = scmp.eq.s32.totalorder %s49, 1
      %p649 = scmp.ne.s32.totalorder %s644, %s646
      %p650 = scmp.eq.s32.totalorder %s49, 0
      %p651 = por %p649, %p650
      %p652 = scmp.ne.s32.totalorder %s644, %s646
      %p653 = scmp.eq.s32.totalorder %s54, 1
      %p654 = por %p652, %p653
      %p655 = scmp.ne.s32.totalorder %s646, %s647
      %p656 = scmp.eq.s32.totalorder %s54, 0
      %p657 = por %p655, %p656
      %p658 = scmp.ne.s32.totalorder %s646, %s647
      %p659 = scmp.eq.s32.totalorder %s55, 1
      %p660 = por %p658, %p659
      %p662 = scmp.ne.s32.totalorder %s647, %s661
      %p663 = scmp.eq.s32.totalorder %s55, 0
      %p664 = por %p662, %p663
      %s665 = ssub.s32 %s49, %s56
      %p666 = scmp.eq.s32.totalorder %s665, 0
      %s668 = sadd.s32 %s667, 1
      %s669 = scalar_select %p666, %s667, %s668
      %p672 = pneg %p666
      %p673 = scmp.eq.s32.totalorder %s49, 1
      %p674 = por %p672, %p673
      %p675 = scmp.ne.s32.totalorder %s667, %s670
      %p676 = scmp.eq.s32.totalorder %s49, 0
      %p677 = por %p675, %p676
      %p678 = scmp.ne.s32.totalorder %s667, %s670
      %p679 = scmp.eq.s32.totalorder %s54, 1
      %p680 = por %p678, %p679
      %p681 = scmp.ne.s32.totalorder %s670, %s671
      %p682 = scmp.eq.s32.totalorder %s54, 0
      %p683 = por %p681, %p682
      %p684 = scmp.ne.s32.totalorder %s670, %s671
      %p685 = scmp.eq.s32.totalorder %s55, 1
      %p686 = por %p684, %p685
      %p688 = scmp.ne.s32.totalorder %s671, %s687
      %p689 = scmp.eq.s32.totalorder %s55, 0
      %p690 = por %p688, %p689
      %p691 = scmp.le.s32.totalorder 1, %s49
      %p692 = scmp.lt.s32.totalorder %s49, 3
      %p693 = pnand %p691, %p692
      %p694 = pneg %p693
      // Predicated region
      $region9: #{tpu_custom_call.1} parent=5 // pred_check
        _
      $region10: #{tpu_custom_call.1} parent=5 // pred_check_branch
        %696 = sbr.rel (%p693) target = $region12
      $region11: #{tpu_custom_call.1} parent=5 // pred_region
        %s697 = ssub.s32 %s49, 1
        // Predicated region
        $region13: #{tpu_custom_call.1} parent=11 // pred_check
          %p698 = pneg %p174
        $region14: #{tpu_custom_call.1} parent=11 // pred_check_branch
          %700 = sbr.rel (%p698) target = $region16
        $region15: #{tpu_custom_call.1} parent=11 // pred_region
          _
        $region16: #{tpu_custom_call.1} parent=11 // pred_fallthru
          _
        // Predicated region
        $region17: #{tpu_custom_call.1} parent=11 // pred_check
          %p701 = pneg %p195
        $region18: #{tpu_custom_call.1} parent=11 // pred_check_branch
          %703 = sbr.rel (%p701) target = $region20
        $region19: #{tpu_custom_call.1} parent=11 // pred_region
          %s705 = ssub.s32 16, 16
          %706 = vsyncadd [#allocation6], %s705
          %s708 = sshll.u32 [#allocation7], 4
          %s709 = int_to_ptr.vmem [resolvable:$true] %s708
          %711 = dma.hbm_to_vmem [thread:$0]  %s5, 16, %s709, [#allocation6]
        $region20: #{tpu_custom_call.1} parent=11 // pred_fallthru
          _
        // Predicated region
        $region21: #{tpu_custom_call.1} parent=11 // pred_check
          %p712 = pneg %p216
        $region22: #{tpu_custom_call.1} parent=11 // pred_check_branch
          %714 = sbr.rel (%p712) target = $region24
        $region23: #{tpu_custom_call.1} parent=11 // pred_region
          %s716 = ssub.s32 512, 512
          %717 = vsyncadd [#allocation9], %s716
          %s718 = sshll.u32 [#allocation8], 4
          %s719 = int_to_ptr.vmem [resolvable:$true] %s718
          %724 = dma.hbm_to_vmem [thread:$0]  %s6, 512, %s719, [#allocation9], 128, 128, 8
        $region24: #{tpu_custom_call.1} parent=11 // pred_fallthru
          _
        // Predicated region
        $region25: #{tpu_custom_call.1} parent=11 // pred_check
          %p725 = pneg %p237
        $region26: #{tpu_custom_call.1} parent=11 // pred_check_branch
          %727 = sbr.rel (%p725) target = $region28
        $region27: #{tpu_custom_call.1} parent=11 // pred_region
          %s729 = ssub.s32 16, 16
          %730 = vsyncadd [#allocation9], %s729
          %s732 = sshll.u32 [#allocation10], 4
          %s733 = int_to_ptr.vmem [resolvable:$true] %s732
          %735 = dma.hbm_to_vmem [thread:$0]  %s7, 16, %s733, [#allocation9]
        $region28: #{tpu_custom_call.1} parent=11 // pred_fallthru
          _
        // Predicated region
        $region29: #{tpu_custom_call.1} parent=11 // pred_check
          %p736 = pneg %p258
        $region30: #{tpu_custom_call.1} parent=11 // pred_check_branch
          %738 = sbr.rel (%p736) target = $region32
        $region31: #{tpu_custom_call.1} parent=11 // pred_region
          %s740 = ssub.s32 512, 512
          %741 = vsyncadd [#allocation12], %s740
          %s742 = sshll.u32 [#allocation11], 4
          %s743 = int_to_ptr.vmem [resolvable:$true] %s742
          %748 = dma.hbm_to_vmem [thread:$0]  %s8, 512, %s743, [#allocation12], 128, 128, 8
        $region32: #{tpu_custom_call.1} parent=11 // pred_fallthru
          _
        // Predicated region
        $region33: #{tpu_custom_call.1} parent=11 // pred_check
          %p749 = pneg %p279
        $region34: #{tpu_custom_call.1} parent=11 // pred_check_branch
          %751 = sbr.rel (%p749) target = $region36
        $region35: #{tpu_custom_call.1} parent=11 // pred_region
          %s753 = ssub.s32 16, 16
          %754 = vsyncadd [#allocation12], %s753
          %s756 = sshll.u32 [#allocation13], 4
          %s757 = int_to_ptr.vmem [resolvable:$true] %s756
          %759 = dma.hbm_to_vmem [thread:$0]  %s9, 16, %s757, [#allocation12]
        $region36: #{tpu_custom_call.1} parent=11 // pred_fallthru
          _
        // Predicated region
        $region37: #{tpu_custom_call.1} parent=11 // pred_check
          %p760 = pneg %p300
        $region38: #{tpu_custom_call.1} parent=11 // pred_check_branch
          %762 = sbr.rel (%p760) target = $region40
        $region39: #{tpu_custom_call.1} parent=11 // pred_region
          _
        $region40: #{tpu_custom_call.1} parent=11 // pred_fallthru
          _
        // Predicated region
        $region41: #{tpu_custom_call.1} parent=11 // pred_check
          %p763 = pneg %p321
        $region42: #{tpu_custom_call.1} parent=11 // pred_check_branch
          %765 = sbr.rel (%p763) target = $region44
        $region43: #{tpu_custom_call.1} parent=11 // pred_region
          %s767 = ssub.s32 16, 16
          %768 = vsyncadd [#allocation15], %s767
          %s770 = sshll.u32 [#allocation14], 4
          %s771 = int_to_ptr.vmem [resolvable:$true] %s770
          %773 = dma.hbm_to_vmem [thread:$0]  %s11, 16, %s771, [#allocation15]
        $region44: #{tpu_custom_call.1} parent=11 // pred_fallthru
          _
        // Predicated region
        $region45: #{tpu_custom_call.1} parent=11 // pred_check
          %p774 = pneg %p342
        $region46: #{tpu_custom_call.1} parent=11 // pred_check_branch
          %776 = sbr.rel (%p774) target = $region48
        $region47: #{tpu_custom_call.1} parent=11 // pred_region
          %s778 = ssub.s32 512, 512
          %779 = vsyncadd [#allocation15], %s778
          %s780 = sshll.u32 [#allocation16], 4
          %s781 = int_to_ptr.vmem [resolvable:$true] %s780
          %786 = dma.hbm_to_vmem [thread:$0]  %s12, 512, %s781, [#allocation15], 128, 128, 8
        $region48: #{tpu_custom_call.1} parent=11 // pred_fallthru
          _
        // Predicated region
        $region49: #{tpu_custom_call.1} parent=11 // pred_check
          %p787 = pneg %p363
        $region50: #{tpu_custom_call.1} parent=11 // pred_check_branch
          %789 = sbr.rel (%p787) target = $region52
        $region51: #{tpu_custom_call.1} parent=11 // pred_region
          %s791 = ssub.s32 16, 16
          %792 = vsyncadd [#allocation18], %s791
          %s794 = sshll.u32 [#allocation17], 4
          %s795 = int_to_ptr.vmem [resolvable:$true] %s794
          %797 = dma.hbm_to_vmem [thread:$0]  %s13, 16, %s795, [#allocation18]
        $region52: #{tpu_custom_call.1} parent=11 // pred_fallthru
          _
        // Predicated region
        $region53: #{tpu_custom_call.1} parent=11 // pred_check
          %p798 = pneg %p384
        $region54: #{tpu_custom_call.1} parent=11 // pred_check_branch
          %800 = sbr.rel (%p798) target = $region56
        $region55: #{tpu_custom_call.1} parent=11 // pred_region
          %s802 = ssub.s32 512, 512
          %803 = vsyncadd [#allocation18], %s802
          %s804 = sshll.u32 [#allocation19], 4
          %s805 = int_to_ptr.vmem [resolvable:$true] %s804
          %810 = dma.hbm_to_vmem [thread:$0]  %s14, 512, %s805, [#allocation18], 128, 128, 8
        $region56: #{tpu_custom_call.1} parent=11 // pred_fallthru
          _
        // Predicated region
        $region57: #{tpu_custom_call.1} parent=11 // pred_check
          %p811 = pneg %p405
        $region58: #{tpu_custom_call.1} parent=11 // pred_check_branch
          %813 = sbr.rel (%p811) target = $region60
        $region59: #{tpu_custom_call.1} parent=11 // pred_region
          %s815 = ssub.s32 16, 16
          %816 = vsyncadd [#allocation21], %s815
          %s818 = sshll.u32 [#allocation20], 4
          %s819 = int_to_ptr.vmem [resolvable:$true] %s818
          %821 = dma.hbm_to_vmem [thread:$0]  %s15, 16, %s819, [#allocation21]
        $region60: #{tpu_custom_call.1} parent=11 // pred_fallthru
          _
        // Predicated region
        $region61: #{tpu_custom_call.1} parent=11 // pred_check
          %p822 = pneg %p426
        $region62: #{tpu_custom_call.1} parent=11 // pred_check_branch
          %824 = sbr.rel (%p822) target = $region64
        $region63: #{tpu_custom_call.1} parent=11 // pred_region
          %s826 = ssub.s32 512, 512
          %827 = vsyncadd [#allocation21], %s826
          %s828 = sshll.u32 [#allocation22], 4
          %s829 = int_to_ptr.vmem [resolvable:$true] %s828
          %834 = dma.hbm_to_vmem [thread:$0]  %s16, 512, %s829, [#allocation21], 128, 128, 8
        $region64: #{tpu_custom_call.1} parent=11 // pred_fallthru
          _
        // Predicated region
        $region65: #{tpu_custom_call.1} parent=11 // pred_check
          %p835 = pneg %p447
        $region66: #{tpu_custom_call.1} parent=11 // pred_check_branch
          %837 = sbr.rel (%p835) target = $region68
        $region67: #{tpu_custom_call.1} parent=11 // pred_region
          %s839 = ssub.s32 16, 16
          %840 = vsyncadd [#allocation24], %s839
          %s842 = sshll.u32 [#allocation23], 4
          %s843 = int_to_ptr.vmem [resolvable:$true] %s842
          %845 = dma.hbm_to_vmem [thread:$0]  %s17, 16, %s843, [#allocation24]
        $region68: #{tpu_custom_call.1} parent=11 // pred_fallthru
          _
        // Predicated region
        $region69: #{tpu_custom_call.1} parent=11 // pred_check
          %p846 = pneg %p468
        $region70: #{tpu_custom_call.1} parent=11 // pred_check_branch
          %848 = sbr.rel (%p846) target = $region72
        $region71: #{tpu_custom_call.1} parent=11 // pred_region
          %s850 = ssub.s32 512, 512
          %851 = vsyncadd [#allocation24], %s850
          %s852 = sshll.u32 [#allocation25], 4
          %s853 = int_to_ptr.vmem [resolvable:$true] %s852
          %858 = dma.hbm_to_vmem [thread:$0]  %s18, 512, %s853, [#allocation24], 128, 128, 8
        $region72: #{tpu_custom_call.1} parent=11 // pred_fallthru
          _
        // Predicated region
        $region73: #{tpu_custom_call.1} parent=11 // pred_check
          %p859 = pneg %p489
        $region74: #{tpu_custom_call.1} parent=11 // pred_check_branch
          %861 = sbr.rel (%p859) target = $region76
        $region75: #{tpu_custom_call.1} parent=11 // pred_region
          _
        $region76: #{tpu_custom_call.1} parent=11 // pred_fallthru
          _
        // Predicated region
        $region77: #{tpu_custom_call.1} parent=11 // pred_check
          %p862 = pneg %p510
        $region78: #{tpu_custom_call.1} parent=11 // pred_check_branch
          %864 = sbr.rel (%p862) target = $region80
        $region79: #{tpu_custom_call.1} parent=11 // pred_region
          _
        $region80: #{tpu_custom_call.1} parent=11 // pred_fallthru
          _
        // Predicated region
        $region81: #{tpu_custom_call.1} parent=11 // pred_check
          %p865 = pneg %p531
        $region82: #{tpu_custom_call.1} parent=11 // pred_check_branch
          %867 = sbr.rel (%p865) target = $region84
        $region83: #{tpu_custom_call.1} parent=11 // pred_region
          _
        $region84: #{tpu_custom_call.1} parent=11 // pred_fallthru
          _
        // Predicated region
        $region85: #{tpu_custom_call.1} parent=11 // pred_check
          %p868 = pneg %p552
        $region86: #{tpu_custom_call.1} parent=11 // pred_check_branch
          %870 = sbr.rel (%p868) target = $region88
        $region87: #{tpu_custom_call.1} parent=11 // pred_region
          _
        $region88: #{tpu_custom_call.1} parent=11 // pred_fallthru
          _
        // Predicated region
        $region89: #{tpu_custom_call.1} parent=11 // pred_check
          %p871 = pneg %p573
        $region90: #{tpu_custom_call.1} parent=11 // pred_check_branch
          %873 = sbr.rel (%p871) target = $region92
        $region91: #{tpu_custom_call.1} parent=11 // pred_region
          _
        $region92: #{tpu_custom_call.1} parent=11 // pred_fallthru
          _
        // Predicated region
        $region93: #{tpu_custom_call.1} parent=11 // pred_check
          %p874 = pneg %p594
        $region94: #{tpu_custom_call.1} parent=11 // pred_check_branch
          %876 = sbr.rel (%p874) target = $region96
        $region95: #{tpu_custom_call.1} parent=11 // pred_region
          _
        $region96: #{tpu_custom_call.1} parent=11 // pred_fallthru
          _
        // Predicated region
        $region97: #{tpu_custom_call.1} parent=11 // pred_check
          %p877 = pneg %p615
        $region98: #{tpu_custom_call.1} parent=11 // pred_check_branch
          %879 = sbr.rel (%p877) target = $region100
        $region99: #{tpu_custom_call.1} parent=11 // pred_region
          _
        $region100: #{tpu_custom_call.1} parent=11 // pred_fallthru
          _
        // Predicated region
        $region101: #{tpu_custom_call.1} parent=11 // pred_check
          %p880 = pneg %p636
        $region102: #{tpu_custom_call.1} parent=11 // pred_check_branch
          %882 = sbr.rel (%p880) target = $region104
        $region103: #{tpu_custom_call.1} parent=11 // pred_region
          _
        $region104: #{tpu_custom_call.1} parent=11 // pred_fallthru
          _
        // Predicated region
        $region105: #{tpu_custom_call.1} parent=11 // pred_check
          %p883 = pneg %p657
        $region106: #{tpu_custom_call.1} parent=11 // pred_check_branch
          %885 = sbr.rel (%p883) target = $region108
        $region107: #{tpu_custom_call.1} parent=11 // pred_region
          _
        $region108: #{tpu_custom_call.1} parent=11 // pred_fallthru
          _
      $region12: #{tpu_custom_call.1} parent=5 // pred_fallthru
        _
      %p886 = scmp.lt.s32.totalorder %s49, 2
      // Predicated region
      $region109: #{tpu_custom_call.1} parent=5 // pred_check
        %p887 = pneg %p886
      $region110: #{tpu_custom_call.1} parent=5 // pred_check_branch
        %889 = sbr.rel (%p887) target = $region112
      $region111: #{tpu_custom_call.1} parent=5 // pred_region
        // Predicated region
        $region113: #{tpu_custom_call.1} parent=111 // pred_check
          %p890 = pneg %p69
        $region114: #{tpu_custom_call.1} parent=111 // pred_check_branch
          %892 = sbr.rel (%p890) target = $region116
        $region115: #{tpu_custom_call.1} parent=111 // pred_region
          %s893 = sand.u32 %s59, 1
          %s894 = scalar_lea.sflag [#allocation3], %s893
          %s895 = sand.u32 %s59, 1
          %s896 = smul.addr %s895, 8
          %s897 = scalar_lea.vmem [#allocation2], %s896
          %s899 = ssub.s32 128, 128
          %900 = vsyncadd %s894, %s899
          %s901 = smul.addr %s49, 128
          %s902 = scalar_lea.hbm %s0, %s901
          %s904 = sshll.u32 %s897, 4
          %s905 = int_to_ptr.vmem [resolvable:$true] %s904
          %907 = dma.hbm_to_vmem [thread:$0]  %s902, 128, %s905, %s894
        $region116: #{tpu_custom_call.1} parent=111 // pred_fallthru
          _
        // Predicated region
        $region117: #{tpu_custom_call.1} parent=111 // pred_check
          %p908 = pneg %p95
        $region118: #{tpu_custom_call.1} parent=111 // pred_check_branch
          %910 = sbr.rel (%p908) target = $region120
        $region119: #{tpu_custom_call.1} parent=111 // pred_region
          %p911 = scmp.lt.s32.totalorder %s49, 1
          %s912 = scalar_select %p911, %s49, 1
          %s913 = smul.addr %s912, 2
          %s914 = smul.addr %s913, 8
          %s915 = scalar_lea.vmem %s1, %s914
        $region120: #{tpu_custom_call.1} parent=111 // pred_fallthru
          _
        // Predicated region
        $region121: #{tpu_custom_call.1} parent=111 // pred_check
          %p916 = pneg %p121
        $region122: #{tpu_custom_call.1} parent=111 // pred_check_branch
          %918 = sbr.rel (%p916) target = $region124
        $region123: #{tpu_custom_call.1} parent=111 // pred_region
          %s919 = sand.u32 %s49, 1
          %s920 = scalar_lea.sflag [#allocation6], %s919
          %s921 = sand.u32 %s111, 1
          %s922 = smul.addr %s921, 8
          %s923 = scalar_lea.vmem [#allocation5], %s922
          %s925 = ssub.s32 128, 128
          %926 = vsyncadd %s920, %s925
          %s927 = smul.addr %s49, 128
          %s928 = scalar_lea.hbm %s2, %s927
          %s930 = sshll.u32 %s923, 4
          %s931 = int_to_ptr.vmem [resolvable:$true] %s930
          %933 = dma.hbm_to_vmem [thread:$0]  %s928, 128, %s931, %s920
        $region124: #{tpu_custom_call.1} parent=111 // pred_fallthru
          _
        // Predicated region
        $region125: #{tpu_custom_call.1} parent=111 // pred_check
          %p934 = pneg %p147
        $region126: #{tpu_custom_call.1} parent=111 // pred_check_branch
          %936 = sbr.rel (%p934) target = $region128
        $region127: #{tpu_custom_call.1} parent=111 // pred_region
          %p937 = scmp.lt.s32.totalorder %s49, 1
          %s938 = scalar_select %p937, %s49, 1
          %s939 = smul.addr %s938, 2
          %s940 = smul.addr %s939, 8
          %s941 = scalar_lea.vmem %s3, %s940
        $region128: #{tpu_custom_call.1} parent=111 // pred_fallthru
          _
      $region112: #{tpu_custom_call.1} parent=5 // pred_fallthru
        _
      %p942 = scmp.le.s32.totalorder 1, %s49
      %p943 = scmp.lt.s32.totalorder %s49, 3
      %p944 = pnand %p942, %p943
      %p945 = pneg %p944
      // Predicated region
      $region129: #{tpu_custom_call.1} parent=5 // pred_check
        _
      $region130: #{tpu_custom_call.1} parent=5 // pred_check_branch
        %947 = sbr.rel (%p944) target = $region132
      $region131: #{tpu_custom_call.1} parent=5 // pred_region
        %s948 = ssub.s32 %s49, 1
        %s949 = sand.u32 %s62, 1
        %s950 = scalar_lea.sflag [#allocation3], %s949
        %s951 = sand.u32 %s62, 1
        %s952 = smul.addr %s951, 8
        %s953 = scalar_lea.vmem [#allocation2], %s952
        // Predicated region
        $region133: #{tpu_custom_call.1} parent=131 // pred_check
          %p954 = pneg %p75
        $region134: #{tpu_custom_call.1} parent=131 // pred_check_branch
          %956 = sbr.rel (%p954) target = $region136
        $region135: #{tpu_custom_call.1} parent=131 // pred_region
          %957 = dma.done %s950, 128
        $region136: #{tpu_custom_call.1} parent=131 // pred_fallthru
          _
        %s958 = sand.u32 %s54, 1
        %s959 = scalar_lea.sflag [#allocation6], %s958
        %s960 = sand.u32 %s114, 1
        %s961 = smul.addr %s960, 8
        %s962 = scalar_lea.vmem [#allocation5], %s961
        // Predicated region
        $region137: #{tpu_custom_call.1} parent=131 // pred_check
          %p963 = pneg %p127
        $region138: #{tpu_custom_call.1} parent=131 // pred_check_branch
          %965 = sbr.rel (%p963) target = $region140
        $region139: #{tpu_custom_call.1} parent=131 // pred_region
          %966 = dma.done %s959, 128
        $region140: #{tpu_custom_call.1} parent=131 // pred_fallthru
          _
        // Predicated region
        $region141: #{tpu_custom_call.1} parent=131 // pred_check
          %p967 = pneg %p195
        $region142: #{tpu_custom_call.1} parent=131 // pred_check_branch
          %969 = sbr.rel (%p967) target = $region144
        $region143: #{tpu_custom_call.1} parent=131 // pred_region
          %970 = dma.done [#allocation6], 16
        $region144: #{tpu_custom_call.1} parent=131 // pred_fallthru
          _
        // Predicated region
        $region145: #{tpu_custom_call.1} parent=131 // pred_check
          %p971 = pneg %p216
        $region146: #{tpu_custom_call.1} parent=131 // pred_check_branch
          %973 = sbr.rel (%p971) target = $region148
        $region147: #{tpu_custom_call.1} parent=131 // pred_region
          %974 = dma.done [#allocation9], 512
        $region148: #{tpu_custom_call.1} parent=131 // pred_fallthru
          _
        // Predicated region
        $region149: #{tpu_custom_call.1} parent=131 // pred_check
          %p975 = pneg %p237
        $region150: #{tpu_custom_call.1} parent=131 // pred_check_branch
          %977 = sbr.rel (%p975) target = $region152
        $region151: #{tpu_custom_call.1} parent=131 // pred_region
          %978 = dma.done [#allocation9], 16
        $region152: #{tpu_custom_call.1} parent=131 // pred_fallthru
          _
        // Predicated region
        $region153: #{tpu_custom_call.1} parent=131 // pred_check
          %p979 = pneg %p258
        $region154: #{tpu_custom_call.1} parent=131 // pred_check_branch
          %981 = sbr.rel (%p979) target = $region156
        $region155: #{tpu_custom_call.1} parent=131 // pred_region
          %982 = dma.done [#allocation12], 512
        $region156: #{tpu_custom_call.1} parent=131 // pred_fallthru
          _
        // Predicated region
        $region157: #{tpu_custom_call.1} parent=131 // pred_check
          %p983 = pneg %p279
        $region158: #{tpu_custom_call.1} parent=131 // pred_check_branch
          %985 = sbr.rel (%p983) target = $region160
        $region159: #{tpu_custom_call.1} parent=131 // pred_region
          %986 = dma.done [#allocation12], 16
        $region160: #{tpu_custom_call.1} parent=131 // pred_fallthru
          _
        // Predicated region
        $region161: #{tpu_custom_call.1} parent=131 // pred_check
          %p987 = pneg %p321
        $region162: #{tpu_custom_call.1} parent=131 // pred_check_branch
          %989 = sbr.rel (%p987) target = $region164
        $region163: #{tpu_custom_call.1} parent=131 // pred_region
          %990 = dma.done [#allocation15], 16
        $region164: #{tpu_custom_call.1} parent=131 // pred_fallthru
          _
        // Predicated region
        $region165: #{tpu_custom_call.1} parent=131 // pred_check
          %p991 = pneg %p342
        $region166: #{tpu_custom_call.1} parent=131 // pred_check_branch
          %993 = sbr.rel (%p991) target = $region168
        $region167: #{tpu_custom_call.1} parent=131 // pred_region
          %994 = dma.done [#allocation15], 512
        $region168: #{tpu_custom_call.1} parent=131 // pred_fallthru
          _
        // Predicated region
        $region169: #{tpu_custom_call.1} parent=131 // pred_check
          %p995 = pneg %p363
        $region170: #{tpu_custom_call.1} parent=131 // pred_check_branch
          %997 = sbr.rel (%p995) target = $region172
        $region171: #{tpu_custom_call.1} parent=131 // pred_region
          %998 = dma.done [#allocation18], 16
        $region172: #{tpu_custom_call.1} parent=131 // pred_fallthru
          _
        // Predicated region
        $region173: #{tpu_custom_call.1} parent=131 // pred_check
          %p999 = pneg %p384
        $region174: #{tpu_custom_call.1} parent=131 // pred_check_branch
          %1001 = sbr.rel (%p999) target = $region176
        $region175: #{tpu_custom_call.1} parent=131 // pred_region
          %1002 = dma.done [#allocation18], 512
        $region176: #{tpu_custom_call.1} parent=131 // pred_fallthru
          _
        // Predicated region
        $region177: #{tpu_custom_call.1} parent=131 // pred_check
          %p1003 = pneg %p405
        $region178: #{tpu_custom_call.1} parent=131 // pred_check_branch
          %1005 = sbr.rel (%p1003) target = $region180
        $region179: #{tpu_custom_call.1} parent=131 // pred_region
          %1006 = dma.done [#allocation21], 16
        $region180: #{tpu_custom_call.1} parent=131 // pred_fallthru
          _
        // Predicated region
        $region181: #{tpu_custom_call.1} parent=131 // pred_check
          %p1007 = pneg %p426
        $region182: #{tpu_custom_call.1} parent=131 // pred_check_branch
          %1009 = sbr.rel (%p1007) target = $region184
        $region183: #{tpu_custom_call.1} parent=131 // pred_region
          %1010 = dma.done [#allocation21], 512
        $region184: #{tpu_custom_call.1} parent=131 // pred_fallthru
          _
        // Predicated region
        $region185: #{tpu_custom_call.1} parent=131 // pred_check
          %p1011 = pneg %p447
        $region186: #{tpu_custom_call.1} parent=131 // pred_check_branch
          %1013 = sbr.rel (%p1011) target = $region188
        $region187: #{tpu_custom_call.1} parent=131 // pred_region
          %1014 = dma.done [#allocation24], 16
        $region188: #{tpu_custom_call.1} parent=131 // pred_fallthru
          _
        // Predicated region
        $region189: #{tpu_custom_call.1} parent=131 // pred_check
          %p1015 = pneg %p468
        $region190: #{tpu_custom_call.1} parent=131 // pred_check_branch
          %1017 = sbr.rel (%p1015) target = $region192
        $region191: #{tpu_custom_call.1} parent=131 // pred_region
          %1018 = dma.done [#allocation24], 512
        $region192: #{tpu_custom_call.1} parent=131 // pred_fallthru
          _
        %s1019 = sand.u32 %s62, 1
        %s1020 = scalar_lea.sflag [#allocation3], %s1019
        %s1021 = sand.u32 %s62, 1
        %s1022 = smul.addr %s1021, 8
        %s1023 = scalar_lea.vmem [#allocation2], %s1022
        %p1024 = pneg %p75
        %p1025 = pneg %p72
        %p1026 = scmp.lt.s32.totalorder %s54, 1
        %s1027 = scalar_select %p1026, %s54, 1
        %s1028 = smul.addr %s1027, 2
        %s1029 = smul.addr %s1028, 8
        %s1030 = scalar_lea.vmem %s1, %s1029
        %p1031 = pneg %p101
        %p1032 = pneg %p98
        %s1033 = sand.u32 %s54, 1
        %s1034 = scalar_lea.sflag [#allocation6], %s1033
        %s1035 = sand.u32 %s114, 1
        %s1036 = smul.addr %s1035, 8
        %s1037 = scalar_lea.vmem [#allocation5], %s1036
        %p1038 = pneg %p127
        %p1039 = pneg %p124
        %p1040 = scmp.lt.s32.totalorder %s54, 1
        %s1041 = scalar_select %p1040, %s54, 1
        %s1042 = smul.addr %s1041, 2
        %s1043 = smul.addr %s1042, 8
        %s1044 = scalar_lea.vmem %s3, %s1043
        %p1045 = pneg %p153
        %p1046 = pneg %p150
        %p1047 = pneg %p174
        %p1048 = pneg %p171
        %p1049 = pneg %p195
        %p1050 = pneg %p192
        %p1051 = pneg %p216
        %p1052 = pneg %p213
        %p1053 = pneg %p237
        %p1054 = pneg %p234
        %p1055 = pneg %p258
        %p1056 = pneg %p255
        %p1057 = pneg %p279
        %p1058 = pneg %p276
        %p1059 = pneg %p300
        %p1060 = pneg %p297
        %p1061 = pneg %p321
        %p1062 = pneg %p318
        %p1063 = pneg %p342
        %p1064 = pneg %p339
        %p1065 = pneg %p363
        %p1066 = pneg %p360
        %p1067 = pneg %p384
        %p1068 = pneg %p381
        %p1069 = pneg %p405
        %p1070 = pneg %p402
        %p1071 = pneg %p426
        %p1072 = pneg %p423
        %p1073 = pneg %p447
        %p1074 = pneg %p444
        %p1075 = pneg %p468
        %p1076 = pneg %p465
        %p1077 = pneg %p489
        %p1078 = pneg %p486
        %p1079 = pneg %p510
        %p1080 = pneg %p507
        %p1081 = pneg %p531
        %p1082 = pneg %p528
        %p1083 = pneg %p552
        %p1084 = pneg %p549
        %p1085 = pneg %p573
        %p1086 = pneg %p570
        %p1087 = pneg %p594
        %p1088 = pneg %p591
        %p1089 = pneg %p615
        %p1090 = pneg %p612
        %p1091 = pneg %p636
        %p1092 = pneg %p633
        %p1093 = pneg %p657
        %p1094 = pneg %p654
        %p1095 = pneg %p683
        %p1096 = pneg %p680
        %s1097 = sand.u32 %s670, 1
        %s1098 = scalar_lea.sflag [#allocation4], %s1097
        %s1099 = sand.u32 %s670, 1
        %s1100 = smul.addr %s1099, 8
        %s1101 = scalar_lea.vmem [#allocation26], %s1100
        %p1102 = scmp.lt.s32.totalorder %s54, 1
        %s1103 = scalar_select %p1102, %s54, 1
        %s1104 = smul.addr %s1103, 2
        %s1105 = smul.addr %s1104, 8
        %s1106 = scalar_lea.vmem %s1, %s1105
        %p1107 = scmp.lt.s32.totalorder %s54, 1
        %s1108 = scalar_select %p1107, %s54, 1
        %s1109 = smul.addr %s1108, 2
        %s1110 = smul.addr %s1109, 8
        %s1111 = scalar_lea.vmem %s3, %s1110
        %v1112 = vld [vmem:[%s953] sm:$0xff]
        %v1113 = vld [vmem:[%s962] sm:$0xff]
        %v1114 = vadd.f32 %v1112, %v1113
        %v1115 = vld [vmem:[%s4] sm:$0xff]
        %v1116 = vld [vmem:[%s4 + $0x8] sm:$0xff]
        %v1117 = vld [vmem:[%s4 + $0x10] sm:$0xff]
        %v1118 = vld [vmem:[%s4 + $0x18] sm:$0xff]
        %v1119 = vld [vmem:[#allocation7] sm:$0x1]
        %v1121 = vlaneseq
        %v1122 = vshrl.u32 %v1121, 7
        %v1123 = vsub.s32 0, %v1122
        %v1124 = vrot.slane %v1119, %v1123
        %vm1126 = vcmask 261120
        %v1128 = vsel %vm1126, %v1114, 0
        %1130 = vmatprep.subr.mxu0 0.0
        %1131 = vmatpush1.msra.mxu0 %v1115
        %1132 = vmatprep.subr.mxu0 0.0
        %1133 = vmatpush1.msra.mxu0 %v1116
        %1134 = vmatprep.subr.mxu0 0.0
        %1135 = vmatpush1.msra.mxu0 %v1117
        %1136 = vmatprep.subr.mxu0 0.0
        %1137 = vmatpush1.msra.mxu0 %v1118
        %1138 = vmatprep.subr.mxu0 0.0
        %1139 = vmatpush1.msra.mxu0 0.0
        %1140 = vmatprep.subr.mxu0 0.0
        %1141 = vmatpush1.msra.mxu0 0.0
        %1142 = vmatprep.subr.mxu0 0.0
        %1143 = vmatpush1.msra.mxu0 0.0
        %1144 = vmatprep.subr.mxu0 0.0
        %1145 = vmatpush1.msra.mxu0 0.0
        %1146 = vmatprep.subr.mxu0 0.0
        %1147 = vmatpush1.msra.mxu0 0.0
        %1148 = vmatprep.subr.mxu0 0.0
        %1149 = vmatpush1.msra.mxu0 0.0
        %1150 = vmatprep.subr.mxu0 0.0
        %1151 = vmatpush1.msra.mxu0 0.0
        %1152 = vmatprep.subr.mxu0 0.0
        %1153 = vmatpush1.msra.mxu0 0.0
        %1154 = vmatprep.subr.mxu0 0.0
        %1155 = vmatpush1.msra.mxu0 0.0
        %1156 = vmatprep.subr.mxu0 0.0
        %1157 = vmatpush1.msra.mxu0 0.0
        %1158 = vmatprep.subr.mxu0 0.0
        %1159 = vmatpush1.msra.mxu0 0.0
        %1160 = vmatprep.subr.mxu0 0.0
        %1161 = vmatpush1.msra.mxu0 0.0
        %1162 = vmatprep.subr.mxu0 0.0
        %1163 = vmatpush1.msra.mxu0 0.0
        %1164 = vmatprep.subr.mxu0 0.0
        %1165 = vmatpush1.msra.mxu0 0.0
        %1166 = vmatprep.subr.mxu0 0.0
        %1167 = vmatpush1.msra.mxu0 0.0
        %1168 = vmatprep.subr.mxu0 0.0
        %1169 = vmatpush1.msra.mxu0 0.0
        %1170 = vmatprep.subr.mxu0 0.0
        %1171 = vmatpush1.msra.mxu0 0.0
        %1172 = vmatprep.subr.mxu0 0.0
        %1173 = vmatpush1.msra.mxu0 0.0
        %1174 = vmatprep.subr.mxu0 0.0
        %1175 = vmatpush1.msra.mxu0 0.0
        %1176 = vmatprep.subr.mxu0 0.0
        %1177 = vmatpush1.msra.mxu0 0.0
        %1178 = vmatprep.subr.mxu0 0.0
        %1179 = vmatpush1.msra.mxu0 0.0
        %1180 = vmatprep.subr.mxu0 0.0
        %1181 = vmatpush1.msra.mxu0 0.0
        %1182 = vmatprep.subr.mxu0 0.0
        %1183 = vmatpush1.msra.mxu0 0.0
        %1184 = vmatprep.subr.mxu0 0.0
        %1185 = vmatpush1.msra.mxu0 0.0
        %1186 = vmatprep.subr.mxu0 0.0
        %1187 = vmatpush1.msra.mxu0 0.0
        %1188 = vmatprep.subr.mxu0 0.0
        %1189 = vmatpush1.msra.mxu0 0.0
        %1190 = vmatprep.subr.mxu0 0.0
        %1191 = vmatpush1.msra.mxu0 0.0
        %1192 = vmatprep.subr.mxu0 0.0
        %1193 = vmatpush1.msra.mxu0 0.0
        %1194 = vmatprep.mubr.f32.mxu0 0.0
        %1195 = vmatmul.mubr.f32.gmra.mrb[0].mxu0 %v1128
        %v1196 = vpop.f32.mrb[0].mxu0
        %v1197 = vadd.f32 %v1124, %v1196
        %v1198 = vpop.f32.mrb[0].mxu0
        %1199 = vdwg.mxu0
        %v1200 = vld [vmem:[#allocation8] sm:$0xff]
        %v1201 = vld [vmem:[#allocation8 + $0x8] sm:$0xff]
        %v1202 = vld [vmem:[#allocation8 + $0x10] sm:$0xff]
        %v1203 = vld [vmem:[#allocation8 + $0x18] sm:$0xff]
        %v1204 = vld [vmem:[#allocation10] sm:$0x1]
        %v1206 = vlaneseq
        %v1207 = vshrl.u32 %v1206, 7
        %v1208 = vsub.s32 0, %v1207
        %v1209 = vrot.slane %v1204, %v1208
        %v1212 = vsel %vm1126, %v1112, 0
        %1214 = vmatprep.subr.mxu0 0.0
        %1215 = vmatpush1.msra.mxu0 %v1200
        %1216 = vmatprep.subr.mxu0 0.0
        %1217 = vmatpush1.msra.mxu0 %v1201
        %1218 = vmatprep.subr.mxu0 0.0
        %1219 = vmatpush1.msra.mxu0 %v1202
        %1220 = vmatprep.subr.mxu0 0.0
        %1221 = vmatpush1.msra.mxu0 %v1203
        %1222 = vmatprep.subr.mxu0 0.0
        %1223 = vmatpush1.msra.mxu0 0.0
        %1224 = vmatprep.subr.mxu0 0.0
        %1225 = vmatpush1.msra.mxu0 0.0
        %1226 = vmatprep.subr.mxu0 0.0
        %1227 = vmatpush1.msra.mxu0 0.0
        %1228 = vmatprep.subr.mxu0 0.0
        %1229 = vmatpush1.msra.mxu0 0.0
        %1230 = vmatprep.subr.mxu0 0.0
        %1231 = vmatpush1.msra.mxu0 0.0
        %1232 = vmatprep.subr.mxu0 0.0
        %1233 = vmatpush1.msra.mxu0 0.0
        %1234 = vmatprep.subr.mxu0 0.0
        %1235 = vmatpush1.msra.mxu0 0.0
        %1236 = vmatprep.subr.mxu0 0.0
        %1237 = vmatpush1.msra.mxu0 0.0
        %1238 = vmatprep.subr.mxu0 0.0
        %1239 = vmatpush1.msra.mxu0 0.0
        %1240 = vmatprep.subr.mxu0 0.0
        %1241 = vmatpush1.msra.mxu0 0.0
        %1242 = vmatprep.subr.mxu0 0.0
        %1243 = vmatpush1.msra.mxu0 0.0
        %1244 = vmatprep.subr.mxu0 0.0
        %1245 = vmatpush1.msra.mxu0 0.0
        %1246 = vmatprep.subr.mxu0 0.0
        %1247 = vmatpush1.msra.mxu0 0.0
        %1248 = vmatprep.subr.mxu0 0.0
        %1249 = vmatpush1.msra.mxu0 0.0
        %1250 = vmatprep.subr.mxu0 0.0
        %1251 = vmatpush1.msra.mxu0 0.0
        %1252 = vmatprep.subr.mxu0 0.0
        %1253 = vmatpush1.msra.mxu0 0.0
        %1254 = vmatprep.subr.mxu0 0.0
        %1255 = vmatpush1.msra.mxu0 0.0
        %1256 = vmatprep.subr.mxu0 0.0
        %1257 = vmatpush1.msra.mxu0 0.0
        %1258 = vmatprep.subr.mxu0 0.0
        %1259 = vmatpush1.msra.mxu0 0.0
        %1260 = vmatprep.subr.mxu0 0.0
        %1261 = vmatpush1.msra.mxu0 0.0
        %1262 = vmatprep.subr.mxu0 0.0
        %1263 = vmatpush1.msra.mxu0 0.0
        %1264 = vmatprep.subr.mxu0 0.0
        %1265 = vmatpush1.msra.mxu0 0.0
        %1266 = vmatprep.subr.mxu0 0.0
        %1267 = vmatpush1.msra.mxu0 0.0
        %1268 = vmatprep.subr.mxu0 0.0
        %1269 = vmatpush1.msra.mxu0 0.0
        %1270 = vmatprep.subr.mxu0 0.0
        %1271 = vmatpush1.msra.mxu0 0.0
        %1272 = vmatprep.subr.mxu0 0.0
        %1273 = vmatpush1.msra.mxu0 0.0
        %1274 = vmatprep.subr.mxu0 0.0
        %1275 = vmatpush1.msra.mxu0 0.0
        %1276 = vmatprep.subr.mxu0 0.0
        %1277 = vmatpush1.msra.mxu0 0.0
        %1278 = vmatprep.mubr.f32.mxu0 0.0
        %1279 = vmatmul.mubr.f32.gmra.mrb[0].mxu0 %v1212
        %v1280 = vpop.f32.mrb[0].mxu0
        %v1281 = vadd.f32 %v1209, %v1280
        %v1282 = vpop.f32.mrb[0].mxu0
        %1283 = vdwg.mxu0
        %1285 = vrot.lane.b32.xlu0 %v1197, 96
        %v1286 = vpop.permute.xlu0 %1285
        %vm1287 = vcmask 64512
        %v1288 = vsel %vm1287, %v1197, 0
        %v1290 = vsel %vm1287, %v1286, 0
        %1292 = vmatprep.subr.mxu0 0.0
        %1293 = vmatpush1.xpose.msra.mxu0 %v1290
        %1294 = vmatprep.subr.mxu0 0.0
        %1295 = vmatpush1.xpose.msra.mxu0 0.0
        %1296 = vmatprep.subr.mxu0 0.0
        %1297 = vmatpush1.xpose.msra.mxu0 0.0
        %1298 = vmatprep.subr.mxu0 0.0
        %1299 = vmatpush1.xpose.msra.mxu0 0.0
        %1300 = vmatprep.subr.mxu0 0.0
        %1301 = vmatpush1.xpose.msra.mxu0 0.0
        %1302 = vmatprep.subr.mxu0 0.0
        %1303 = vmatpush1.xpose.msra.mxu0 0.0
        %1304 = vmatprep.subr.mxu0 0.0
        %1305 = vmatpush1.xpose.msra.mxu0 0.0
        %1306 = vmatprep.subr.mxu0 0.0
        %1307 = vmatpush1.xpose.msra.mxu0 0.0
        %1308 = vmatprep.subr.mxu0 0.0
        %1309 = vmatpush1.xpose.msra.mxu0 0.0
        %1310 = vmatprep.subr.mxu0 0.0
        %1311 = vmatpush1.xpose.msra.mxu0 0.0
        %1312 = vmatprep.subr.mxu0 0.0
        %1313 = vmatpush1.xpose.msra.mxu0 0.0
        %1314 = vmatprep.subr.mxu0 0.0
        %1315 = vmatpush1.xpose.msra.mxu0 0.0
        %1316 = vmatprep.subr.mxu0 0.0
        %1317 = vmatpush1.xpose.msra.mxu0 0.0
        %1318 = vmatprep.subr.mxu0 0.0
        %1319 = vmatpush1.xpose.msra.mxu0 0.0
        %1320 = vmatprep.subr.mxu0 0.0
        %1321 = vmatpush1.xpose.msra.mxu0 0.0
        %1322 = vmatprep.subr.mxu0 0.0
        %1323 = vmatpush1.xpose.msra.mxu0 0.0
        %1324 = vmatprep.subr.mxu0 0.0
        %1325 = vmatpush1.xpose.msra.mxu0 0.0
        %1326 = vmatprep.subr.mxu0 0.0
        %1327 = vmatpush1.xpose.msra.mxu0 0.0
        %1328 = vmatprep.subr.mxu0 0.0
        %1329 = vmatpush1.xpose.msra.mxu0 0.0
        %1330 = vmatprep.subr.mxu0 0.0
        %1331 = vmatpush1.xpose.msra.mxu0 0.0
        %1332 = vmatprep.subr.mxu0 0.0
        %1333 = vmatpush1.xpose.msra.mxu0 0.0
        %1334 = vmatprep.subr.mxu0 0.0
        %1335 = vmatpush1.xpose.msra.mxu0 0.0
        %1336 = vmatprep.subr.mxu0 0.0
        %1337 = vmatpush1.xpose.msra.mxu0 0.0
        %1338 = vmatprep.subr.mxu0 0.0
        %1339 = vmatpush1.xpose.msra.mxu0 0.0
        %1340 = vmatprep.subr.mxu0 0.0
        %1341 = vmatpush1.xpose.msra.mxu0 0.0
        %1342 = vmatprep.subr.mxu0 0.0
        %1343 = vmatpush1.xpose.msra.mxu0 0.0
        %1344 = vmatprep.subr.mxu0 0.0
        %1345 = vmatpush1.xpose.msra.mxu0 0.0
        %1346 = vmatprep.subr.mxu0 0.0
        %1347 = vmatpush1.xpose.msra.mxu0 0.0
        %1348 = vmatprep.subr.mxu0 0.0
        %1349 = vmatpush1.xpose.msra.mxu0 0.0
        %1350 = vmatprep.subr.mxu0 0.0
        %1351 = vmatpush1.xpose.msra.mxu0 0.0
        %1352 = vmatprep.subr.mxu0 0.0
        %1353 = vmatpush1.xpose.msra.mxu0 0.0
        %1354 = vmatprep.subr.mxu0 0.0
        %1355 = vmatpush1.xpose.msra.mxu0 0.0
        %1356 = vmatprep.mubr.f32.mxu0 0.0
        %1357 = vmatmul.mubr.f32.gmra.mrb[0].mxu0 %v1288
        %v1358 = vpop.f32.mrb[0].mxu0
        %v1359 = vadd.f32 0.0, %v1358
        %v1360 = vpop.f32.mrb[0].mxu0
        %1361 = vdwg.mxu0
        %v1362 = vsel %vm1287, %v1359, -inf
        %1363 = vmax.xlane.f32.xlu0 %v1362
        %v1364 = vpop.xlane.xlu0 %1363
        %v1365 = vsub.f32 %v1359, %v1364
        %v1366 = vmul.f32 %v1365, 1.442695
        %v1367 = vpow.pop %v1366
        %v1368 = vsel %vm1287, %v1367, 0.0
        %1369 = vadd.xlane.f32.xlu0 %v1368
        %v1370 = vpop.xlane.xlu0 %1369
        %v1371 = vrcp.pop %v1370
        %v1372 = vmul.f32 %v1367, %v1371
        %v1374 = vsel %vm1287, %v1372, 0
        %1376 = vmatprep.subr.mxu0 0.0
        %1377 = vmatpush1.msra.mxu0 %v1281
        %1378 = vmatprep.subr.mxu0 0.0
        %1379 = vmatpush1.msra.mxu0 0.0
        %1380 = vmatprep.subr.mxu0 0.0
        %1381 = vmatpush1.msra.mxu0 0.0
        %1382 = vmatprep.subr.mxu0 0.0
        %1383 = vmatpush1.msra.mxu0 0.0
        %1384 = vmatprep.subr.mxu0 0.0
        %1385 = vmatpush1.msra.mxu0 0.0
        %1386 = vmatprep.subr.mxu0 0.0
        %1387 = vmatpush1.msra.mxu0 0.0
        %1388 = vmatprep.subr.mxu0 0.0
        %1389 = vmatpush1.msra.mxu0 0.0
        %1390 = vmatprep.subr.mxu0 0.0
        %1391 = vmatpush1.msra.mxu0 0.0
        %1392 = vmatprep.subr.mxu0 0.0
        %1393 = vmatpush1.msra.mxu0 0.0
        %1394 = vmatprep.subr.mxu0 0.0
        %1395 = vmatpush1.msra.mxu0 0.0
        %1396 = vmatprep.subr.mxu0 0.0
        %1397 = vmatpush1.msra.mxu0 0.0
        %1398 = vmatprep.subr.mxu0 0.0
        %1399 = vmatpush1.msra.mxu0 0.0
        %1400 = vmatprep.subr.mxu0 0.0
        %1401 = vmatpush1.msra.mxu0 0.0
        %1402 = vmatprep.subr.mxu0 0.0
        %1403 = vmatpush1.msra.mxu0 0.0
        %1404 = vmatprep.subr.mxu0 0.0
        %1405 = vmatpush1.msra.mxu0 0.0
        %1406 = vmatprep.subr.mxu0 0.0
        %1407 = vmatpush1.msra.mxu0 0.0
        %1408 = vmatprep.subr.mxu0 0.0
        %1409 = vmatpush1.msra.mxu0 0.0
        %1410 = vmatprep.subr.mxu0 0.0
        %1411 = vmatpush1.msra.mxu0 0.0
        %1412 = vmatprep.subr.mxu0 0.0
        %1413 = vmatpush1.msra.mxu0 0.0
        %1414 = vmatprep.subr.mxu0 0.0
        %1415 = vmatpush1.msra.mxu0 0.0
        %1416 = vmatprep.subr.mxu0 0.0
        %1417 = vmatpush1.msra.mxu0 0.0
        %1418 = vmatprep.subr.mxu0 0.0
        %1419 = vmatpush1.msra.mxu0 0.0
        %1420 = vmatprep.subr.mxu0 0.0
        %1421 = vmatpush1.msra.mxu0 0.0
        %1422 = vmatprep.subr.mxu0 0.0
        %1423 = vmatpush1.msra.mxu0 0.0
        %1424 = vmatprep.subr.mxu0 0.0
        %1425 = vmatpush1.msra.mxu0 0.0
        %1426 = vmatprep.subr.mxu0 0.0
        %1427 = vmatpush1.msra.mxu0 0.0
        %1428 = vmatprep.subr.mxu0 0.0
        %1429 = vmatpush1.msra.mxu0 0.0
        %1430 = vmatprep.subr.mxu0 0.0
        %1431 = vmatpush1.msra.mxu0 0.0
        %1432 = vmatprep.subr.mxu0 0.0
        %1433 = vmatpush1.msra.mxu0 0.0
        %1434 = vmatprep.subr.mxu0 0.0
        %1435 = vmatpush1.msra.mxu0 0.0
        %1436 = vmatprep.subr.mxu0 0.0
        %1437 = vmatpush1.msra.mxu0 0.0
        %1438 = vmatprep.subr.mxu0 0.0
        %1439 = vmatpush1.msra.mxu0 0.0
        %1440 = vmatprep.mubr.f32.mxu0 0.0
        %1441 = vmatmul.mubr.f32.gmra.mrb[0].mxu0 %v1374
        %v1442 = vpop.f32.mrb[0].mxu0
        %v1443 = vadd.f32 0.0, %v1442
        %v1444 = vpop.f32.mrb[0].mxu0
        %1445 = vdwg.mxu0
        %v1446 = vld [vmem:[#allocation11] sm:$0xff]
        %1447 = vrot.lane.b32.xlu0 %v1197, 120
        %v1448 = vpop.permute.xlu0 %1447
        %1449 = vrot.lane.b32.xlu0 %v1197, 88
        %v1450 = vpop.permute.xlu0 %1449
        %v1451 = vsel %vm1287, %v1448, 0
        %v1453 = vsel %vm1287, %v1450, 0
        %1455 = vmatprep.subr.mxu0 0.0
        %1456 = vmatpush1.xpose.msra.mxu0 %v1453
        %1457 = vmatprep.subr.mxu0 0.0
        %1458 = vmatpush1.xpose.msra.mxu0 0.0
        %1459 = vmatprep.subr.mxu0 0.0
        %1460 = vmatpush1.xpose.msra.mxu0 0.0
        %1461 = vmatprep.subr.mxu0 0.0
        %1462 = vmatpush1.xpose.msra.mxu0 0.0
        %1463 = vmatprep.subr.mxu0 0.0
        %1464 = vmatpush1.xpose.msra.mxu0 0.0
        %1465 = vmatprep.subr.mxu0 0.0
        %1466 = vmatpush1.xpose.msra.mxu0 0.0
        %1467 = vmatprep.subr.mxu0 0.0
        %1468 = vmatpush1.xpose.msra.mxu0 0.0
        %1469 = vmatprep.subr.mxu0 0.0
        %1470 = vmatpush1.xpose.msra.mxu0 0.0
        %1471 = vmatprep.subr.mxu0 0.0
        %1472 = vmatpush1.xpose.msra.mxu0 0.0
        %1473 = vmatprep.subr.mxu0 0.0
        %1474 = vmatpush1.xpose.msra.mxu0 0.0
        %1475 = vmatprep.subr.mxu0 0.0
        %1476 = vmatpush1.xpose.msra.mxu0 0.0
        %1477 = vmatprep.subr.mxu0 0.0
        %1478 = vmatpush1.xpose.msra.mxu0 0.0
        %1479 = vmatprep.subr.mxu0 0.0
        %1480 = vmatpush1.xpose.msra.mxu0 0.0
        %1481 = vmatprep.subr.mxu0 0.0
        %1482 = vmatpush1.xpose.msra.mxu0 0.0
        %1483 = vmatprep.subr.mxu0 0.0
        %1484 = vmatpush1.xpose.msra.mxu0 0.0
        %1485 = vmatprep.subr.mxu0 0.0
        %1486 = vmatpush1.xpose.msra.mxu0 0.0
        %1487 = vmatprep.subr.mxu0 0.0
        %1488 = vmatpush1.xpose.msra.mxu0 0.0
        %1489 = vmatprep.subr.mxu0 0.0
        %1490 = vmatpush1.xpose.msra.mxu0 0.0
        %1491 = vmatprep.subr.mxu0 0.0
        %1492 = vmatpush1.xpose.msra.mxu0 0.0
        %1493 = vmatprep.subr.mxu0 0.0
        %1494 = vmatpush1.xpose.msra.mxu0 0.0
        %1495 = vmatprep.subr.mxu0 0.0
        %1496 = vmatpush1.xpose.msra.mxu0 0.0
        %1497 = vmatprep.subr.mxu0 0.0
        %1498 = vmatpush1.xpose.msra.mxu0 0.0
        %1499 = vmatprep.subr.mxu0 0.0
        %1500 = vmatpush1.xpose.msra.mxu0 0.0
        %1501 = vmatprep.subr.mxu0 0.0
        %1502 = vmatpush1.xpose.msra.mxu0 0.0
        %1503 = vmatprep.subr.mxu0 0.0
        %1504 = vmatpush1.xpose.msra.mxu0 0.0
        %1505 = vmatprep.subr.mxu0 0.0
        %1506 = vmatpush1.xpose.msra.mxu0 0.0
        %1507 = vmatprep.subr.mxu0 0.0
        %1508 = vmatpush1.xpose.msra.mxu0 0.0
        %1509 = vmatprep.subr.mxu0 0.0
        %1510 = vmatpush1.xpose.msra.mxu0 0.0
        %1511 = vmatprep.subr.mxu0 0.0
        %1512 = vmatpush1.xpose.msra.mxu0 0.0
        %1513 = vmatprep.subr.mxu0 0.0
        %1514 = vmatpush1.xpose.msra.mxu0 0.0
        %1515 = vmatprep.subr.mxu0 0.0
        %1516 = vmatpush1.xpose.msra.mxu0 0.0
        %1517 = vmatprep.subr.mxu0 0.0
        %1518 = vmatpush1.xpose.msra.mxu0 0.0
        %1519 = vmatprep.mubr.f32.mxu0 0.0
        %1520 = vmatmul.mubr.f32.gmra.mrb[0].mxu0 %v1451
        %v1521 = vpop.f32.mrb[0].mxu0
        %v1522 = vadd.f32 0.0, %v1521
        %v1523 = vpop.f32.mrb[0].mxu0
        %1524 = vdwg.mxu0
        %v1525 = vsel %vm1287, %v1522, -inf
        %1526 = vmax.xlane.f32.xlu0 %v1525
        %v1527 = vpop.xlane.xlu0 %1526
        %v1528 = vsub.f32 %v1522, %v1527
        %v1529 = vmul.f32 %v1528, 1.442695
        %v1530 = vpow.pop %v1529
        %v1531 = vsel %vm1287, %v1530, 0.0
        %1532 = vadd.xlane.f32.xlu0 %v1531
        %v1533 = vpop.xlane.xlu0 %1532
        %v1534 = vrcp.pop %v1533
        %v1535 = vmul.f32 %v1530, %v1534
        %1537 = vrot.lane.b32.xlu0 %v1281, 120
        %v1538 = vpop.permute.xlu0 %1537
        %v1541 = vsel %vm1287, %v1535, 0
        %1543 = vmatprep.subr.mxu0 0.0
        %1544 = vmatpush1.msra.mxu0 %v1538
        %1545 = vmatprep.subr.mxu0 0.0
        %1546 = vmatpush1.msra.mxu0 0.0
        %1547 = vmatprep.subr.mxu0 0.0
        %1548 = vmatpush1.msra.mxu0 0.0
        %1549 = vmatprep.subr.mxu0 0.0
        %1550 = vmatpush1.msra.mxu0 0.0
        %1551 = vmatprep.subr.mxu0 0.0
        %1552 = vmatpush1.msra.mxu0 0.0
        %1553 = vmatprep.subr.mxu0 0.0
        %1554 = vmatpush1.msra.mxu0 0.0
        %1555 = vmatprep.subr.mxu0 0.0
        %1556 = vmatpush1.msra.mxu0 0.0
        %1557 = vmatprep.subr.mxu0 0.0
        %1558 = vmatpush1.msra.mxu0 0.0
        %1559 = vmatprep.subr.mxu0 0.0
        %1560 = vmatpush1.msra.mxu0 0.0
        %1561 = vmatprep.subr.mxu0 0.0
        %1562 = vmatpush1.msra.mxu0 0.0
        %1563 = vmatprep.subr.mxu0 0.0
        %1564 = vmatpush1.msra.mxu0 0.0
        %1565 = vmatprep.subr.mxu0 0.0
        %1566 = vmatpush1.msra.mxu0 0.0
        %1567 = vmatprep.subr.mxu0 0.0
        %1568 = vmatpush1.msra.mxu0 0.0
        %1569 = vmatprep.subr.mxu0 0.0
        %1570 = vmatpush1.msra.mxu0 0.0
        %1571 = vmatprep.subr.mxu0 0.0
        %1572 = vmatpush1.msra.mxu0 0.0
        %1573 = vmatprep.subr.mxu0 0.0
        %1574 = vmatpush1.msra.mxu0 0.0
        %1575 = vmatprep.subr.mxu0 0.0
        %1576 = vmatpush1.msra.mxu0 0.0
        %1577 = vmatprep.subr.mxu0 0.0
        %1578 = vmatpush1.msra.mxu0 0.0
        %1579 = vmatprep.subr.mxu0 0.0
        %1580 = vmatpush1.msra.mxu0 0.0
        %1581 = vmatprep.subr.mxu0 0.0
        %1582 = vmatpush1.msra.mxu0 0.0
        %1583 = vmatprep.subr.mxu0 0.0
        %1584 = vmatpush1.msra.mxu0 0.0
        %1585 = vmatprep.subr.mxu0 0.0
        %1586 = vmatpush1.msra.mxu0 0.0
        %1587 = vmatprep.subr.mxu0 0.0
        %1588 = vmatpush1.msra.mxu0 0.0
        %1589 = vmatprep.subr.mxu0 0.0
        %1590 = vmatpush1.msra.mxu0 0.0
        %1591 = vmatprep.subr.mxu0 0.0
        %1592 = vmatpush1.msra.mxu0 0.0
        %1593 = vmatprep.subr.mxu0 0.0
        %1594 = vmatpush1.msra.mxu0 0.0
        %1595 = vmatprep.subr.mxu0 0.0
        %1596 = vmatpush1.msra.mxu0 0.0
        %1597 = vmatprep.subr.mxu0 0.0
        %1598 = vmatpush1.msra.mxu0 0.0
        %1599 = vmatprep.subr.mxu0 0.0
        %1600 = vmatpush1.msra.mxu0 0.0
        %1601 = vmatprep.subr.mxu0 0.0
        %1602 = vmatpush1.msra.mxu0 0.0
        %1603 = vmatprep.subr.mxu0 0.0
        %1604 = vmatpush1.msra.mxu0 0.0
        %1605 = vmatprep.subr.mxu0 0.0
        %1606 = vmatpush1.msra.mxu0 0.0
        %1607 = vmatprep.mubr.f32.mxu0 0.0
        %1608 = vmatmul.mubr.f32.gmra.mrb[0].mxu0 %v1541
        %v1609 = vpop.f32.mrb[0].mxu0
        %v1610 = vadd.f32 0.0, %v1609
        %v1611 = vpop.f32.mrb[0].mxu0
        %1612 = vdwg.mxu0
        %v1613 = vld [vmem:[#allocation11 + $0x8] sm:$0xff]
        %v1615 = vsel %vm1287, %v1610, 0
        %1617 = vmatprep.subr.mxu0 0.0
        %1618 = vmatpush1.msra.mxu0 %v1613
        %1619 = vmatprep.subr.mxu0 0.0
        %1620 = vmatpush1.msra.mxu0 0.0
        %1621 = vmatprep.subr.mxu0 0.0
        %1622 = vmatpush1.msra.mxu0 0.0
        %1623 = vmatprep.subr.mxu0 0.0
        %1624 = vmatpush1.msra.mxu0 0.0
        %1625 = vmatprep.subr.mxu0 0.0
        %1626 = vmatpush1.msra.mxu0 0.0
        %1627 = vmatprep.subr.mxu0 0.0
        %1628 = vmatpush1.msra.mxu0 0.0
        %1629 = vmatprep.subr.mxu0 0.0
        %1630 = vmatpush1.msra.mxu0 0.0
        %1631 = vmatprep.subr.mxu0 0.0
        %1632 = vmatpush1.msra.mxu0 0.0
        %1633 = vmatprep.subr.mxu0 0.0
        %1634 = vmatpush1.msra.mxu0 0.0
        %1635 = vmatprep.subr.mxu0 0.0
        %1636 = vmatpush1.msra.mxu0 0.0
        %1637 = vmatprep.subr.mxu0 0.0
        %1638 = vmatpush1.msra.mxu0 0.0
        %1639 = vmatprep.subr.mxu0 0.0
        %1640 = vmatpush1.msra.mxu0 0.0
        %1641 = vmatprep.subr.mxu0 0.0
        %1642 = vmatpush1.msra.mxu0 0.0
        %1643 = vmatprep.subr.mxu0 0.0
        %1644 = vmatpush1.msra.mxu0 0.0
        %1645 = vmatprep.subr.mxu0 0.0
        %1646 = vmatpush1.msra.mxu0 0.0
        %1647 = vmatprep.subr.mxu0 0.0
        %1648 = vmatpush1.msra.mxu0 0.0
        %1649 = vmatprep.subr.mxu0 0.0
        %1650 = vmatpush1.msra.mxu0 0.0
        %1651 = vmatprep.subr.mxu0 0.0
        %1652 = vmatpush1.msra.mxu0 0.0
        %1653 = vmatprep.subr.mxu0 0.0
        %1654 = vmatpush1.msra.mxu0 0.0
        %1655 = vmatprep.subr.mxu0 0.0
        %1656 = vmatpush1.msra.mxu0 0.0
        %1657 = vmatprep.subr.mxu0 0.0
        %1658 = vmatpush1.msra.mxu0 0.0
        %1659 = vmatprep.subr.mxu0 0.0
        %1660 = vmatpush1.msra.mxu0 0.0
        %1661 = vmatprep.subr.mxu0 0.0
        %1662 = vmatpush1.msra.mxu0 0.0
        %1663 = vmatprep.subr.mxu0 0.0
        %1664 = vmatpush1.msra.mxu0 0.0
        %1665 = vmatprep.subr.mxu0 0.0
        %1666 = vmatpush1.msra.mxu0 0.0
        %1667 = vmatprep.subr.mxu0 0.0
        %1668 = vmatpush1.msra.mxu0 0.0
        %1669 = vmatprep.subr.mxu0 0.0
        %1670 = vmatpush1.msra.mxu0 0.0
        %1671 = vmatprep.subr.mxu0 0.0
        %1672 = vmatpush1.msra.mxu0 0.0
        %1673 = vmatprep.subr.mxu0 0.0
        %1674 = vmatpush1.msra.mxu0 0.0
        %1675 = vmatprep.subr.mxu0 0.0
        %1676 = vmatpush1.msra.mxu0 0.0
        %1677 = vmatprep.subr.mxu0 0.0
        %1678 = vmatpush1.msra.mxu0 0.0
        %1679 = vmatprep.subr.mxu0 0.0
        %1680 = vmatpush1.msra.mxu0 0.0
        %1681 = vmatprep.mubr.f32.mxu0 0.0
        %1682 = vmatmul.mubr.f32.gmra.mrb[0].mxu0 %v1615
        %v1683 = vpop.f32.mrb[0].mxu0
        %v1684 = vadd.f32 0.0, %v1683
        %v1685 = vpop.f32.mrb[0].mxu0
        %1686 = vdwg.mxu0
        %v1688 = vsel %vm1287, %v1443, 0
        %1690 = vmatprep.subr.mxu0 0.0
        %1691 = vmatpush1.msra.mxu0 %v1446
        %1692 = vmatprep.subr.mxu0 0.0
        %1693 = vmatpush1.msra.mxu0 0.0
        %1694 = vmatprep.subr.mxu0 0.0
        %1695 = vmatpush1.msra.mxu0 0.0
        %1696 = vmatprep.subr.mxu0 0.0
        %1697 = vmatpush1.msra.mxu0 0.0
        %1698 = vmatprep.subr.mxu0 0.0
        %1699 = vmatpush1.msra.mxu0 0.0
        %1700 = vmatprep.subr.mxu0 0.0
        %1701 = vmatpush1.msra.mxu0 0.0
        %1702 = vmatprep.subr.mxu0 0.0
        %1703 = vmatpush1.msra.mxu0 0.0
        %1704 = vmatprep.subr.mxu0 0.0
        %1705 = vmatpush1.msra.mxu0 0.0
        %1706 = vmatprep.subr.mxu0 0.0
        %1707 = vmatpush1.msra.mxu0 0.0
        %1708 = vmatprep.subr.mxu0 0.0
        %1709 = vmatpush1.msra.mxu0 0.0
        %1710 = vmatprep.subr.mxu0 0.0
        %1711 = vmatpush1.msra.mxu0 0.0
        %1712 = vmatprep.subr.mxu0 0.0
        %1713 = vmatpush1.msra.mxu0 0.0
        %1714 = vmatprep.subr.mxu0 0.0
        %1715 = vmatpush1.msra.mxu0 0.0
        %1716 = vmatprep.subr.mxu0 0.0
        %1717 = vmatpush1.msra.mxu0 0.0
        %1718 = vmatprep.subr.mxu0 0.0
        %1719 = vmatpush1.msra.mxu0 0.0
        %1720 = vmatprep.subr.mxu0 0.0
        %1721 = vmatpush1.msra.mxu0 0.0
        %1722 = vmatprep.subr.mxu0 0.0
        %1723 = vmatpush1.msra.mxu0 0.0
        %1724 = vmatprep.subr.mxu0 0.0
        %1725 = vmatpush1.msra.mxu0 0.0
        %1726 = vmatprep.subr.mxu0 0.0
        %1727 = vmatpush1.msra.mxu0 0.0
        %1728 = vmatprep.subr.mxu0 0.0
        %1729 = vmatpush1.msra.mxu0 0.0
        %1730 = vmatprep.subr.mxu0 0.0
        %1731 = vmatpush1.msra.mxu0 0.0
        %1732 = vmatprep.subr.mxu0 0.0
        %1733 = vmatpush1.msra.mxu0 0.0
        %1734 = vmatprep.subr.mxu0 0.0
        %1735 = vmatpush1.msra.mxu0 0.0
        %1736 = vmatprep.subr.mxu0 0.0
        %1737 = vmatpush1.msra.mxu0 0.0
        %1738 = vmatprep.subr.mxu0 0.0
        %1739 = vmatpush1.msra.mxu0 0.0
        %1740 = vmatprep.subr.mxu0 0.0
        %1741 = vmatpush1.msra.mxu0 0.0
        %1742 = vmatprep.subr.mxu0 0.0
        %1743 = vmatpush1.msra.mxu0 0.0
        %1744 = vmatprep.subr.mxu0 0.0
        %1745 = vmatpush1.msra.mxu0 0.0
        %1746 = vmatprep.subr.mxu0 0.0
        %1747 = vmatpush1.msra.mxu0 0.0
        %1748 = vmatprep.subr.mxu0 0.0
        %1749 = vmatpush1.msra.mxu0 0.0
        %1750 = vmatprep.subr.mxu0 0.0
        %1751 = vmatpush1.msra.mxu0 0.0
        %1752 = vmatprep.subr.mxu0 0.0
        %1753 = vmatpush1.msra.mxu0 0.0
        %1754 = vmatprep.mubr.f32.mxu0 0.0
        %1755 = vmatmul.mubr.f32.gmra.mrb[0].mxu0 %v1688
        %v1756 = vpop.f32.mrb[0].mxu0
        %v1757 = vadd.f32 %v1684, %v1756
        %v1758 = vpop.f32.mrb[0].mxu0
        %1759 = vdwg.mxu0
        %1760 = vrot.lane.b32.xlu0 %v1197, 112
        %v1761 = vpop.permute.xlu0 %1760
        %1762 = vrot.lane.b32.xlu0 %v1197, 80
        %v1763 = vpop.permute.xlu0 %1762
        %v1764 = vsel %vm1287, %v1761, 0
        %v1766 = vsel %vm1287, %v1763, 0
        %1768 = vmatprep.subr.mxu0 0.0
        %1769 = vmatpush1.xpose.msra.mxu0 %v1766
        %1770 = vmatprep.subr.mxu0 0.0
        %1771 = vmatpush1.xpose.msra.mxu0 0.0
        %1772 = vmatprep.subr.mxu0 0.0
        %1773 = vmatpush1.xpose.msra.mxu0 0.0
        %1774 = vmatprep.subr.mxu0 0.0
        %1775 = vmatpush1.xpose.msra.mxu0 0.0
        %1776 = vmatprep.subr.mxu0 0.0
        %1777 = vmatpush1.xpose.msra.mxu0 0.0
        %1778 = vmatprep.subr.mxu0 0.0
        %1779 = vmatpush1.xpose.msra.mxu0 0.0
        %1780 = vmatprep.subr.mxu0 0.0
        %1781 = vmatpush1.xpose.msra.mxu0 0.0
        %1782 = vmatprep.subr.mxu0 0.0
        %1783 = vmatpush1.xpose.msra.mxu0 0.0
        %1784 = vmatprep.subr.mxu0 0.0
        %1785 = vmatpush1.xpose.msra.mxu0 0.0
        %1786 = vmatprep.subr.mxu0 0.0
        %1787 = vmatpush1.xpose.msra.mxu0 0.0
        %1788 = vmatprep.subr.mxu0 0.0
        %1789 = vmatpush1.xpose.msra.mxu0 0.0
        %1790 = vmatprep.subr.mxu0 0.0
        %1791 = vmatpush1.xpose.msra.mxu0 0.0
        %1792 = vmatprep.subr.mxu0 0.0
        %1793 = vmatpush1.xpose.msra.mxu0 0.0
        %1794 = vmatprep.subr.mxu0 0.0
        %1795 = vmatpush1.xpose.msra.mxu0 0.0
        %1796 = vmatprep.subr.mxu0 0.0
        %1797 = vmatpush1.xpose.msra.mxu0 0.0
        %1798 = vmatprep.subr.mxu0 0.0
        %1799 = vmatpush1.xpose.msra.mxu0 0.0
        %1800 = vmatprep.subr.mxu0 0.0
        %1801 = vmatpush1.xpose.msra.mxu0 0.0
        %1802 = vmatprep.subr.mxu0 0.0
        %1803 = vmatpush1.xpose.msra.mxu0 0.0
        %1804 = vmatprep.subr.mxu0 0.0
        %1805 = vmatpush1.xpose.msra.mxu0 0.0
        %1806 = vmatprep.subr.mxu0 0.0
        %1807 = vmatpush1.xpose.msra.mxu0 0.0
        %1808 = vmatprep.subr.mxu0 0.0
        %1809 = vmatpush1.xpose.msra.mxu0 0.0
        %1810 = vmatprep.subr.mxu0 0.0
        %1811 = vmatpush1.xpose.msra.mxu0 0.0
        %1812 = vmatprep.subr.mxu0 0.0
        %1813 = vmatpush1.xpose.msra.mxu0 0.0
        %1814 = vmatprep.subr.mxu0 0.0
        %1815 = vmatpush1.xpose.msra.mxu0 0.0
        %1816 = vmatprep.subr.mxu0 0.0
        %1817 = vmatpush1.xpose.msra.mxu0 0.0
        %1818 = vmatprep.subr.mxu0 0.0
        %1819 = vmatpush1.xpose.msra.mxu0 0.0
        %1820 = vmatprep.subr.mxu0 0.0
        %1821 = vmatpush1.xpose.msra.mxu0 0.0
        %1822 = vmatprep.subr.mxu0 0.0
        %1823 = vmatpush1.xpose.msra.mxu0 0.0
        %1824 = vmatprep.subr.mxu0 0.0
        %1825 = vmatpush1.xpose.msra.mxu0 0.0
        %1826 = vmatprep.subr.mxu0 0.0
        %1827 = vmatpush1.xpose.msra.mxu0 0.0
        %1828 = vmatprep.subr.mxu0 0.0
        %1829 = vmatpush1.xpose.msra.mxu0 0.0
        %1830 = vmatprep.subr.mxu0 0.0
        %1831 = vmatpush1.xpose.msra.mxu0 0.0
        %1832 = vmatprep.mubr.f32.mxu0 0.0
        %1833 = vmatmul.mubr.f32.gmra.mrb[0].mxu0 %v1764
        %v1834 = vpop.f32.mrb[0].mxu0
        %v1835 = vadd.f32 0.0, %v1834
        %v1836 = vpop.f32.mrb[0].mxu0
        %1837 = vdwg.mxu0
        %v1838 = vsel %vm1287, %v1835, -inf
        %1839 = vmax.xlane.f32.xlu0 %v1838
        %v1840 = vpop.xlane.xlu0 %1839
        %v1841 = vsub.f32 %v1835, %v1840
        %v1842 = vmul.f32 %v1841, 1.442695
        %v1843 = vpow.pop %v1842
        %v1844 = vsel %vm1287, %v1843, 0.0
        %1845 = vadd.xlane.f32.xlu0 %v1844
        %v1846 = vpop.xlane.xlu0 %1845
        %v1847 = vrcp.pop %v1846
        %v1848 = vmul.f32 %v1843, %v1847
        %1849 = vrot.lane.b32.xlu0 %v1281, 112
        %v1850 = vpop.permute.xlu0 %1849
        %v1853 = vsel %vm1287, %v1848, 0
        %1855 = vmatprep.subr.mxu0 0.0
        %1856 = vmatpush1.msra.mxu0 %v1850
        %1857 = vmatprep.subr.mxu0 0.0
        %1858 = vmatpush1.msra.mxu0 0.0
        %1859 = vmatprep.subr.mxu0 0.0
        %1860 = vmatpush1.msra.mxu0 0.0
        %1861 = vmatprep.subr.mxu0 0.0
        %1862 = vmatpush1.msra.mxu0 0.0
        %1863 = vmatprep.subr.mxu0 0.0
        %1864 = vmatpush1.msra.mxu0 0.0
        %1865 = vmatprep.subr.mxu0 0.0
        %1866 = vmatpush1.msra.mxu0 0.0
        %1867 = vmatprep.subr.mxu0 0.0
        %1868 = vmatpush1.msra.mxu0 0.0
        %1869 = vmatprep.subr.mxu0 0.0
        %1870 = vmatpush1.msra.mxu0 0.0
        %1871 = vmatprep.subr.mxu0 0.0
        %1872 = vmatpush1.msra.mxu0 0.0
        %1873 = vmatprep.subr.mxu0 0.0
        %1874 = vmatpush1.msra.mxu0 0.0
        %1875 = vmatprep.subr.mxu0 0.0
        %1876 = vmatpush1.msra.mxu0 0.0
        %1877 = vmatprep.subr.mxu0 0.0
        %1878 = vmatpush1.msra.mxu0 0.0
        %1879 = vmatprep.subr.mxu0 0.0
        %1880 = vmatpush1.msra.mxu0 0.0
        %1881 = vmatprep.subr.mxu0 0.0
        %1882 = vmatpush1.msra.mxu0 0.0
        %1883 = vmatprep.subr.mxu0 0.0
        %1884 = vmatpush1.msra.mxu0 0.0
        %1885 = vmatprep.subr.mxu0 0.0
        %1886 = vmatpush1.msra.mxu0 0.0
        %1887 = vmatprep.subr.mxu0 0.0
        %1888 = vmatpush1.msra.mxu0 0.0
        %1889 = vmatprep.subr.mxu0 0.0
        %1890 = vmatpush1.msra.mxu0 0.0
        %1891 = vmatprep.subr.mxu0 0.0
        %1892 = vmatpush1.msra.mxu0 0.0
        %1893 = vmatprep.subr.mxu0 0.0
        %1894 = vmatpush1.msra.mxu0 0.0
        %1895 = vmatprep.subr.mxu0 0.0
        %1896 = vmatpush1.msra.mxu0 0.0
        %1897 = vmatprep.subr.mxu0 0.0
        %1898 = vmatpush1.msra.mxu0 0.0
        %1899 = vmatprep.subr.mxu0 0.0
        %1900 = vmatpush1.msra.mxu0 0.0
        %1901 = vmatprep.subr.mxu0 0.0
        %1902 = vmatpush1.msra.mxu0 0.0
        %1903 = vmatprep.subr.mxu0 0.0
        %1904 = vmatpush1.msra.mxu0 0.0
        %1905 = vmatprep.subr.mxu0 0.0
        %1906 = vmatpush1.msra.mxu0 0.0
        %1907 = vmatprep.subr.mxu0 0.0
        %1908 = vmatpush1.msra.mxu0 0.0
        %1909 = vmatprep.subr.mxu0 0.0
        %1910 = vmatpush1.msra.mxu0 0.0
        %1911 = vmatprep.subr.mxu0 0.0
        %1912 = vmatpush1.msra.mxu0 0.0
        %1913 = vmatprep.subr.mxu0 0.0
        %1914 = vmatpush1.msra.mxu0 0.0
        %1915 = vmatprep.subr.mxu0 0.0
        %1916 = vmatpush1.msra.mxu0 0.0
        %1917 = vmatprep.subr.mxu0 0.0
        %1918 = vmatpush1.msra.mxu0 0.0
        %1919 = vmatprep.mubr.f32.mxu0 0.0
        %1920 = vmatmul.mubr.f32.gmra.mrb[0].mxu0 %v1853
        %v1921 = vpop.f32.mrb[0].mxu0
        %v1922 = vadd.f32 0.0, %v1921
        %v1923 = vpop.f32.mrb[0].mxu0
        %1924 = vdwg.mxu0
        %v1925 = vld [vmem:[#allocation11 + $0x10] sm:$0xff]
        %v1927 = vsel %vm1287, %v1922, 0
        %1929 = vmatprep.subr.mxu0 0.0
        %1930 = vmatpush1.msra.mxu0 %v1925
        %1931 = vmatprep.subr.mxu0 0.0
        %1932 = vmatpush1.msra.mxu0 0.0
        %1933 = vmatprep.subr.mxu0 0.0
        %1934 = vmatpush1.msra.mxu0 0.0
        %1935 = vmatprep.subr.mxu0 0.0
        %1936 = vmatpush1.msra.mxu0 0.0
        %1937 = vmatprep.subr.mxu0 0.0
        %1938 = vmatpush1.msra.mxu0 0.0
        %1939 = vmatprep.subr.mxu0 0.0
        %1940 = vmatpush1.msra.mxu0 0.0
        %1941 = vmatprep.subr.mxu0 0.0
        %1942 = vmatpush1.msra.mxu0 0.0
        %1943 = vmatprep.subr.mxu0 0.0
        %1944 = vmatpush1.msra.mxu0 0.0
        %1945 = vmatprep.subr.mxu0 0.0
        %1946 = vmatpush1.msra.mxu0 0.0
        %1947 = vmatprep.subr.mxu0 0.0
        %1948 = vmatpush1.msra.mxu0 0.0
        %1949 = vmatprep.subr.mxu0 0.0
        %1950 = vmatpush1.msra.mxu0 0.0
        %1951 = vmatprep.subr.mxu0 0.0
        %1952 = vmatpush1.msra.mxu0 0.0
        %1953 = vmatprep.subr.mxu0 0.0
        %1954 = vmatpush1.msra.mxu0 0.0
        %1955 = vmatprep.subr.mxu0 0.0
        %1956 = vmatpush1.msra.mxu0 0.0
        %1957 = vmatprep.subr.mxu0 0.0
        %1958 = vmatpush1.msra.mxu0 0.0
        %1959 = vmatprep.subr.mxu0 0.0
        %1960 = vmatpush1.msra.mxu0 0.0
        %1961 = vmatprep.subr.mxu0 0.0
        %1962 = vmatpush1.msra.mxu0 0.0
        %1963 = vmatprep.subr.mxu0 0.0
        %1964 = vmatpush1.msra.mxu0 0.0
        %1965 = vmatprep.subr.mxu0 0.0
        %1966 = vmatpush1.msra.mxu0 0.0
        %1967 = vmatprep.subr.mxu0 0.0
        %1968 = vmatpush1.msra.mxu0 0.0
        %1969 = vmatprep.subr.mxu0 0.0
        %1970 = vmatpush1.msra.mxu0 0.0
        %1971 = vmatprep.subr.mxu0 0.0
        %1972 = vmatpush1.msra.mxu0 0.0
        %1973 = vmatprep.subr.mxu0 0.0
        %1974 = vmatpush1.msra.mxu0 0.0
        %1975 = vmatprep.subr.mxu0 0.0
        %1976 = vmatpush1.msra.mxu0 0.0
        %1977 = vmatprep.subr.mxu0 0.0
        %1978 = vmatpush1.msra.mxu0 0.0
        %1979 = vmatprep.subr.mxu0 0.0
        %1980 = vmatpush1.msra.mxu0 0.0
        %1981 = vmatprep.subr.mxu0 0.0
        %1982 = vmatpush1.msra.mxu0 0.0
        %1983 = vmatprep.subr.mxu0 0.0
        %1984 = vmatpush1.msra.mxu0 0.0
        %1985 = vmatprep.subr.mxu0 0.0
        %1986 = vmatpush1.msra.mxu0 0.0
        %1987 = vmatprep.subr.mxu0 0.0
        %1988 = vmatpush1.msra.mxu0 0.0
        %1989 = vmatprep.subr.mxu0 0.0
        %1990 = vmatpush1.msra.mxu0 0.0
        %1991 = vmatprep.subr.mxu0 0.0
        %1992 = vmatpush1.msra.mxu0 0.0
        %1993 = vmatprep.mubr.f32.mxu0 0.0
        %1994 = vmatmul.mubr.f32.gmra.mrb[0].mxu0 %v1927
        %v1995 = vpop.f32.mrb[0].mxu0
        %v1996 = vadd.f32 0.0, %v1995
        %v1997 = vpop.f32.mrb[0].mxu0
        %1998 = vdwg.mxu0
        %v1999 = vadd.f32 %v1757, %v1996
        %2000 = vrot.lane.b32.xlu0 %v1197, 104
        %v2001 = vpop.permute.xlu0 %2000
        %2002 = vrot.lane.b32.xlu0 %v1197, 72
        %v2003 = vpop.permute.xlu0 %2002
        %v2004 = vsel %vm1287, %v2001, 0
        %v2006 = vsel %vm1287, %v2003, 0
        %2008 = vmatprep.subr.mxu0 0.0
        %2009 = vmatpush1.xpose.msra.mxu0 %v2006
        %2010 = vmatprep.subr.mxu0 0.0
        %2011 = vmatpush1.xpose.msra.mxu0 0.0
        %2012 = vmatprep.subr.mxu0 0.0
        %2013 = vmatpush1.xpose.msra.mxu0 0.0
        %2014 = vmatprep.subr.mxu0 0.0
        %2015 = vmatpush1.xpose.msra.mxu0 0.0
        %2016 = vmatprep.subr.mxu0 0.0
        %2017 = vmatpush1.xpose.msra.mxu0 0.0
        %2018 = vmatprep.subr.mxu0 0.0
        %2019 = vmatpush1.xpose.msra.mxu0 0.0
        %2020 = vmatprep.subr.mxu0 0.0
        %2021 = vmatpush1.xpose.msra.mxu0 0.0
        %2022 = vmatprep.subr.mxu0 0.0
        %2023 = vmatpush1.xpose.msra.mxu0 0.0
        %2024 = vmatprep.subr.mxu0 0.0
        %2025 = vmatpush1.xpose.msra.mxu0 0.0
        %2026 = vmatprep.subr.mxu0 0.0
        %2027 = vmatpush1.xpose.msra.mxu0 0.0
        %2028 = vmatprep.subr.mxu0 0.0
        %2029 = vmatpush1.xpose.msra.mxu0 0.0
        %2030 = vmatprep.subr.mxu0 0.0
        %2031 = vmatpush1.xpose.msra.mxu0 0.0
        %2032 = vmatprep.subr.mxu0 0.0
        %2033 = vmatpush1.xpose.msra.mxu0 0.0
        %2034 = vmatprep.subr.mxu0 0.0
        %2035 = vmatpush1.xpose.msra.mxu0 0.0
        %2036 = vmatprep.subr.mxu0 0.0
        %2037 = vmatpush1.xpose.msra.mxu0 0.0
        %2038 = vmatprep.subr.mxu0 0.0
        %2039 = vmatpush1.xpose.msra.mxu0 0.0
        %2040 = vmatprep.subr.mxu0 0.0
        %2041 = vmatpush1.xpose.msra.mxu0 0.0
        %2042 = vmatprep.subr.mxu0 0.0
        %2043 = vmatpush1.xpose.msra.mxu0 0.0
        %2044 = vmatprep.subr.mxu0 0.0
        %2045 = vmatpush1.xpose.msra.mxu0 0.0
        %2046 = vmatprep.subr.mxu0 0.0
        %2047 = vmatpush1.xpose.msra.mxu0 0.0
        %2048 = vmatprep.subr.mxu0 0.0
        %2049 = vmatpush1.xpose.msra.mxu0 0.0
        %2050 = vmatprep.subr.mxu0 0.0
        %2051 = vmatpush1.xpose.msra.mxu0 0.0
        %2052 = vmatprep.subr.mxu0 0.0
        %2053 = vmatpush1.xpose.msra.mxu0 0.0
        %2054 = vmatprep.subr.mxu0 0.0
        %2055 = vmatpush1.xpose.msra.mxu0 0.0
        %2056 = vmatprep.subr.mxu0 0.0
        %2057 = vmatpush1.xpose.msra.mxu0 0.0
        %2058 = vmatprep.subr.mxu0 0.0
        %2059 = vmatpush1.xpose.msra.mxu0 0.0
        %2060 = vmatprep.subr.mxu0 0.0
        %2061 = vmatpush1.xpose.msra.mxu0 0.0
        %2062 = vmatprep.subr.mxu0 0.0
        %2063 = vmatpush1.xpose.msra.mxu0 0.0
        %2064 = vmatprep.subr.mxu0 0.0
        %2065 = vmatpush1.xpose.msra.mxu0 0.0
        %2066 = vmatprep.subr.mxu0 0.0
        %2067 = vmatpush1.xpose.msra.mxu0 0.0
        %2068 = vmatprep.subr.mxu0 0.0
        %2069 = vmatpush1.xpose.msra.mxu0 0.0
        %2070 = vmatprep.subr.mxu0 0.0
        %2071 = vmatpush1.xpose.msra.mxu0 0.0
        %2072 = vmatprep.mubr.f32.mxu0 0.0
        %2073 = vmatmul.mubr.f32.gmra.mrb[0].mxu0 %v2004
        %v2074 = vpop.f32.mrb[0].mxu0
        %v2075 = vadd.f32 0.0, %v2074
        %v2076 = vpop.f32.mrb[0].mxu0
        %2077 = vdwg.mxu0
        %v2078 = vsel %vm1287, %v2075, -inf
        %2079 = vmax.xlane.f32.xlu0 %v2078
        %v2080 = vpop.xlane.xlu0 %2079
        %v2081 = vsub.f32 %v2075, %v2080
        %v2082 = vmul.f32 %v2081, 1.442695
        %v2083 = vpow.pop %v2082
        %v2084 = vsel %vm1287, %v2083, 0.0
        %2085 = vadd.xlane.f32.xlu0 %v2084
        %v2086 = vpop.xlane.xlu0 %2085
        %v2087 = vrcp.pop %v2086
        %v2088 = vmul.f32 %v2083, %v2087
        %2089 = vrot.lane.b32.xlu0 %v1281, 104
        %v2090 = vpop.permute.xlu0 %2089
        %v2093 = vsel %vm1287, %v2088, 0
        %2095 = vmatprep.subr.mxu0 0.0
        %2096 = vmatpush1.msra.mxu0 %v2090
        %2097 = vmatprep.subr.mxu0 0.0
        %2098 = vmatpush1.msra.mxu0 0.0
        %2099 = vmatprep.subr.mxu0 0.0
        %2100 = vmatpush1.msra.mxu0 0.0
        %2101 = vmatprep.subr.mxu0 0.0
        %2102 = vmatpush1.msra.mxu0 0.0
        %2103 = vmatprep.subr.mxu0 0.0
        %2104 = vmatpush1.msra.mxu0 0.0
        %2105 = vmatprep.subr.mxu0 0.0
        %2106 = vmatpush1.msra.mxu0 0.0
        %2107 = vmatprep.subr.mxu0 0.0
        %2108 = vmatpush1.msra.mxu0 0.0
        %2109 = vmatprep.subr.mxu0 0.0
        %2110 = vmatpush1.msra.mxu0 0.0
        %2111 = vmatprep.subr.mxu0 0.0
        %2112 = vmatpush1.msra.mxu0 0.0
        %2113 = vmatprep.subr.mxu0 0.0
        %2114 = vmatpush1.msra.mxu0 0.0
        %2115 = vmatprep.subr.mxu0 0.0
        %2116 = vmatpush1.msra.mxu0 0.0
        %2117 = vmatprep.subr.mxu0 0.0
        %2118 = vmatpush1.msra.mxu0 0.0
        %2119 = vmatprep.subr.mxu0 0.0
        %2120 = vmatpush1.msra.mxu0 0.0
        %2121 = vmatprep.subr.mxu0 0.0
        %2122 = vmatpush1.msra.mxu0 0.0
        %2123 = vmatprep.subr.mxu0 0.0
        %2124 = vmatpush1.msra.mxu0 0.0
        %2125 = vmatprep.subr.mxu0 0.0
        %2126 = vmatpush1.msra.mxu0 0.0
        %2127 = vmatprep.subr.mxu0 0.0
        %2128 = vmatpush1.msra.mxu0 0.0
        %2129 = vmatprep.subr.mxu0 0.0
        %2130 = vmatpush1.msra.mxu0 0.0
        %2131 = vmatprep.subr.mxu0 0.0
        %2132 = vmatpush1.msra.mxu0 0.0
        %2133 = vmatprep.subr.mxu0 0.0
        %2134 = vmatpush1.msra.mxu0 0.0
        %2135 = vmatprep.subr.mxu0 0.0
        %2136 = vmatpush1.msra.mxu0 0.0
        %2137 = vmatprep.subr.mxu0 0.0
        %2138 = vmatpush1.msra.mxu0 0.0
        %2139 = vmatprep.subr.mxu0 0.0
        %2140 = vmatpush1.msra.mxu0 0.0
        %2141 = vmatprep.subr.mxu0 0.0
        %2142 = vmatpush1.msra.mxu0 0.0
        %2143 = vmatprep.subr.mxu0 0.0
        %2144 = vmatpush1.msra.mxu0 0.0
        %2145 = vmatprep.subr.mxu0 0.0
        %2146 = vmatpush1.msra.mxu0 0.0
        %2147 = vmatprep.subr.mxu0 0.0
        %2148 = vmatpush1.msra.mxu0 0.0
        %2149 = vmatprep.subr.mxu0 0.0
        %2150 = vmatpush1.msra.mxu0 0.0
        %2151 = vmatprep.subr.mxu0 0.0
        %2152 = vmatpush1.msra.mxu0 0.0
        %2153 = vmatprep.subr.mxu0 0.0
        %2154 = vmatpush1.msra.mxu0 0.0
        %2155 = vmatprep.subr.mxu0 0.0
        %2156 = vmatpush1.msra.mxu0 0.0
        %2157 = vmatprep.subr.mxu0 0.0
        %2158 = vmatpush1.msra.mxu0 0.0
        %2159 = vmatprep.mubr.f32.mxu0 0.0
        %2160 = vmatmul.mubr.f32.gmra.mrb[0].mxu0 %v2093
        %v2161 = vpop.f32.mrb[0].mxu0
        %v2162 = vadd.f32 0.0, %v2161
        %v2163 = vpop.f32.mrb[0].mxu0
        %2164 = vdwg.mxu0
        %v2165 = vld [vmem:[#allocation11 + $0x18] sm:$0xff]
        %v2167 = vsel %vm1287, %v2162, 0
        %2169 = vmatprep.subr.mxu0 0.0
        %2170 = vmatpush1.msra.mxu0 %v2165
        %2171 = vmatprep.subr.mxu0 0.0
        %2172 = vmatpush1.msra.mxu0 0.0
        %2173 = vmatprep.subr.mxu0 0.0
        %2174 = vmatpush1.msra.mxu0 0.0
        %2175 = vmatprep.subr.mxu0 0.0
        %2176 = vmatpush1.msra.mxu0 0.0
        %2177 = vmatprep.subr.mxu0 0.0
        %2178 = vmatpush1.msra.mxu0 0.0
        %2179 = vmatprep.subr.mxu0 0.0
        %2180 = vmatpush1.msra.mxu0 0.0
        %2181 = vmatprep.subr.mxu0 0.0
        %2182 = vmatpush1.msra.mxu0 0.0
        %2183 = vmatprep.subr.mxu0 0.0
        %2184 = vmatpush1.msra.mxu0 0.0
        %2185 = vmatprep.subr.mxu0 0.0
        %2186 = vmatpush1.msra.mxu0 0.0
        %2187 = vmatprep.subr.mxu0 0.0
        %2188 = vmatpush1.msra.mxu0 0.0
        %2189 = vmatprep.subr.mxu0 0.0
        %2190 = vmatpush1.msra.mxu0 0.0
        %2191 = vmatprep.subr.mxu0 0.0
        %2192 = vmatpush1.msra.mxu0 0.0
        %2193 = vmatprep.subr.mxu0 0.0
        %2194 = vmatpush1.msra.mxu0 0.0
        %2195 = vmatprep.subr.mxu0 0.0
        %2196 = vmatpush1.msra.mxu0 0.0
        %2197 = vmatprep.subr.mxu0 0.0
        %2198 = vmatpush1.msra.mxu0 0.0
        %2199 = vmatprep.subr.mxu0 0.0
        %2200 = vmatpush1.msra.mxu0 0.0
        %2201 = vmatprep.subr.mxu0 0.0
        %2202 = vmatpush1.msra.mxu0 0.0
        %2203 = vmatprep.subr.mxu0 0.0
        %2204 = vmatpush1.msra.mxu0 0.0
        %2205 = vmatprep.subr.mxu0 0.0
        %2206 = vmatpush1.msra.mxu0 0.0
        %2207 = vmatprep.subr.mxu0 0.0
        %2208 = vmatpush1.msra.mxu0 0.0
        %2209 = vmatprep.subr.mxu0 0.0
        %2210 = vmatpush1.msra.mxu0 0.0
        %2211 = vmatprep.subr.mxu0 0.0
        %2212 = vmatpush1.msra.mxu0 0.0
        %2213 = vmatprep.subr.mxu0 0.0
        %2214 = vmatpush1.msra.mxu0 0.0
        %2215 = vmatprep.subr.mxu0 0.0
        %2216 = vmatpush1.msra.mxu0 0.0
        %2217 = vmatprep.subr.mxu0 0.0
        %2218 = vmatpush1.msra.mxu0 0.0
        %2219 = vmatprep.subr.mxu0 0.0
        %2220 = vmatpush1.msra.mxu0 0.0
        %2221 = vmatprep.subr.mxu0 0.0
        %2222 = vmatpush1.msra.mxu0 0.0
        %2223 = vmatprep.subr.mxu0 0.0
        %2224 = vmatpush1.msra.mxu0 0.0
        %2225 = vmatprep.subr.mxu0 0.0
        %2226 = vmatpush1.msra.mxu0 0.0
        %2227 = vmatprep.subr.mxu0 0.0
        %2228 = vmatpush1.msra.mxu0 0.0
        %2229 = vmatprep.subr.mxu0 0.0
        %2230 = vmatpush1.msra.mxu0 0.0
        %2231 = vmatprep.subr.mxu0 0.0
        %2232 = vmatpush1.msra.mxu0 0.0
        %2233 = vmatprep.mubr.f32.mxu0 0.0
        %2234 = vmatmul.mubr.f32.gmra.mrb[0].mxu0 %v2167
        %v2235 = vpop.f32.mrb[0].mxu0
        %v2236 = vadd.f32 0.0, %v2235
        %v2237 = vpop.f32.mrb[0].mxu0
        %2238 = vdwg.mxu0
        %v2239 = vadd.f32 %v1999, %v2236
        %v2240 = vld [vmem:[#allocation13] sm:$0x1]
        %v2242 = vlaneseq
        %v2243 = vshrl.u32 %v2242, 7
        %v2244 = vsub.s32 0, %v2243
        %v2245 = vrot.slane %v2240, %v2244
        %v2247 = vadd.f32 %v2239, %v2245
        %v2248 = vadd.f32 %v1112, %v2247
        %v2249 = vsel %vm1126, %v2248, 0.0
        %2250 = vadd.xlane.f32.xlu0 %v2249
        %v2251 = vpop.xlane.xlu0 %2250
        %v2252 = vrcp.pop 32.0
        %v2253 = vmul.f32 %v2251, %v2252
        %v2254 = vsub.f32 %v2248, %v2253
        %v2255 = vmul.f32 %v2254, %v2254
        %v2256 = vsel %vm1126, %v2255, 0.0
        %2257 = vadd.xlane.f32.xlu0 %v2256
        %v2258 = vpop.xlane.xlu0 %2257
        %v2259 = vmul.f32 %v2258, %v2252
        %v2260 = vadd.f32 %v2259, 1e-05
        %v2261 = vrsqrt.pop %v2260
        %v2262 = vmul.f32 %v2254, %v2261
        %v2263 = vld [vmem:[%s22] sm:$0x1]
        %v2265 = vlaneseq
        %v2266 = vshrl.u32 %v2265, 7
        %v2267 = vsub.s32 0, %v2266
        %v2268 = vrot.slane %v2263, %v2267
        %v2270 = vmul.f32 %v2262, %v2268
        %v2271 = vld [vmem:[%s23] sm:$0x1]
        %v2273 = vlaneseq
        %v2274 = vshrl.u32 %v2273, 7
        %v2275 = vsub.s32 0, %v2274
        %v2276 = vrot.slane %v2271, %v2275
        %v2278 = vadd.f32 %v2270, %v2276
        %v2279 = vld [vmem:[%s1106] sm:$0xff]
        %v2280 = vld [vmem:[%s1106 + $0x8] sm:$0xff]
        %v2281 = vld [vmem:[%s1111] sm:$0xff]
        %v2282 = vld [vmem:[%s1111 + $0x8] sm:$0xff]
        %v2283 = vadd.f32 %v2279, %v2281
        %v2284 = vadd.f32 %v2280, %v2282
        %v2285 = vadd.f32 %v2278, %v1113
        %v2286 = vld [vmem:[%s10] sm:$0xff]
        %v2287 = vld [vmem:[%s10 + $0x8] sm:$0xff]
        %v2288 = vld [vmem:[%s10 + $0x10] sm:$0xff]
        %v2289 = vld [vmem:[%s10 + $0x18] sm:$0xff]
        %v2290 = vld [vmem:[#allocation14] sm:$0x1]
        %v2292 = vlaneseq
        %v2293 = vshrl.u32 %v2292, 7
        %v2294 = vsub.s32 0, %v2293
        %v2295 = vrot.slane %v2290, %v2294
        %v2298 = vsel %vm1126, %v2285, 0
        %2300 = vmatprep.subr.mxu0 0.0
        %2301 = vmatpush1.msra.mxu0 %v2286
        %2302 = vmatprep.subr.mxu0 0.0
        %2303 = vmatpush1.msra.mxu0 %v2287
        %2304 = vmatprep.subr.mxu0 0.0
        %2305 = vmatpush1.msra.mxu0 %v2288
        %2306 = vmatprep.subr.mxu0 0.0
        %2307 = vmatpush1.msra.mxu0 %v2289
        %2308 = vmatprep.subr.mxu0 0.0
        %2309 = vmatpush1.msra.mxu0 0.0
        %2310 = vmatprep.subr.mxu0 0.0
        %2311 = vmatpush1.msra.mxu0 0.0
        %2312 = vmatprep.subr.mxu0 0.0
        %2313 = vmatpush1.msra.mxu0 0.0
        %2314 = vmatprep.subr.mxu0 0.0
        %2315 = vmatpush1.msra.mxu0 0.0
        %2316 = vmatprep.subr.mxu0 0.0
        %2317 = vmatpush1.msra.mxu0 0.0
        %2318 = vmatprep.subr.mxu0 0.0
        %2319 = vmatpush1.msra.mxu0 0.0
        %2320 = vmatprep.subr.mxu0 0.0
        %2321 = vmatpush1.msra.mxu0 0.0
        %2322 = vmatprep.subr.mxu0 0.0
        %2323 = vmatpush1.msra.mxu0 0.0
        %2324 = vmatprep.subr.mxu0 0.0
        %2325 = vmatpush1.msra.mxu0 0.0
        %2326 = vmatprep.subr.mxu0 0.0
        %2327 = vmatpush1.msra.mxu0 0.0
        %2328 = vmatprep.subr.mxu0 0.0
        %2329 = vmatpush1.msra.mxu0 0.0
        %2330 = vmatprep.subr.mxu0 0.0
        %2331 = vmatpush1.msra.mxu0 0.0
        %2332 = vmatprep.subr.mxu0 0.0
        %2333 = vmatpush1.msra.mxu0 0.0
        %2334 = vmatprep.subr.mxu0 0.0
        %2335 = vmatpush1.msra.mxu0 0.0
        %2336 = vmatprep.subr.mxu0 0.0
        %2337 = vmatpush1.msra.mxu0 0.0
        %2338 = vmatprep.subr.mxu0 0.0
        %2339 = vmatpush1.msra.mxu0 0.0
        %2340 = vmatprep.subr.mxu0 0.0
        %2341 = vmatpush1.msra.mxu0 0.0
        %2342 = vmatprep.subr.mxu0 0.0
        %2343 = vmatpush1.msra.mxu0 0.0
        %2344 = vmatprep.subr.mxu0 0.0
        %2345 = vmatpush1.msra.mxu0 0.0
        %2346 = vmatprep.subr.mxu0 0.0
        %2347 = vmatpush1.msra.mxu0 0.0
        %2348 = vmatprep.subr.mxu0 0.0
        %2349 = vmatpush1.msra.mxu0 0.0
        %2350 = vmatprep.subr.mxu0 0.0
        %2351 = vmatpush1.msra.mxu0 0.0
        %2352 = vmatprep.subr.mxu0 0.0
        %2353 = vmatpush1.msra.mxu0 0.0
        %2354 = vmatprep.subr.mxu0 0.0
        %2355 = vmatpush1.msra.mxu0 0.0
        %2356 = vmatprep.subr.mxu0 0.0
        %2357 = vmatpush1.msra.mxu0 0.0
        %2358 = vmatprep.subr.mxu0 0.0
        %2359 = vmatpush1.msra.mxu0 0.0
        %2360 = vmatprep.subr.mxu0 0.0
        %2361 = vmatpush1.msra.mxu0 0.0
        %2362 = vmatprep.subr.mxu0 0.0
        %2363 = vmatpush1.msra.mxu0 0.0
        %2364 = vmatprep.mubr.f32.mxu0 0.0
        %2365 = vmatmul.mubr.f32.gmra.mrb[0].mxu0 %v2298
        %v2366 = vpop.f32.mrb[0].mxu0
        %v2367 = vadd.f32 %v2295, %v2366
        %v2368 = vpop.f32.mrb[0].mxu0
        %2369 = vdwg.mxu0
        %v2370 = vld [vmem:[#allocation16] sm:$0xff]
        %v2371 = vld [vmem:[#allocation16 + $0x8] sm:$0xff]
        %v2372 = vld [vmem:[#allocation16 + $0x10] sm:$0xff]
        %v2373 = vld [vmem:[#allocation16 + $0x18] sm:$0xff]
        %v2374 = vld [vmem:[#allocation17] sm:$0x1]
        %v2376 = vlaneseq
        %v2377 = vshrl.u32 %v2376, 7
        %v2378 = vsub.s32 0, %v2377
        %v2379 = vrot.slane %v2374, %v2378
        %v2382 = vsel %vm1126, %v2283, 0
        %v2385 = vsel %vm1126, %v2284, 0
        %2387 = vmatprep.subr.mxu0 0.0
        %2388 = vmatpush1.msra.mxu0 %v2370
        %2389 = vmatprep.subr.mxu0 0.0
        %2390 = vmatpush1.msra.mxu0 %v2371
        %2391 = vmatprep.subr.mxu0 0.0
        %2392 = vmatpush1.msra.mxu0 %v2372
        %2393 = vmatprep.subr.mxu0 0.0
        %2394 = vmatpush1.msra.mxu0 %v2373
        %2395 = vmatprep.subr.mxu0 0.0
        %2396 = vmatpush1.msra.mxu0 0.0
        %2397 = vmatprep.subr.mxu0 0.0
        %2398 = vmatpush1.msra.mxu0 0.0
        %2399 = vmatprep.subr.mxu0 0.0
        %2400 = vmatpush1.msra.mxu0 0.0
        %2401 = vmatprep.subr.mxu0 0.0
        %2402 = vmatpush1.msra.mxu0 0.0
        %2403 = vmatprep.subr.mxu0 0.0
        %2404 = vmatpush1.msra.mxu0 0.0
        %2405 = vmatprep.subr.mxu0 0.0
        %2406 = vmatpush1.msra.mxu0 0.0
        %2407 = vmatprep.subr.mxu0 0.0
        %2408 = vmatpush1.msra.mxu0 0.0
        %2409 = vmatprep.subr.mxu0 0.0
        %2410 = vmatpush1.msra.mxu0 0.0
        %2411 = vmatprep.subr.mxu0 0.0
        %2412 = vmatpush1.msra.mxu0 0.0
        %2413 = vmatprep.subr.mxu0 0.0
        %2414 = vmatpush1.msra.mxu0 0.0
        %2415 = vmatprep.subr.mxu0 0.0
        %2416 = vmatpush1.msra.mxu0 0.0
        %2417 = vmatprep.subr.mxu0 0.0
        %2418 = vmatpush1.msra.mxu0 0.0
        %2419 = vmatprep.subr.mxu0 0.0
        %2420 = vmatpush1.msra.mxu0 0.0
        %2421 = vmatprep.subr.mxu0 0.0
        %2422 = vmatpush1.msra.mxu0 0.0
        %2423 = vmatprep.subr.mxu0 0.0
        %2424 = vmatpush1.msra.mxu0 0.0
        %2425 = vmatprep.subr.mxu0 0.0
        %2426 = vmatpush1.msra.mxu0 0.0
        %2427 = vmatprep.subr.mxu0 0.0
        %2428 = vmatpush1.msra.mxu0 0.0
        %2429 = vmatprep.subr.mxu0 0.0
        %2430 = vmatpush1.msra.mxu0 0.0
        %2431 = vmatprep.subr.mxu0 0.0
        %2432 = vmatpush1.msra.mxu0 0.0
        %2433 = vmatprep.subr.mxu0 0.0
        %2434 = vmatpush1.msra.mxu0 0.0
        %2435 = vmatprep.subr.mxu0 0.0
        %2436 = vmatpush1.msra.mxu0 0.0
        %2437 = vmatprep.subr.mxu0 0.0
        %2438 = vmatpush1.msra.mxu0 0.0
        %2439 = vmatprep.subr.mxu0 0.0
        %2440 = vmatpush1.msra.mxu0 0.0
        %2441 = vmatprep.subr.mxu0 0.0
        %2442 = vmatpush1.msra.mxu0 0.0
        %2443 = vmatprep.subr.mxu0 0.0
        %2444 = vmatpush1.msra.mxu0 0.0
        %2445 = vmatprep.subr.mxu0 0.0
        %2446 = vmatpush1.msra.mxu0 0.0
        %2447 = vmatprep.subr.mxu0 0.0
        %2448 = vmatpush1.msra.mxu0 0.0
        %2449 = vmatprep.subr.mxu0 0.0
        %2450 = vmatpush1.msra.mxu0 0.0
        %2451 = vmatprep.mubr.f32.mxu0 0.0
        %2452 = vmatmul.mubr.f32.gmra.mrb[0].mxu0 %v2382
        %v2453 = vpop.f32.mrb[0].mxu0
        %v2454 = vadd.f32 %v2379, %v2453
        %v2455 = vpop.f32.mrb[0].mxu0
        %2456 = vmatprep.mubr.f32.mxu0 0.0
        %2457 = vmatmul.mubr.f32.gmra.mrb[0].mxu0 %v2385
        %v2458 = vpop.f32.mrb[0].mxu0
        %v2459 = vadd.f32 %v2379, %v2458
        %v2460 = vpop.f32.mrb[0].mxu0
        %2461 = vdwg.mxu0
        %v2462 = vld [vmem:[#allocation19] sm:$0xff]
        %v2463 = vld [vmem:[#allocation19 + $0x8] sm:$0xff]
        %v2464 = vld [vmem:[#allocation19 + $0x10] sm:$0xff]
        %v2465 = vld [vmem:[#allocation19 + $0x18] sm:$0xff]
        %v2466 = vld [vmem:[#allocation20] sm:$0x1]
        %v2468 = vlaneseq
        %v2469 = vshrl.u32 %v2468, 7
        %v2470 = vsub.s32 0, %v2469
        %v2471 = vrot.slane %v2466, %v2470
        %v2474 = vsel %vm1126, %v2279, 0
        %v2477 = vsel %vm1126, %v2280, 0
        %2479 = vmatprep.subr.mxu0 0.0
        %2480 = vmatpush1.msra.mxu0 %v2462
        %2481 = vmatprep.subr.mxu0 0.0
        %2482 = vmatpush1.msra.mxu0 %v2463
        %2483 = vmatprep.subr.mxu0 0.0
        %2484 = vmatpush1.msra.mxu0 %v2464
        %2485 = vmatprep.subr.mxu0 0.0
        %2486 = vmatpush1.msra.mxu0 %v2465
        %2487 = vmatprep.subr.mxu0 0.0
        %2488 = vmatpush1.msra.mxu0 0.0
        %2489 = vmatprep.subr.mxu0 0.0
        %2490 = vmatpush1.msra.mxu0 0.0
        %2491 = vmatprep.subr.mxu0 0.0
        %2492 = vmatpush1.msra.mxu0 0.0
        %2493 = vmatprep.subr.mxu0 0.0
        %2494 = vmatpush1.msra.mxu0 0.0
        %2495 = vmatprep.subr.mxu0 0.0
        %2496 = vmatpush1.msra.mxu0 0.0
        %2497 = vmatprep.subr.mxu0 0.0
        %2498 = vmatpush1.msra.mxu0 0.0
        %2499 = vmatprep.subr.mxu0 0.0
        %2500 = vmatpush1.msra.mxu0 0.0
        %2501 = vmatprep.subr.mxu0 0.0
        %2502 = vmatpush1.msra.mxu0 0.0
        %2503 = vmatprep.subr.mxu0 0.0
        %2504 = vmatpush1.msra.mxu0 0.0
        %2505 = vmatprep.subr.mxu0 0.0
        %2506 = vmatpush1.msra.mxu0 0.0
        %2507 = vmatprep.subr.mxu0 0.0
        %2508 = vmatpush1.msra.mxu0 0.0
        %2509 = vmatprep.subr.mxu0 0.0
        %2510 = vmatpush1.msra.mxu0 0.0
        %2511 = vmatprep.subr.mxu0 0.0
        %2512 = vmatpush1.msra.mxu0 0.0
        %2513 = vmatprep.subr.mxu0 0.0
        %2514 = vmatpush1.msra.mxu0 0.0
        %2515 = vmatprep.subr.mxu0 0.0
        %2516 = vmatpush1.msra.mxu0 0.0
        %2517 = vmatprep.subr.mxu0 0.0
        %2518 = vmatpush1.msra.mxu0 0.0
        %2519 = vmatprep.subr.mxu0 0.0
        %2520 = vmatpush1.msra.mxu0 0.0
        %2521 = vmatprep.subr.mxu0 0.0
        %2522 = vmatpush1.msra.mxu0 0.0
        %2523 = vmatprep.subr.mxu0 0.0
        %2524 = vmatpush1.msra.mxu0 0.0
        %2525 = vmatprep.subr.mxu0 0.0
        %2526 = vmatpush1.msra.mxu0 0.0
        %2527 = vmatprep.subr.mxu0 0.0
        %2528 = vmatpush1.msra.mxu0 0.0
        %2529 = vmatprep.subr.mxu0 0.0
        %2530 = vmatpush1.msra.mxu0 0.0
        %2531 = vmatprep.subr.mxu0 0.0
        %2532 = vmatpush1.msra.mxu0 0.0
        %2533 = vmatprep.subr.mxu0 0.0
        %2534 = vmatpush1.msra.mxu0 0.0
        %2535 = vmatprep.subr.mxu0 0.0
        %2536 = vmatpush1.msra.mxu0 0.0
        %2537 = vmatprep.subr.mxu0 0.0
        %2538 = vmatpush1.msra.mxu0 0.0
        %2539 = vmatprep.subr.mxu0 0.0
        %2540 = vmatpush1.msra.mxu0 0.0
        %2541 = vmatprep.subr.mxu0 0.0
        %2542 = vmatpush1.msra.mxu0 0.0
        %2543 = vmatprep.mubr.f32.mxu0 0.0
        %2544 = vmatmul.mubr.f32.gmra.mrb[0].mxu0 %v2474
        %v2545 = vpop.f32.mrb[0].mxu0
        %v2546 = vadd.f32 %v2471, %v2545
        %v2547 = vpop.f32.mrb[0].mxu0
        %2548 = vmatprep.mubr.f32.mxu0 0.0
        %2549 = vmatmul.mubr.f32.gmra.mrb[0].mxu0 %v2477
        %v2550 = vpop.f32.mrb[0].mxu0
        %v2551 = vadd.f32 %v2471, %v2550
        %v2552 = vpop.f32.mrb[0].mxu0
        %2553 = vdwg.mxu0
        %v2555 = vsel %vm1287, %v2367, 0
        %v2558 = vsel %vm1287, %v2454, 0
        %v2561 = vsel %vm1287, %v2459, 0
        %2563 = vmatprep.subr.mxu0 0.0
        %2564 = vmatpush1.xpose.msra.mxu0 %v2558
        %2565 = vmatprep.subr.mxu0 0.0
        %2566 = vmatpush1.xpose.msra.mxu0 %v2561
        %2567 = vmatprep.subr.mxu0 0.0
        %2568 = vmatpush1.xpose.msra.mxu0 0.0
        %2569 = vmatprep.subr.mxu0 0.0
        %2570 = vmatpush1.xpose.msra.mxu0 0.0
        %2571 = vmatprep.subr.mxu0 0.0
        %2572 = vmatpush1.xpose.msra.mxu0 0.0
        %2573 = vmatprep.subr.mxu0 0.0
        %2574 = vmatpush1.xpose.msra.mxu0 0.0
        %2575 = vmatprep.subr.mxu0 0.0
        %2576 = vmatpush1.xpose.msra.mxu0 0.0
        %2577 = vmatprep.subr.mxu0 0.0
        %2578 = vmatpush1.xpose.msra.mxu0 0.0
        %2579 = vmatprep.subr.mxu0 0.0
        %2580 = vmatpush1.xpose.msra.mxu0 0.0
        %2581 = vmatprep.subr.mxu0 0.0
        %2582 = vmatpush1.xpose.msra.mxu0 0.0
        %2583 = vmatprep.subr.mxu0 0.0
        %2584 = vmatpush1.xpose.msra.mxu0 0.0
        %2585 = vmatprep.subr.mxu0 0.0
        %2586 = vmatpush1.xpose.msra.mxu0 0.0
        %2587 = vmatprep.subr.mxu0 0.0
        %2588 = vmatpush1.xpose.msra.mxu0 0.0
        %2589 = vmatprep.subr.mxu0 0.0
        %2590 = vmatpush1.xpose.msra.mxu0 0.0
        %2591 = vmatprep.subr.mxu0 0.0
        %2592 = vmatpush1.xpose.msra.mxu0 0.0
        %2593 = vmatprep.subr.mxu0 0.0
        %2594 = vmatpush1.xpose.msra.mxu0 0.0
        %2595 = vmatprep.subr.mxu0 0.0
        %2596 = vmatpush1.xpose.msra.mxu0 0.0
        %2597 = vmatprep.subr.mxu0 0.0
        %2598 = vmatpush1.xpose.msra.mxu0 0.0
        %2599 = vmatprep.subr.mxu0 0.0
        %2600 = vmatpush1.xpose.msra.mxu0 0.0
        %2601 = vmatprep.subr.mxu0 0.0
        %2602 = vmatpush1.xpose.msra.mxu0 0.0
        %2603 = vmatprep.subr.mxu0 0.0
        %2604 = vmatpush1.xpose.msra.mxu0 0.0
        %2605 = vmatprep.subr.mxu0 0.0
        %2606 = vmatpush1.xpose.msra.mxu0 0.0
        %2607 = vmatprep.subr.mxu0 0.0
        %2608 = vmatpush1.xpose.msra.mxu0 0.0
        %2609 = vmatprep.subr.mxu0 0.0
        %2610 = vmatpush1.xpose.msra.mxu0 0.0
        %2611 = vmatprep.subr.mxu0 0.0
        %2612 = vmatpush1.xpose.msra.mxu0 0.0
        %2613 = vmatprep.subr.mxu0 0.0
        %2614 = vmatpush1.xpose.msra.mxu0 0.0
        %2615 = vmatprep.subr.mxu0 0.0
        %2616 = vmatpush1.xpose.msra.mxu0 0.0
        %2617 = vmatprep.subr.mxu0 0.0
        %2618 = vmatpush1.xpose.msra.mxu0 0.0
        %2619 = vmatprep.subr.mxu0 0.0
        %2620 = vmatpush1.xpose.msra.mxu0 0.0
        %2621 = vmatprep.subr.mxu0 0.0
        %2622 = vmatpush1.xpose.msra.mxu0 0.0
        %2623 = vmatprep.subr.mxu0 0.0
        %2624 = vmatpush1.xpose.msra.mxu0 0.0
        %2625 = vmatprep.subr.mxu0 0.0
        %2626 = vmatpush1.xpose.msra.mxu0 0.0
        %2627 = vmatprep.mubr.f32.mxu0 0.0
        %2628 = vmatmul.mubr.f32.gmra.mrb[0].mxu0 %v2555
        %v2629 = vpop.f32.mrb[0].mxu0
        %v2630 = vadd.f32 0.0, %v2629
        %v2631 = vpop.f32.mrb[0].mxu0
        %2632 = vdwg.mxu0
        %vm2633 = vcmask 130048
        %v2634 = vsel %vm2633, %v2630, -inf
        %2635 = vmax.xlane.f32.xlu0 %v2634
        %v2636 = vpop.xlane.xlu0 %2635
        %v2637 = vsub.f32 %v2630, %v2636
        %v2638 = vmul.f32 %v2637, 1.442695
        %v2639 = vpow.pop %v2638
        %v2640 = vsel %vm2633, %v2639, 0.0
        %2641 = vadd.xlane.f32.xlu0 %v2640
        %v2642 = vpop.xlane.xlu0 %2641
        %v2643 = vrcp.pop %v2642
        %v2644 = vmul.f32 %v2639, %v2643
        %v2646 = vsel %vm2633, %v2644, 0
        %2648 = vmatprep.subr.mxu0 0.0
        %2649 = vmatpush1.msra.mxu0 %v2546
        %2650 = vmatprep.subr.mxu0 0.0
        %2651 = vmatpush1.msra.mxu0 %v2551
        %2652 = vmatprep.subr.mxu0 0.0
        %2653 = vmatpush1.msra.mxu0 0.0
        %2654 = vmatprep.subr.mxu0 0.0
        %2655 = vmatpush1.msra.mxu0 0.0
        %2656 = vmatprep.subr.mxu0 0.0
        %2657 = vmatpush1.msra.mxu0 0.0
        %2658 = vmatprep.subr.mxu0 0.0
        %2659 = vmatpush1.msra.mxu0 0.0
        %2660 = vmatprep.subr.mxu0 0.0
        %2661 = vmatpush1.msra.mxu0 0.0
        %2662 = vmatprep.subr.mxu0 0.0
        %2663 = vmatpush1.msra.mxu0 0.0
        %2664 = vmatprep.subr.mxu0 0.0
        %2665 = vmatpush1.msra.mxu0 0.0
        %2666 = vmatprep.subr.mxu0 0.0
        %2667 = vmatpush1.msra.mxu0 0.0
        %2668 = vmatprep.subr.mxu0 0.0
        %2669 = vmatpush1.msra.mxu0 0.0
        %2670 = vmatprep.subr.mxu0 0.0
        %2671 = vmatpush1.msra.mxu0 0.0
        %2672 = vmatprep.subr.mxu0 0.0
        %2673 = vmatpush1.msra.mxu0 0.0
        %2674 = vmatprep.subr.mxu0 0.0
        %2675 = vmatpush1.msra.mxu0 0.0
        %2676 = vmatprep.subr.mxu0 0.0
        %2677 = vmatpush1.msra.mxu0 0.0
        %2678 = vmatprep.subr.mxu0 0.0
        %2679 = vmatpush1.msra.mxu0 0.0
        %2680 = vmatprep.subr.mxu0 0.0
        %2681 = vmatpush1.msra.mxu0 0.0
        %2682 = vmatprep.subr.mxu0 0.0
        %2683 = vmatpush1.msra.mxu0 0.0
        %2684 = vmatprep.subr.mxu0 0.0
        %2685 = vmatpush1.msra.mxu0 0.0
        %2686 = vmatprep.subr.mxu0 0.0
        %2687 = vmatpush1.msra.mxu0 0.0
        %2688 = vmatprep.subr.mxu0 0.0
        %2689 = vmatpush1.msra.mxu0 0.0
        %2690 = vmatprep.subr.mxu0 0.0
        %2691 = vmatpush1.msra.mxu0 0.0
        %2692 = vmatprep.subr.mxu0 0.0
        %2693 = vmatpush1.msra.mxu0 0.0
        %2694 = vmatprep.subr.mxu0 0.0
        %2695 = vmatpush1.msra.mxu0 0.0
        %2696 = vmatprep.subr.mxu0 0.0
        %2697 = vmatpush1.msra.mxu0 0.0
        %2698 = vmatprep.subr.mxu0 0.0
        %2699 = vmatpush1.msra.mxu0 0.0
        %2700 = vmatprep.subr.mxu0 0.0
        %2701 = vmatpush1.msra.mxu0 0.0
        %2702 = vmatprep.subr.mxu0 0.0
        %2703 = vmatpush1.msra.mxu0 0.0
        %2704 = vmatprep.subr.mxu0 0.0
        %2705 = vmatpush1.msra.mxu0 0.0
        %2706 = vmatprep.subr.mxu0 0.0
        %2707 = vmatpush1.msra.mxu0 0.0
        %2708 = vmatprep.subr.mxu0 0.0
        %2709 = vmatpush1.msra.mxu0 0.0
        %2710 = vmatprep.subr.mxu0 0.0
        %2711 = vmatpush1.msra.mxu0 0.0
        %2712 = vmatprep.mubr.f32.mxu0 0.0
        %2713 = vmatmul.mubr.f32.gmra.mrb[0].mxu0 %v2646
        %v2714 = vpop.f32.mrb[0].mxu0
        %v2715 = vadd.f32 0.0, %v2714
        %v2716 = vpop.f32.mrb[0].mxu0
        %2717 = vdwg.mxu0
        %v2718 = vld [vmem:[#allocation22] sm:$0xff]
        %2719 = vrot.lane.b32.xlu0 %v2367, 120
        %v2720 = vpop.permute.xlu0 %2719
        %2721 = vrot.lane.b32.xlu0 %v2454, 120
        %v2722 = vpop.permute.xlu0 %2721
        %2723 = vrot.lane.b32.xlu0 %v2459, 120
        %v2724 = vpop.permute.xlu0 %2723
        %v2725 = vsel %vm1287, %v2720, 0
        %v2727 = vsel %vm1287, %v2722, 0
        %v2729 = vsel %vm1287, %v2724, 0
        %2731 = vmatprep.subr.mxu0 0.0
        %2732 = vmatpush1.xpose.msra.mxu0 %v2727
        %2733 = vmatprep.subr.mxu0 0.0
        %2734 = vmatpush1.xpose.msra.mxu0 %v2729
        %2735 = vmatprep.subr.mxu0 0.0
        %2736 = vmatpush1.xpose.msra.mxu0 0.0
        %2737 = vmatprep.subr.mxu0 0.0
        %2738 = vmatpush1.xpose.msra.mxu0 0.0
        %2739 = vmatprep.subr.mxu0 0.0
        %2740 = vmatpush1.xpose.msra.mxu0 0.0
        %2741 = vmatprep.subr.mxu0 0.0
        %2742 = vmatpush1.xpose.msra.mxu0 0.0
        %2743 = vmatprep.subr.mxu0 0.0
        %2744 = vmatpush1.xpose.msra.mxu0 0.0
        %2745 = vmatprep.subr.mxu0 0.0
        %2746 = vmatpush1.xpose.msra.mxu0 0.0
        %2747 = vmatprep.subr.mxu0 0.0
        %2748 = vmatpush1.xpose.msra.mxu0 0.0
        %2749 = vmatprep.subr.mxu0 0.0
        %2750 = vmatpush1.xpose.msra.mxu0 0.0
        %2751 = vmatprep.subr.mxu0 0.0
        %2752 = vmatpush1.xpose.msra.mxu0 0.0
        %2753 = vmatprep.subr.mxu0 0.0
        %2754 = vmatpush1.xpose.msra.mxu0 0.0
        %2755 = vmatprep.subr.mxu0 0.0
        %2756 = vmatpush1.xpose.msra.mxu0 0.0
        %2757 = vmatprep.subr.mxu0 0.0
        %2758 = vmatpush1.xpose.msra.mxu0 0.0
        %2759 = vmatprep.subr.mxu0 0.0
        %2760 = vmatpush1.xpose.msra.mxu0 0.0
        %2761 = vmatprep.subr.mxu0 0.0
        %2762 = vmatpush1.xpose.msra.mxu0 0.0
        %2763 = vmatprep.subr.mxu0 0.0
        %2764 = vmatpush1.xpose.msra.mxu0 0.0
        %2765 = vmatprep.subr.mxu0 0.0
        %2766 = vmatpush1.xpose.msra.mxu0 0.0
        %2767 = vmatprep.subr.mxu0 0.0
        %2768 = vmatpush1.xpose.msra.mxu0 0.0
        %2769 = vmatprep.subr.mxu0 0.0
        %2770 = vmatpush1.xpose.msra.mxu0 0.0
        %2771 = vmatprep.subr.mxu0 0.0
        %2772 = vmatpush1.xpose.msra.mxu0 0.0
        %2773 = vmatprep.subr.mxu0 0.0
        %2774 = vmatpush1.xpose.msra.mxu0 0.0
        %2775 = vmatprep.subr.mxu0 0.0
        %2776 = vmatpush1.xpose.msra.mxu0 0.0
        %2777 = vmatprep.subr.mxu0 0.0
        %2778 = vmatpush1.xpose.msra.mxu0 0.0
        %2779 = vmatprep.subr.mxu0 0.0
        %2780 = vmatpush1.xpose.msra.mxu0 0.0
        %2781 = vmatprep.subr.mxu0 0.0
        %2782 = vmatpush1.xpose.msra.mxu0 0.0
        %2783 = vmatprep.subr.mxu0 0.0
        %2784 = vmatpush1.xpose.msra.mxu0 0.0
        %2785 = vmatprep.subr.mxu0 0.0
        %2786 = vmatpush1.xpose.msra.mxu0 0.0
        %2787 = vmatprep.subr.mxu0 0.0
        %2788 = vmatpush1.xpose.msra.mxu0 0.0
        %2789 = vmatprep.subr.mxu0 0.0
        %2790 = vmatpush1.xpose.msra.mxu0 0.0
        %2791 = vmatprep.subr.mxu0 0.0
        %2792 = vmatpush1.xpose.msra.mxu0 0.0
        %2793 = vmatprep.subr.mxu0 0.0
        %2794 = vmatpush1.xpose.msra.mxu0 0.0
        %2795 = vmatprep.mubr.f32.mxu0 0.0
        %2796 = vmatmul.mubr.f32.gmra.mrb[0].mxu0 %v2725
        %v2797 = vpop.f32.mrb[0].mxu0
        %v2798 = vadd.f32 0.0, %v2797
        %v2799 = vpop.f32.mrb[0].mxu0
        %2800 = vdwg.mxu0
        %v2801 = vsel %vm2633, %v2798, -inf
        %2802 = vmax.xlane.f32.xlu0 %v2801
        %v2803 = vpop.xlane.xlu0 %2802
        %v2804 = vsub.f32 %v2798, %v2803
        %v2805 = vmul.f32 %v2804, 1.442695
        %v2806 = vpow.pop %v2805
        %v2807 = vsel %vm2633, %v2806, 0.0
        %2808 = vadd.xlane.f32.xlu0 %v2807
        %v2809 = vpop.xlane.xlu0 %2808
        %v2810 = vrcp.pop %v2809
        %v2811 = vmul.f32 %v2806, %v2810
        %2814 = vrot.lane.b32.xlu0 %v2546, 120
        %v2815 = vpop.permute.xlu0 %2814
        %2816 = vrot.lane.b32.xlu0 %v2551, 120
        %v2817 = vpop.permute.xlu0 %2816
        %v2821 = vsel %vm2633, %v2811, 0
        %2823 = vmatprep.subr.mxu0 0.0
        %2824 = vmatpush1.msra.mxu0 %v2815
        %2825 = vmatprep.subr.mxu0 0.0
        %2826 = vmatpush1.msra.mxu0 %v2817
        %2827 = vmatprep.subr.mxu0 0.0
        %2828 = vmatpush1.msra.mxu0 0.0
        %2829 = vmatprep.subr.mxu0 0.0
        %2830 = vmatpush1.msra.mxu0 0.0
        %2831 = vmatprep.subr.mxu0 0.0
        %2832 = vmatpush1.msra.mxu0 0.0
        %2833 = vmatprep.subr.mxu0 0.0
        %2834 = vmatpush1.msra.mxu0 0.0
        %2835 = vmatprep.subr.mxu0 0.0
        %2836 = vmatpush1.msra.mxu0 0.0
        %2837 = vmatprep.subr.mxu0 0.0
        %2838 = vmatpush1.msra.mxu0 0.0
        %2839 = vmatprep.subr.mxu0 0.0
        %2840 = vmatpush1.msra.mxu0 0.0
        %2841 = vmatprep.subr.mxu0 0.0
        %2842 = vmatpush1.msra.mxu0 0.0
        %2843 = vmatprep.subr.mxu0 0.0
        %2844 = vmatpush1.msra.mxu0 0.0
        %2845 = vmatprep.subr.mxu0 0.0
        %2846 = vmatpush1.msra.mxu0 0.0
        %2847 = vmatprep.subr.mxu0 0.0
        %2848 = vmatpush1.msra.mxu0 0.0
        %2849 = vmatprep.subr.mxu0 0.0
        %2850 = vmatpush1.msra.mxu0 0.0
        %2851 = vmatprep.subr.mxu0 0.0
        %2852 = vmatpush1.msra.mxu0 0.0
        %2853 = vmatprep.subr.mxu0 0.0
        %2854 = vmatpush1.msra.mxu0 0.0
        %2855 = vmatprep.subr.mxu0 0.0
        %2856 = vmatpush1.msra.mxu0 0.0
        %2857 = vmatprep.subr.mxu0 0.0
        %2858 = vmatpush1.msra.mxu0 0.0
        %2859 = vmatprep.subr.mxu0 0.0
        %2860 = vmatpush1.msra.mxu0 0.0
        %2861 = vmatprep.subr.mxu0 0.0
        %2862 = vmatpush1.msra.mxu0 0.0
        %2863 = vmatprep.subr.mxu0 0.0
        %2864 = vmatpush1.msra.mxu0 0.0
        %2865 = vmatprep.subr.mxu0 0.0
        %2866 = vmatpush1.msra.mxu0 0.0
        %2867 = vmatprep.subr.mxu0 0.0
        %2868 = vmatpush1.msra.mxu0 0.0
        %2869 = vmatprep.subr.mxu0 0.0
        %2870 = vmatpush1.msra.mxu0 0.0
        %2871 = vmatprep.subr.mxu0 0.0
        %2872 = vmatpush1.msra.mxu0 0.0
        %2873 = vmatprep.subr.mxu0 0.0
        %2874 = vmatpush1.msra.mxu0 0.0
        %2875 = vmatprep.subr.mxu0 0.0
        %2876 = vmatpush1.msra.mxu0 0.0
        %2877 = vmatprep.subr.mxu0 0.0
        %2878 = vmatpush1.msra.mxu0 0.0
        %2879 = vmatprep.subr.mxu0 0.0
        %2880 = vmatpush1.msra.mxu0 0.0
        %2881 = vmatprep.subr.mxu0 0.0
        %2882 = vmatpush1.msra.mxu0 0.0
        %2883 = vmatprep.subr.mxu0 0.0
        %2884 = vmatpush1.msra.mxu0 0.0
        %2885 = vmatprep.subr.mxu0 0.0
        %2886 = vmatpush1.msra.mxu0 0.0
        %2887 = vmatprep.mubr.f32.mxu0 0.0
        %2888 = vmatmul.mubr.f32.gmra.mrb[0].mxu0 %v2821
        %v2889 = vpop.f32.mrb[0].mxu0
        %v2890 = vadd.f32 0.0, %v2889
        %v2891 = vpop.f32.mrb[0].mxu0
        %2892 = vdwg.mxu0
        %v2893 = vld [vmem:[#allocation22 + $0x8] sm:$0xff]
        %v2895 = vsel %vm1287, %v2890, 0
        %2897 = vmatprep.subr.mxu0 0.0
        %2898 = vmatpush1.msra.mxu0 %v2893
        %2899 = vmatprep.subr.mxu0 0.0
        %2900 = vmatpush1.msra.mxu0 0.0
        %2901 = vmatprep.subr.mxu0 0.0
        %2902 = vmatpush1.msra.mxu0 0.0
        %2903 = vmatprep.subr.mxu0 0.0
        %2904 = vmatpush1.msra.mxu0 0.0
        %2905 = vmatprep.subr.mxu0 0.0
        %2906 = vmatpush1.msra.mxu0 0.0
        %2907 = vmatprep.subr.mxu0 0.0
        %2908 = vmatpush1.msra.mxu0 0.0
        %2909 = vmatprep.subr.mxu0 0.0
        %2910 = vmatpush1.msra.mxu0 0.0
        %2911 = vmatprep.subr.mxu0 0.0
        %2912 = vmatpush1.msra.mxu0 0.0
        %2913 = vmatprep.subr.mxu0 0.0
        %2914 = vmatpush1.msra.mxu0 0.0
        %2915 = vmatprep.subr.mxu0 0.0
        %2916 = vmatpush1.msra.mxu0 0.0
        %2917 = vmatprep.subr.mxu0 0.0
        %2918 = vmatpush1.msra.mxu0 0.0
        %2919 = vmatprep.subr.mxu0 0.0
        %2920 = vmatpush1.msra.mxu0 0.0
        %2921 = vmatprep.subr.mxu0 0.0
        %2922 = vmatpush1.msra.mxu0 0.0
        %2923 = vmatprep.subr.mxu0 0.0
        %2924 = vmatpush1.msra.mxu0 0.0
        %2925 = vmatprep.subr.mxu0 0.0
        %2926 = vmatpush1.msra.mxu0 0.0
        %2927 = vmatprep.subr.mxu0 0.0
        %2928 = vmatpush1.msra.mxu0 0.0
        %2929 = vmatprep.subr.mxu0 0.0
        %2930 = vmatpush1.msra.mxu0 0.0
        %2931 = vmatprep.subr.mxu0 0.0
        %2932 = vmatpush1.msra.mxu0 0.0
        %2933 = vmatprep.subr.mxu0 0.0
        %2934 = vmatpush1.msra.mxu0 0.0
        %2935 = vmatprep.subr.mxu0 0.0
        %2936 = vmatpush1.msra.mxu0 0.0
        %2937 = vmatprep.subr.mxu0 0.0
        %2938 = vmatpush1.msra.mxu0 0.0
        %2939 = vmatprep.subr.mxu0 0.0
        %2940 = vmatpush1.msra.mxu0 0.0
        %2941 = vmatprep.subr.mxu0 0.0
        %2942 = vmatpush1.msra.mxu0 0.0
        %2943 = vmatprep.subr.mxu0 0.0
        %2944 = vmatpush1.msra.mxu0 0.0
        %2945 = vmatprep.subr.mxu0 0.0
        %2946 = vmatpush1.msra.mxu0 0.0
        %2947 = vmatprep.subr.mxu0 0.0
        %2948 = vmatpush1.msra.mxu0 0.0
        %2949 = vmatprep.subr.mxu0 0.0
        %2950 = vmatpush1.msra.mxu0 0.0
        %2951 = vmatprep.subr.mxu0 0.0
        %2952 = vmatpush1.msra.mxu0 0.0
        %2953 = vmatprep.subr.mxu0 0.0
        %2954 = vmatpush1.msra.mxu0 0.0
        %2955 = vmatprep.subr.mxu0 0.0
        %2956 = vmatpush1.msra.mxu0 0.0
        %2957 = vmatprep.subr.mxu0 0.0
        %2958 = vmatpush1.msra.mxu0 0.0
        %2959 = vmatprep.subr.mxu0 0.0
        %2960 = vmatpush1.msra.mxu0 0.0
        %2961 = vmatprep.mubr.f32.mxu0 0.0
        %2962 = vmatmul.mubr.f32.gmra.mrb[0].mxu0 %v2895
        %v2963 = vpop.f32.mrb[0].mxu0
        %v2964 = vadd.f32 0.0, %v2963
        %v2965 = vpop.f32.mrb[0].mxu0
        %2966 = vdwg.mxu0
        %v2968 = vsel %vm1287, %v2715, 0
        %2970 = vmatprep.subr.mxu0 0.0
        %2971 = vmatpush1.msra.mxu0 %v2718
        %2972 = vmatprep.subr.mxu0 0.0
        %2973 = vmatpush1.msra.mxu0 0.0
        %2974 = vmatprep.subr.mxu0 0.0
        %2975 = vmatpush1.msra.mxu0 0.0
        %2976 = vmatprep.subr.mxu0 0.0
        %2977 = vmatpush1.msra.mxu0 0.0
        %2978 = vmatprep.subr.mxu0 0.0
        %2979 = vmatpush1.msra.mxu0 0.0
        %2980 = vmatprep.subr.mxu0 0.0
        %2981 = vmatpush1.msra.mxu0 0.0
        %2982 = vmatprep.subr.mxu0 0.0
        %2983 = vmatpush1.msra.mxu0 0.0
        %2984 = vmatprep.subr.mxu0 0.0
        %2985 = vmatpush1.msra.mxu0 0.0
        %2986 = vmatprep.subr.mxu0 0.0
        %2987 = vmatpush1.msra.mxu0 0.0
        %2988 = vmatprep.subr.mxu0 0.0
        %2989 = vmatpush1.msra.mxu0 0.0
        %2990 = vmatprep.subr.mxu0 0.0
        %2991 = vmatpush1.msra.mxu0 0.0
        %2992 = vmatprep.subr.mxu0 0.0
        %2993 = vmatpush1.msra.mxu0 0.0
        %2994 = vmatprep.subr.mxu0 0.0
        %2995 = vmatpush1.msra.mxu0 0.0
        %2996 = vmatprep.subr.mxu0 0.0
        %2997 = vmatpush1.msra.mxu0 0.0
        %2998 = vmatprep.subr.mxu0 0.0
        %2999 = vmatpush1.msra.mxu0 0.0
        %3000 = vmatprep.subr.mxu0 0.0
        %3001 = vmatpush1.msra.mxu0 0.0
        %3002 = vmatprep.subr.mxu0 0.0
        %3003 = vmatpush1.msra.mxu0 0.0
        %3004 = vmatprep.subr.mxu0 0.0
        %3005 = vmatpush1.msra.mxu0 0.0
        %3006 = vmatprep.subr.mxu0 0.0
        %3007 = vmatpush1.msra.mxu0 0.0
        %3008 = vmatprep.subr.mxu0 0.0
        %3009 = vmatpush1.msra.mxu0 0.0
        %3010 = vmatprep.subr.mxu0 0.0
        %3011 = vmatpush1.msra.mxu0 0.0
        %3012 = vmatprep.subr.mxu0 0.0
        %3013 = vmatpush1.msra.mxu0 0.0
        %3014 = vmatprep.subr.mxu0 0.0
        %3015 = vmatpush1.msra.mxu0 0.0
        %3016 = vmatprep.subr.mxu0 0.0
        %3017 = vmatpush1.msra.mxu0 0.0
        %3018 = vmatprep.subr.mxu0 0.0
        %3019 = vmatpush1.msra.mxu0 0.0
        %3020 = vmatprep.subr.mxu0 0.0
        %3021 = vmatpush1.msra.mxu0 0.0
        %3022 = vmatprep.subr.mxu0 0.0
        %3023 = vmatpush1.msra.mxu0 0.0
        %3024 = vmatprep.subr.mxu0 0.0
        %3025 = vmatpush1.msra.mxu0 0.0
        %3026 = vmatprep.subr.mxu0 0.0
        %3027 = vmatpush1.msra.mxu0 0.0
        %3028 = vmatprep.subr.mxu0 0.0
        %3029 = vmatpush1.msra.mxu0 0.0
        %3030 = vmatprep.subr.mxu0 0.0
        %3031 = vmatpush1.msra.mxu0 0.0
        %3032 = vmatprep.subr.mxu0 0.0
        %3033 = vmatpush1.msra.mxu0 0.0
        %3034 = vmatprep.mubr.f32.mxu0 0.0
        %3035 = vmatmul.mubr.f32.gmra.mrb[0].mxu0 %v2968
        %v3036 = vpop.f32.mrb[0].mxu0
        %v3037 = vadd.f32 %v2964, %v3036
        %v3038 = vpop.f32.mrb[0].mxu0
        %3039 = vdwg.mxu0
        %3040 = vrot.lane.b32.xlu0 %v2367, 112
        %v3041 = vpop.permute.xlu0 %3040
        %3042 = vrot.lane.b32.xlu0 %v2454, 112
        %v3043 = vpop.permute.xlu0 %3042
        %3044 = vrot.lane.b32.xlu0 %v2459, 112
        %v3045 = vpop.permute.xlu0 %3044
        %v3046 = vsel %vm1287, %v3041, 0
        %v3048 = vsel %vm1287, %v3043, 0
        %v3050 = vsel %vm1287, %v3045, 0
        %3052 = vmatprep.subr.mxu0 0.0
        %3053 = vmatpush1.xpose.msra.mxu0 %v3048
        %3054 = vmatprep.subr.mxu0 0.0
        %3055 = vmatpush1.xpose.msra.mxu0 %v3050
        %3056 = vmatprep.subr.mxu0 0.0
        %3057 = vmatpush1.xpose.msra.mxu0 0.0
        %3058 = vmatprep.subr.mxu0 0.0
        %3059 = vmatpush1.xpose.msra.mxu0 0.0
        %3060 = vmatprep.subr.mxu0 0.0
        %3061 = vmatpush1.xpose.msra.mxu0 0.0
        %3062 = vmatprep.subr.mxu0 0.0
        %3063 = vmatpush1.xpose.msra.mxu0 0.0
        %3064 = vmatprep.subr.mxu0 0.0
        %3065 = vmatpush1.xpose.msra.mxu0 0.0
        %3066 = vmatprep.subr.mxu0 0.0
        %3067 = vmatpush1.xpose.msra.mxu0 0.0
        %3068 = vmatprep.subr.mxu0 0.0
        %3069 = vmatpush1.xpose.msra.mxu0 0.0
        %3070 = vmatprep.subr.mxu0 0.0
        %3071 = vmatpush1.xpose.msra.mxu0 0.0
        %3072 = vmatprep.subr.mxu0 0.0
        %3073 = vmatpush1.xpose.msra.mxu0 0.0
        %3074 = vmatprep.subr.mxu0 0.0
        %3075 = vmatpush1.xpose.msra.mxu0 0.0
        %3076 = vmatprep.subr.mxu0 0.0
        %3077 = vmatpush1.xpose.msra.mxu0 0.0
        %3078 = vmatprep.subr.mxu0 0.0
        %3079 = vmatpush1.xpose.msra.mxu0 0.0
        %3080 = vmatprep.subr.mxu0 0.0
        %3081 = vmatpush1.xpose.msra.mxu0 0.0
        %3082 = vmatprep.subr.mxu0 0.0
        %3083 = vmatpush1.xpose.msra.mxu0 0.0
        %3084 = vmatprep.subr.mxu0 0.0
        %3085 = vmatpush1.xpose.msra.mxu0 0.0
        %3086 = vmatprep.subr.mxu0 0.0
        %3087 = vmatpush1.xpose.msra.mxu0 0.0
        %3088 = vmatprep.subr.mxu0 0.0
        %3089 = vmatpush1.xpose.msra.mxu0 0.0
        %3090 = vmatprep.subr.mxu0 0.0
        %3091 = vmatpush1.xpose.msra.mxu0 0.0
        %3092 = vmatprep.subr.mxu0 0.0
        %3093 = vmatpush1.xpose.msra.mxu0 0.0
        %3094 = vmatprep.subr.mxu0 0.0
        %3095 = vmatpush1.xpose.msra.mxu0 0.0
        %3096 = vmatprep.subr.mxu0 0.0
        %3097 = vmatpush1.xpose.msra.mxu0 0.0
        %3098 = vmatprep.subr.mxu0 0.0
        %3099 = vmatpush1.xpose.msra.mxu0 0.0
        %3100 = vmatprep.subr.mxu0 0.0
        %3101 = vmatpush1.xpose.msra.mxu0 0.0
        %3102 = vmatprep.subr.mxu0 0.0
        %3103 = vmatpush1.xpose.msra.mxu0 0.0
        %3104 = vmatprep.subr.mxu0 0.0
        %3105 = vmatpush1.xpose.msra.mxu0 0.0
        %3106 = vmatprep.subr.mxu0 0.0
        %3107 = vmatpush1.xpose.msra.mxu0 0.0
        %3108 = vmatprep.subr.mxu0 0.0
        %3109 = vmatpush1.xpose.msra.mxu0 0.0
        %3110 = vmatprep.subr.mxu0 0.0
        %3111 = vmatpush1.xpose.msra.mxu0 0.0
        %3112 = vmatprep.subr.mxu0 0.0
        %3113 = vmatpush1.xpose.msra.mxu0 0.0
        %3114 = vmatprep.subr.mxu0 0.0
        %3115 = vmatpush1.xpose.msra.mxu0 0.0
        %3116 = vmatprep.mubr.f32.mxu0 0.0
        %3117 = vmatmul.mubr.f32.gmra.mrb[0].mxu0 %v3046
        %v3118 = vpop.f32.mrb[0].mxu0
        %v3119 = vadd.f32 0.0, %v3118
        %v3120 = vpop.f32.mrb[0].mxu0
        %3121 = vdwg.mxu0
        %v3122 = vsel %vm2633, %v3119, -inf
        %3123 = vmax.xlane.f32.xlu0 %v3122
        %v3124 = vpop.xlane.xlu0 %3123
        %v3125 = vsub.f32 %v3119, %v3124
        %v3126 = vmul.f32 %v3125, 1.442695
        %v3127 = vpow.pop %v3126
        %v3128 = vsel %vm2633, %v3127, 0.0
        %3129 = vadd.xlane.f32.xlu0 %v3128
        %v3130 = vpop.xlane.xlu0 %3129
        %v3131 = vrcp.pop %v3130
        %v3132 = vmul.f32 %v3127, %v3131
        %3133 = vrot.lane.b32.xlu0 %v2546, 112
        %v3134 = vpop.permute.xlu0 %3133
        %3135 = vrot.lane.b32.xlu0 %v2551, 112
        %v3136 = vpop.permute.xlu0 %3135
        %v3140 = vsel %vm2633, %v3132, 0
        %3142 = vmatprep.subr.mxu0 0.0
        %3143 = vmatpush1.msra.mxu0 %v3134
        %3144 = vmatprep.subr.mxu0 0.0
        %3145 = vmatpush1.msra.mxu0 %v3136
        %3146 = vmatprep.subr.mxu0 0.0
        %3147 = vmatpush1.msra.mxu0 0.0
        %3148 = vmatprep.subr.mxu0 0.0
        %3149 = vmatpush1.msra.mxu0 0.0
        %3150 = vmatprep.subr.mxu0 0.0
        %3151 = vmatpush1.msra.mxu0 0.0
        %3152 = vmatprep.subr.mxu0 0.0
        %3153 = vmatpush1.msra.mxu0 0.0
        %3154 = vmatprep.subr.mxu0 0.0
        %3155 = vmatpush1.msra.mxu0 0.0
        %3156 = vmatprep.subr.mxu0 0.0
        %3157 = vmatpush1.msra.mxu0 0.0
        %3158 = vmatprep.subr.mxu0 0.0
        %3159 = vmatpush1.msra.mxu0 0.0
        %3160 = vmatprep.subr.mxu0 0.0
        %3161 = vmatpush1.msra.mxu0 0.0
        %3162 = vmatprep.subr.mxu0 0.0
        %3163 = vmatpush1.msra.mxu0 0.0
        %3164 = vmatprep.subr.mxu0 0.0
        %3165 = vmatpush1.msra.mxu0 0.0
        %3166 = vmatprep.subr.mxu0 0.0
        %3167 = vmatpush1.msra.mxu0 0.0
        %3168 = vmatprep.subr.mxu0 0.0
        %3169 = vmatpush1.msra.mxu0 0.0
        %3170 = vmatprep.subr.mxu0 0.0
        %3171 = vmatpush1.msra.mxu0 0.0
        %3172 = vmatprep.subr.mxu0 0.0
        %3173 = vmatpush1.msra.mxu0 0.0
        %3174 = vmatprep.subr.mxu0 0.0
        %3175 = vmatpush1.msra.mxu0 0.0
        %3176 = vmatprep.subr.mxu0 0.0
        %3177 = vmatpush1.msra.mxu0 0.0
        %3178 = vmatprep.subr.mxu0 0.0
        %3179 = vmatpush1.msra.mxu0 0.0
        %3180 = vmatprep.subr.mxu0 0.0
        %3181 = vmatpush1.msra.mxu0 0.0
        %3182 = vmatprep.subr.mxu0 0.0
        %3183 = vmatpush1.msra.mxu0 0.0
        %3184 = vmatprep.subr.mxu0 0.0
        %3185 = vmatpush1.msra.mxu0 0.0
        %3186 = vmatprep.subr.mxu0 0.0
        %3187 = vmatpush1.msra.mxu0 0.0
        %3188 = vmatprep.subr.mxu0 0.0
        %3189 = vmatpush1.msra.mxu0 0.0
        %3190 = vmatprep.subr.mxu0 0.0
        %3191 = vmatpush1.msra.mxu0 0.0
        %3192 = vmatprep.subr.mxu0 0.0
        %3193 = vmatpush1.msra.mxu0 0.0
        %3194 = vmatprep.subr.mxu0 0.0
        %3195 = vmatpush1.msra.mxu0 0.0
        %3196 = vmatprep.subr.mxu0 0.0
        %3197 = vmatpush1.msra.mxu0 0.0
        %3198 = vmatprep.subr.mxu0 0.0
        %3199 = vmatpush1.msra.mxu0 0.0
        %3200 = vmatprep.subr.mxu0 0.0
        %3201 = vmatpush1.msra.mxu0 0.0
        %3202 = vmatprep.subr.mxu0 0.0
        %3203 = vmatpush1.msra.mxu0 0.0
        %3204 = vmatprep.subr.mxu0 0.0
        %3205 = vmatpush1.msra.mxu0 0.0
        %3206 = vmatprep.mubr.f32.mxu0 0.0
        %3207 = vmatmul.mubr.f32.gmra.mrb[0].mxu0 %v3140
        %v3208 = vpop.f32.mrb[0].mxu0
        %v3209 = vadd.f32 0.0, %v3208
        %v3210 = vpop.f32.mrb[0].mxu0
        %3211 = vdwg.mxu0
        %v3212 = vld [vmem:[#allocation22 + $0x10] sm:$0xff]
        %v3214 = vsel %vm1287, %v3209, 0
        %3216 = vmatprep.subr.mxu0 0.0
        %3217 = vmatpush1.msra.mxu0 %v3212
        %3218 = vmatprep.subr.mxu0 0.0
        %3219 = vmatpush1.msra.mxu0 0.0
        %3220 = vmatprep.subr.mxu0 0.0
        %3221 = vmatpush1.msra.mxu0 0.0
        %3222 = vmatprep.subr.mxu0 0.0
        %3223 = vmatpush1.msra.mxu0 0.0
        %3224 = vmatprep.subr.mxu0 0.0
        %3225 = vmatpush1.msra.mxu0 0.0
        %3226 = vmatprep.subr.mxu0 0.0
        %3227 = vmatpush1.msra.mxu0 0.0
        %3228 = vmatprep.subr.mxu0 0.0
        %3229 = vmatpush1.msra.mxu0 0.0
        %3230 = vmatprep.subr.mxu0 0.0
        %3231 = vmatpush1.msra.mxu0 0.0
        %3232 = vmatprep.subr.mxu0 0.0
        %3233 = vmatpush1.msra.mxu0 0.0
        %3234 = vmatprep.subr.mxu0 0.0
        %3235 = vmatpush1.msra.mxu0 0.0
        %3236 = vmatprep.subr.mxu0 0.0
        %3237 = vmatpush1.msra.mxu0 0.0
        %3238 = vmatprep.subr.mxu0 0.0
        %3239 = vmatpush1.msra.mxu0 0.0
        %3240 = vmatprep.subr.mxu0 0.0
        %3241 = vmatpush1.msra.mxu0 0.0
        %3242 = vmatprep.subr.mxu0 0.0
        %3243 = vmatpush1.msra.mxu0 0.0
        %3244 = vmatprep.subr.mxu0 0.0
        %3245 = vmatpush1.msra.mxu0 0.0
        %3246 = vmatprep.subr.mxu0 0.0
        %3247 = vmatpush1.msra.mxu0 0.0
        %3248 = vmatprep.subr.mxu0 0.0
        %3249 = vmatpush1.msra.mxu0 0.0
        %3250 = vmatprep.subr.mxu0 0.0
        %3251 = vmatpush1.msra.mxu0 0.0
        %3252 = vmatprep.subr.mxu0 0.0
        %3253 = vmatpush1.msra.mxu0 0.0
        %3254 = vmatprep.subr.mxu0 0.0
        %3255 = vmatpush1.msra.mxu0 0.0
        %3256 = vmatprep.subr.mxu0 0.0
        %3257 = vmatpush1.msra.mxu0 0.0
        %3258 = vmatprep.subr.mxu0 0.0
        %3259 = vmatpush1.msra.mxu0 0.0
        %3260 = vmatprep.subr.mxu0 0.0
        %3261 = vmatpush1.msra.mxu0 0.0
        %3262 = vmatprep.subr.mxu0 0.0
        %3263 = vmatpush1.msra.mxu0 0.0
        %3264 = vmatprep.subr.mxu0 0.0
        %3265 = vmatpush1.msra.mxu0 0.0
        %3266 = vmatprep.subr.mxu0 0.0
        %3267 = vmatpush1.msra.mxu0 0.0
        %3268 = vmatprep.subr.mxu0 0.0
        %3269 = vmatpush1.msra.mxu0 0.0
        %3270 = vmatprep.subr.mxu0 0.0
        %3271 = vmatpush1.msra.mxu0 0.0
        %3272 = vmatprep.subr.mxu0 0.0
        %3273 = vmatpush1.msra.mxu0 0.0
        %3274 = vmatprep.subr.mxu0 0.0
        %3275 = vmatpush1.msra.mxu0 0.0
        %3276 = vmatprep.subr.mxu0 0.0
        %3277 = vmatpush1.msra.mxu0 0.0
        %3278 = vmatprep.subr.mxu0 0.0
        %3279 = vmatpush1.msra.mxu0 0.0
        %3280 = vmatprep.mubr.f32.mxu0 0.0
        %3281 = vmatmul.mubr.f32.gmra.mrb[0].mxu0 %v3214
        %v3282 = vpop.f32.mrb[0].mxu0
        %v3283 = vadd.f32 0.0, %v3282
        %v3284 = vpop.f32.mrb[0].mxu0
        %3285 = vdwg.mxu0
        %v3286 = vadd.f32 %v3037, %v3283
        %3287 = vrot.lane.b32.xlu0 %v2367, 104
        %v3288 = vpop.permute.xlu0 %3287
        %3289 = vrot.lane.b32.xlu0 %v2454, 104
        %v3290 = vpop.permute.xlu0 %3289
        %3291 = vrot.lane.b32.xlu0 %v2459, 104
        %v3292 = vpop.permute.xlu0 %3291
        %v3293 = vsel %vm1287, %v3288, 0
        %v3295 = vsel %vm1287, %v3290, 0
        %v3297 = vsel %vm1287, %v3292, 0
        %3299 = vmatprep.subr.mxu0 0.0
        %3300 = vmatpush1.xpose.msra.mxu0 %v3295
        %3301 = vmatprep.subr.mxu0 0.0
        %3302 = vmatpush1.xpose.msra.mxu0 %v3297
        %3303 = vmatprep.subr.mxu0 0.0
        %3304 = vmatpush1.xpose.msra.mxu0 0.0
        %3305 = vmatprep.subr.mxu0 0.0
        %3306 = vmatpush1.xpose.msra.mxu0 0.0
        %3307 = vmatprep.subr.mxu0 0.0
        %3308 = vmatpush1.xpose.msra.mxu0 0.0
        %3309 = vmatprep.subr.mxu0 0.0
        %3310 = vmatpush1.xpose.msra.mxu0 0.0
        %3311 = vmatprep.subr.mxu0 0.0
        %3312 = vmatpush1.xpose.msra.mxu0 0.0
        %3313 = vmatprep.subr.mxu0 0.0
        %3314 = vmatpush1.xpose.msra.mxu0 0.0
        %3315 = vmatprep.subr.mxu0 0.0
        %3316 = vmatpush1.xpose.msra.mxu0 0.0
        %3317 = vmatprep.subr.mxu0 0.0
        %3318 = vmatpush1.xpose.msra.mxu0 0.0
        %3319 = vmatprep.subr.mxu0 0.0
        %3320 = vmatpush1.xpose.msra.mxu0 0.0
        %3321 = vmatprep.subr.mxu0 0.0
        %3322 = vmatpush1.xpose.msra.mxu0 0.0
        %3323 = vmatprep.subr.mxu0 0.0
        %3324 = vmatpush1.xpose.msra.mxu0 0.0
        %3325 = vmatprep.subr.mxu0 0.0
        %3326 = vmatpush1.xpose.msra.mxu0 0.0
        %3327 = vmatprep.subr.mxu0 0.0
        %3328 = vmatpush1.xpose.msra.mxu0 0.0
        %3329 = vmatprep.subr.mxu0 0.0
        %3330 = vmatpush1.xpose.msra.mxu0 0.0
        %3331 = vmatprep.subr.mxu0 0.0
        %3332 = vmatpush1.xpose.msra.mxu0 0.0
        %3333 = vmatprep.subr.mxu0 0.0
        %3334 = vmatpush1.xpose.msra.mxu0 0.0
        %3335 = vmatprep.subr.mxu0 0.0
        %3336 = vmatpush1.xpose.msra.mxu0 0.0
        %3337 = vmatprep.subr.mxu0 0.0
        %3338 = vmatpush1.xpose.msra.mxu0 0.0
        %3339 = vmatprep.subr.mxu0 0.0
        %3340 = vmatpush1.xpose.msra.mxu0 0.0
        %3341 = vmatprep.subr.mxu0 0.0
        %3342 = vmatpush1.xpose.msra.mxu0 0.0
        %3343 = vmatprep.subr.mxu0 0.0
        %3344 = vmatpush1.xpose.msra.mxu0 0.0
        %3345 = vmatprep.subr.mxu0 0.0
        %3346 = vmatpush1.xpose.msra.mxu0 0.0
        %3347 = vmatprep.subr.mxu0 0.0
        %3348 = vmatpush1.xpose.msra.mxu0 0.0
        %3349 = vmatprep.subr.mxu0 0.0
        %3350 = vmatpush1.xpose.msra.mxu0 0.0
        %3351 = vmatprep.subr.mxu0 0.0
        %3352 = vmatpush1.xpose.msra.mxu0 0.0
        %3353 = vmatprep.subr.mxu0 0.0
        %3354 = vmatpush1.xpose.msra.mxu0 0.0
        %3355 = vmatprep.subr.mxu0 0.0
        %3356 = vmatpush1.xpose.msra.mxu0 0.0
        %3357 = vmatprep.subr.mxu0 0.0
        %3358 = vmatpush1.xpose.msra.mxu0 0.0
        %3359 = vmatprep.subr.mxu0 0.0
        %3360 = vmatpush1.xpose.msra.mxu0 0.0
        %3361 = vmatprep.subr.mxu0 0.0
        %3362 = vmatpush1.xpose.msra.mxu0 0.0
        %3363 = vmatprep.mubr.f32.mxu0 0.0
        %3364 = vmatmul.mubr.f32.gmra.mrb[0].mxu0 %v3293
        %v3365 = vpop.f32.mrb[0].mxu0
        %v3366 = vadd.f32 0.0, %v3365
        %v3367 = vpop.f32.mrb[0].mxu0
        %3368 = vdwg.mxu0
        %v3369 = vsel %vm2633, %v3366, -inf
        %3370 = vmax.xlane.f32.xlu0 %v3369
        %v3371 = vpop.xlane.xlu0 %3370
        %v3372 = vsub.f32 %v3366, %v3371
        %v3373 = vmul.f32 %v3372, 1.442695
        %v3374 = vpow.pop %v3373
        %v3375 = vsel %vm2633, %v3374, 0.0
        %3376 = vadd.xlane.f32.xlu0 %v3375
        %v3377 = vpop.xlane.xlu0 %3376
        %v3378 = vrcp.pop %v3377
        %v3379 = vmul.f32 %v3374, %v3378
        %3380 = vrot.lane.b32.xlu0 %v2546, 104
        %v3381 = vpop.permute.xlu0 %3380
        %3382 = vrot.lane.b32.xlu0 %v2551, 104
        %v3383 = vpop.permute.xlu0 %3382
        %v3387 = vsel %vm2633, %v3379, 0
        %3389 = vmatprep.subr.mxu0 0.0
        %3390 = vmatpush1.msra.mxu0 %v3381
        %3391 = vmatprep.subr.mxu0 0.0
        %3392 = vmatpush1.msra.mxu0 %v3383
        %3393 = vmatprep.subr.mxu0 0.0
        %3394 = vmatpush1.msra.mxu0 0.0
        %3395 = vmatprep.subr.mxu0 0.0
        %3396 = vmatpush1.msra.mxu0 0.0
        %3397 = vmatprep.subr.mxu0 0.0
        %3398 = vmatpush1.msra.mxu0 0.0
        %3399 = vmatprep.subr.mxu0 0.0
        %3400 = vmatpush1.msra.mxu0 0.0
        %3401 = vmatprep.subr.mxu0 0.0
        %3402 = vmatpush1.msra.mxu0 0.0
        %3403 = vmatprep.subr.mxu0 0.0
        %3404 = vmatpush1.msra.mxu0 0.0
        %3405 = vmatprep.subr.mxu0 0.0
        %3406 = vmatpush1.msra.mxu0 0.0
        %3407 = vmatprep.subr.mxu0 0.0
        %3408 = vmatpush1.msra.mxu0 0.0
        %3409 = vmatprep.subr.mxu0 0.0
        %3410 = vmatpush1.msra.mxu0 0.0
        %3411 = vmatprep.subr.mxu0 0.0
        %3412 = vmatpush1.msra.mxu0 0.0
        %3413 = vmatprep.subr.mxu0 0.0
        %3414 = vmatpush1.msra.mxu0 0.0
        %3415 = vmatprep.subr.mxu0 0.0
        %3416 = vmatpush1.msra.mxu0 0.0
        %3417 = vmatprep.subr.mxu0 0.0
        %3418 = vmatpush1.msra.mxu0 0.0
        %3419 = vmatprep.subr.mxu0 0.0
        %3420 = vmatpush1.msra.mxu0 0.0
        %3421 = vmatprep.subr.mxu0 0.0
        %3422 = vmatpush1.msra.mxu0 0.0
        %3423 = vmatprep.subr.mxu0 0.0
        %3424 = vmatpush1.msra.mxu0 0.0
        %3425 = vmatprep.subr.mxu0 0.0
        %3426 = vmatpush1.msra.mxu0 0.0
        %3427 = vmatprep.subr.mxu0 0.0
        %3428 = vmatpush1.msra.mxu0 0.0
        %3429 = vmatprep.subr.mxu0 0.0
        %3430 = vmatpush1.msra.mxu0 0.0
        %3431 = vmatprep.subr.mxu0 0.0
        %3432 = vmatpush1.msra.mxu0 0.0
        %3433 = vmatprep.subr.mxu0 0.0
        %3434 = vmatpush1.msra.mxu0 0.0
        %3435 = vmatprep.subr.mxu0 0.0
        %3436 = vmatpush1.msra.mxu0 0.0
        %3437 = vmatprep.subr.mxu0 0.0
        %3438 = vmatpush1.msra.mxu0 0.0
        %3439 = vmatprep.subr.mxu0 0.0
        %3440 = vmatpush1.msra.mxu0 0.0
        %3441 = vmatprep.subr.mxu0 0.0
        %3442 = vmatpush1.msra.mxu0 0.0
        %3443 = vmatprep.subr.mxu0 0.0
        %3444 = vmatpush1.msra.mxu0 0.0
        %3445 = vmatprep.subr.mxu0 0.0
        %3446 = vmatpush1.msra.mxu0 0.0
        %3447 = vmatprep.subr.mxu0 0.0
        %3448 = vmatpush1.msra.mxu0 0.0
        %3449 = vmatprep.subr.mxu0 0.0
        %3450 = vmatpush1.msra.mxu0 0.0
        %3451 = vmatprep.subr.mxu0 0.0
        %3452 = vmatpush1.msra.mxu0 0.0
        %3453 = vmatprep.mubr.f32.mxu0 0.0
        %3454 = vmatmul.mubr.f32.gmra.mrb[0].mxu0 %v3387
        %v3455 = vpop.f32.mrb[0].mxu0
        %v3456 = vadd.f32 0.0, %v3455
        %v3457 = vpop.f32.mrb[0].mxu0
        %3458 = vdwg.mxu0
        %v3459 = vld [vmem:[#allocation22 + $0x18] sm:$0xff]
        %v3461 = vsel %vm1287, %v3456, 0
        %3463 = vmatprep.subr.mxu0 0.0
        %3464 = vmatpush1.msra.mxu0 %v3459
        %3465 = vmatprep.subr.mxu0 0.0
        %3466 = vmatpush1.msra.mxu0 0.0
        %3467 = vmatprep.subr.mxu0 0.0
        %3468 = vmatpush1.msra.mxu0 0.0
        %3469 = vmatprep.subr.mxu0 0.0
        %3470 = vmatpush1.msra.mxu0 0.0
        %3471 = vmatprep.subr.mxu0 0.0
        %3472 = vmatpush1.msra.mxu0 0.0
        %3473 = vmatprep.subr.mxu0 0.0
        %3474 = vmatpush1.msra.mxu0 0.0
        %3475 = vmatprep.subr.mxu0 0.0
        %3476 = vmatpush1.msra.mxu0 0.0
        %3477 = vmatprep.subr.mxu0 0.0
        %3478 = vmatpush1.msra.mxu0 0.0
        %3479 = vmatprep.subr.mxu0 0.0
        %3480 = vmatpush1.msra.mxu0 0.0
        %3481 = vmatprep.subr.mxu0 0.0
        %3482 = vmatpush1.msra.mxu0 0.0
        %3483 = vmatprep.subr.mxu0 0.0
        %3484 = vmatpush1.msra.mxu0 0.0
        %3485 = vmatprep.subr.mxu0 0.0
        %3486 = vmatpush1.msra.mxu0 0.0
        %3487 = vmatprep.subr.mxu0 0.0
        %3488 = vmatpush1.msra.mxu0 0.0
        %3489 = vmatprep.subr.mxu0 0.0
        %3490 = vmatpush1.msra.mxu0 0.0
        %3491 = vmatprep.subr.mxu0 0.0
        %3492 = vmatpush1.msra.mxu0 0.0
        %3493 = vmatprep.subr.mxu0 0.0
        %3494 = vmatpush1.msra.mxu0 0.0
        %3495 = vmatprep.subr.mxu0 0.0
        %3496 = vmatpush1.msra.mxu0 0.0
        %3497 = vmatprep.subr.mxu0 0.0
        %3498 = vmatpush1.msra.mxu0 0.0
        %3499 = vmatprep.subr.mxu0 0.0
        %3500 = vmatpush1.msra.mxu0 0.0
        %3501 = vmatprep.subr.mxu0 0.0
        %3502 = vmatpush1.msra.mxu0 0.0
        %3503 = vmatprep.subr.mxu0 0.0
        %3504 = vmatpush1.msra.mxu0 0.0
        %3505 = vmatprep.subr.mxu0 0.0
        %3506 = vmatpush1.msra.mxu0 0.0
        %3507 = vmatprep.subr.mxu0 0.0
        %3508 = vmatpush1.msra.mxu0 0.0
        %3509 = vmatprep.subr.mxu0 0.0
        %3510 = vmatpush1.msra.mxu0 0.0
        %3511 = vmatprep.subr.mxu0 0.0
        %3512 = vmatpush1.msra.mxu0 0.0
        %3513 = vmatprep.subr.mxu0 0.0
        %3514 = vmatpush1.msra.mxu0 0.0
        %3515 = vmatprep.subr.mxu0 0.0
        %3516 = vmatpush1.msra.mxu0 0.0
        %3517 = vmatprep.subr.mxu0 0.0
        %3518 = vmatpush1.msra.mxu0 0.0
        %3519 = vmatprep.subr.mxu0 0.0
        %3520 = vmatpush1.msra.mxu0 0.0
        %3521 = vmatprep.subr.mxu0 0.0
        %3522 = vmatpush1.msra.mxu0 0.0
        %3523 = vmatprep.subr.mxu0 0.0
        %3524 = vmatpush1.msra.mxu0 0.0
        %3525 = vmatprep.subr.mxu0 0.0
        %3526 = vmatpush1.msra.mxu0 0.0
        %3527 = vmatprep.mubr.f32.mxu0 0.0
        %3528 = vmatmul.mubr.f32.gmra.mrb[0].mxu0 %v3461
        %v3529 = vpop.f32.mrb[0].mxu0
        %v3530 = vadd.f32 0.0, %v3529
        %v3531 = vpop.f32.mrb[0].mxu0
        %3532 = vdwg.mxu0
        %v3533 = vadd.f32 %v3286, %v3530
        %v3534 = vld [vmem:[#allocation23] sm:$0x1]
        %v3536 = vlaneseq
        %v3537 = vshrl.u32 %v3536, 7
        %v3538 = vsub.s32 0, %v3537
        %v3539 = vrot.slane %v3534, %v3538
        %v3541 = vadd.f32 %v3533, %v3539
        %v3542 = vadd.f32 %v2278, %v3541
        %v3543 = vsel %vm1126, %v3542, 0.0
        %3544 = vadd.xlane.f32.xlu0 %v3543
        %v3545 = vpop.xlane.xlu0 %3544
        %v3546 = vmul.f32 %v3545, %v2252
        %v3547 = vsub.f32 %v3542, %v3546
        %v3548 = vmul.f32 %v3547, %v3547
        %v3549 = vsel %vm1126, %v3548, 0.0
        %3550 = vadd.xlane.f32.xlu0 %v3549
        %v3551 = vpop.xlane.xlu0 %3550
        %v3552 = vmul.f32 %v3551, %v2252
        %v3553 = vadd.f32 %v3552, 1e-05
        %v3554 = vrsqrt.pop %v3553
        %v3555 = vmul.f32 %v3547, %v3554
        %v3556 = vld [vmem:[%s24] sm:$0x1]
        %v3558 = vlaneseq
        %v3559 = vshrl.u32 %v3558, 7
        %v3560 = vsub.s32 0, %v3559
        %v3561 = vrot.slane %v3556, %v3560
        %v3563 = vmul.f32 %v3555, %v3561
        %v3564 = vld [vmem:[%s25] sm:$0x1]
        %v3566 = vlaneseq
        %v3567 = vshrl.u32 %v3566, 7
        %v3568 = vsub.s32 0, %v3567
        %v3569 = vrot.slane %v3564, %v3568
        %v3571 = vadd.f32 %v3563, %v3569
        %v3572 = vld [vmem:[#allocation25] sm:$0xff]
        %v3573 = vld [vmem:[#allocation25 + $0x8] sm:$0xff]
        %v3574 = vld [vmem:[#allocation25 + $0x10] sm:$0xff]
        %v3575 = vld [vmem:[#allocation25 + $0x18] sm:$0xff]
        %v3576 = vld [vmem:[%s19] sm:$0x1]
        %v3578 = vlaneseq
        %v3579 = vshrl.u32 %v3578, 7
        %v3580 = vsub.s32 0, %v3579
        %v3581 = vrot.slane %v3576, %v3580
        %v3584 = vsel %vm1126, %v3571, 0
        %3586 = vmatprep.subr.mxu0 0.0
        %3587 = vmatpush1.msra.mxu0 %v3572
        %3588 = vmatprep.subr.mxu0 0.0
        %3589 = vmatpush1.msra.mxu0 %v3573
        %3590 = vmatprep.subr.mxu0 0.0
        %3591 = vmatpush1.msra.mxu0 %v3574
        %3592 = vmatprep.subr.mxu0 0.0
        %3593 = vmatpush1.msra.mxu0 %v3575
        %3594 = vmatprep.subr.mxu0 0.0
        %3595 = vmatpush1.msra.mxu0 0.0
        %3596 = vmatprep.subr.mxu0 0.0
        %3597 = vmatpush1.msra.mxu0 0.0
        %3598 = vmatprep.subr.mxu0 0.0
        %3599 = vmatpush1.msra.mxu0 0.0
        %3600 = vmatprep.subr.mxu0 0.0
        %3601 = vmatpush1.msra.mxu0 0.0
        %3602 = vmatprep.subr.mxu0 0.0
        %3603 = vmatpush1.msra.mxu0 0.0
        %3604 = vmatprep.subr.mxu0 0.0
        %3605 = vmatpush1.msra.mxu0 0.0
        %3606 = vmatprep.subr.mxu0 0.0
        %3607 = vmatpush1.msra.mxu0 0.0
        %3608 = vmatprep.subr.mxu0 0.0
        %3609 = vmatpush1.msra.mxu0 0.0
        %3610 = vmatprep.subr.mxu0 0.0
        %3611 = vmatpush1.msra.mxu0 0.0
        %3612 = vmatprep.subr.mxu0 0.0
        %3613 = vmatpush1.msra.mxu0 0.0
        %3614 = vmatprep.subr.mxu0 0.0
        %3615 = vmatpush1.msra.mxu0 0.0
        %3616 = vmatprep.subr.mxu0 0.0
        %3617 = vmatpush1.msra.mxu0 0.0
        %3618 = vmatprep.subr.mxu0 0.0
        %3619 = vmatpush1.msra.mxu0 0.0
        %3620 = vmatprep.subr.mxu0 0.0
        %3621 = vmatpush1.msra.mxu0 0.0
        %3622 = vmatprep.subr.mxu0 0.0
        %3623 = vmatpush1.msra.mxu0 0.0
        %3624 = vmatprep.subr.mxu0 0.0
        %3625 = vmatpush1.msra.mxu0 0.0
        %3626 = vmatprep.subr.mxu0 0.0
        %3627 = vmatpush1.msra.mxu0 0.0
        %3628 = vmatprep.subr.mxu0 0.0
        %3629 = vmatpush1.msra.mxu0 0.0
        %3630 = vmatprep.subr.mxu0 0.0
        %3631 = vmatpush1.msra.mxu0 0.0
        %3632 = vmatprep.subr.mxu0 0.0
        %3633 = vmatpush1.msra.mxu0 0.0
        %3634 = vmatprep.subr.mxu0 0.0
        %3635 = vmatpush1.msra.mxu0 0.0
        %3636 = vmatprep.subr.mxu0 0.0
        %3637 = vmatpush1.msra.mxu0 0.0
        %3638 = vmatprep.subr.mxu0 0.0
        %3639 = vmatpush1.msra.mxu0 0.0
        %3640 = vmatprep.subr.mxu0 0.0
        %3641 = vmatpush1.msra.mxu0 0.0
        %3642 = vmatprep.subr.mxu0 0.0
        %3643 = vmatpush1.msra.mxu0 0.0
        %3644 = vmatprep.subr.mxu0 0.0
        %3645 = vmatpush1.msra.mxu0 0.0
        %3646 = vmatprep.subr.mxu0 0.0
        %3647 = vmatpush1.msra.mxu0 0.0
        %3648 = vmatprep.subr.mxu0 0.0
        %3649 = vmatpush1.msra.mxu0 0.0
        %3650 = vmatprep.mubr.f32.mxu0 0.0
        %3651 = vmatmul.mubr.f32.gmra.mrb[0].mxu0 %v3584
        %v3652 = vpop.f32.mrb[0].mxu0
        %v3653 = vadd.f32 %v3581, %v3652
        %v3654 = vpop.f32.mrb[0].mxu0
        %3655 = vdwg.mxu0
        %v3656 = vmax.f32 %v3653, 0.0
        %v3657 = vld [vmem:[%s20] sm:$0xff]
        %v3658 = vld [vmem:[%s20 + $0x8] sm:$0xff]
        %v3659 = vld [vmem:[%s20 + $0x10] sm:$0xff]
        %v3660 = vld [vmem:[%s20 + $0x18] sm:$0xff]
        %v3661 = vld [vmem:[%s20 + $0x20] sm:$0xff]
        %v3662 = vld [vmem:[%s20 + $0x28] sm:$0xff]
        %v3663 = vld [vmem:[%s20 + $0x30] sm:$0xff]
        %v3664 = vld [vmem:[%s20 + $0x38] sm:$0xff]
        %v3665 = vld [vmem:[%s21] sm:$0x1]
        %v3667 = vlaneseq
        %v3668 = vshrl.u32 %v3667, 7
        %v3669 = vsub.s32 0, %v3668
        %v3670 = vrot.slane %v3665, %v3669
        %vm3672 = vcmask 523264
        %v3674 = vsel %vm3672, %v3656, 0
        %3676 = vmatprep.subr.mxu0 0.0
        %3677 = vmatpush1.msra.mxu0 %v3657
        %3678 = vmatprep.subr.mxu0 0.0
        %3679 = vmatpush1.msra.mxu0 %v3658
        %3680 = vmatprep.subr.mxu0 0.0
        %3681 = vmatpush1.msra.mxu0 %v3659
        %3682 = vmatprep.subr.mxu0 0.0
        %3683 = vmatpush1.msra.mxu0 %v3660
        %3684 = vmatprep.subr.mxu0 0.0
        %3685 = vmatpush1.msra.mxu0 %v3661
        %3686 = vmatprep.subr.mxu0 0.0
        %3687 = vmatpush1.msra.mxu0 %v3662
        %3688 = vmatprep.subr.mxu0 0.0
        %3689 = vmatpush1.msra.mxu0 %v3663
        %3690 = vmatprep.subr.mxu0 0.0
        %3691 = vmatpush1.msra.mxu0 %v3664
        %3692 = vmatprep.subr.mxu0 0.0
        %3693 = vmatpush1.msra.mxu0 0.0
        %3694 = vmatprep.subr.mxu0 0.0
        %3695 = vmatpush1.msra.mxu0 0.0
        %3696 = vmatprep.subr.mxu0 0.0
        %3697 = vmatpush1.msra.mxu0 0.0
        %3698 = vmatprep.subr.mxu0 0.0
        %3699 = vmatpush1.msra.mxu0 0.0
        %3700 = vmatprep.subr.mxu0 0.0
        %3701 = vmatpush1.msra.mxu0 0.0
        %3702 = vmatprep.subr.mxu0 0.0
        %3703 = vmatpush1.msra.mxu0 0.0
        %3704 = vmatprep.subr.mxu0 0.0
        %3705 = vmatpush1.msra.mxu0 0.0
        %3706 = vmatprep.subr.mxu0 0.0
        %3707 = vmatpush1.msra.mxu0 0.0
        %3708 = vmatprep.subr.mxu0 0.0
        %3709 = vmatpush1.msra.mxu0 0.0
        %3710 = vmatprep.subr.mxu0 0.0
        %3711 = vmatpush1.msra.mxu0 0.0
        %3712 = vmatprep.subr.mxu0 0.0
        %3713 = vmatpush1.msra.mxu0 0.0
        %3714 = vmatprep.subr.mxu0 0.0
        %3715 = vmatpush1.msra.mxu0 0.0
        %3716 = vmatprep.subr.mxu0 0.0
        %3717 = vmatpush1.msra.mxu0 0.0
        %3718 = vmatprep.subr.mxu0 0.0
        %3719 = vmatpush1.msra.mxu0 0.0
        %3720 = vmatprep.subr.mxu0 0.0
        %3721 = vmatpush1.msra.mxu0 0.0
        %3722 = vmatprep.subr.mxu0 0.0
        %3723 = vmatpush1.msra.mxu0 0.0
        %3724 = vmatprep.subr.mxu0 0.0
        %3725 = vmatpush1.msra.mxu0 0.0
        %3726 = vmatprep.subr.mxu0 0.0
        %3727 = vmatpush1.msra.mxu0 0.0
        %3728 = vmatprep.subr.mxu0 0.0
        %3729 = vmatpush1.msra.mxu0 0.0
        %3730 = vmatprep.subr.mxu0 0.0
        %3731 = vmatpush1.msra.mxu0 0.0
        %3732 = vmatprep.subr.mxu0 0.0
        %3733 = vmatpush1.msra.mxu0 0.0
        %3734 = vmatprep.subr.mxu0 0.0
        %3735 = vmatpush1.msra.mxu0 0.0
        %3736 = vmatprep.subr.mxu0 0.0
        %3737 = vmatpush1.msra.mxu0 0.0
        %3738 = vmatprep.subr.mxu0 0.0
        %3739 = vmatpush1.msra.mxu0 0.0
        %3740 = vmatprep.mubr.f32.mxu0 0.0
        %3741 = vmatmul.mubr.f32.gmra.mrb[0].mxu0 %v3674
        %v3742 = vpop.f32.mrb[0].mxu0
        %v3743 = vadd.f32 %v3670, %v3742
        %v3744 = vpop.f32.mrb[0].mxu0
        %3745 = vdwg.mxu0
        %v3746 = vadd.f32 %v3571, %v3743
        %v3747 = vsel %vm1126, %v3746, 0.0
        %3748 = vadd.xlane.f32.xlu0 %v3747
        %v3749 = vpop.xlane.xlu0 %3748
        %v3750 = vmul.f32 %v3749, %v2252
        %v3751 = vsub.f32 %v3746, %v3750
        %v3752 = vmul.f32 %v3751, %v3751
        %v3753 = vsel %vm1126, %v3752, 0.0
        %3754 = vadd.xlane.f32.xlu0 %v3753
        %v3755 = vpop.xlane.xlu0 %3754
        %v3756 = vmul.f32 %v3755, %v2252
        %v3757 = vadd.f32 %v3756, 1e-05
        %v3758 = vrsqrt.pop %v3757
        %v3759 = vmul.f32 %v3751, %v3758
        %v3760 = vld [vmem:[%s26] sm:$0x1]
        %v3762 = vlaneseq
        %v3763 = vshrl.u32 %v3762, 7
        %v3764 = vsub.s32 0, %v3763
        %v3765 = vrot.slane %v3760, %v3764
        %v3767 = vmul.f32 %v3759, %v3765
        %v3768 = vld [vmem:[%s27] sm:$0x1]
        %v3770 = vlaneseq
        %v3771 = vshrl.u32 %v3770, 7
        %v3772 = vsub.s32 0, %v3771
        %v3773 = vrot.slane %v3768, %v3772
        %v3775 = vadd.f32 %v3767, %v3773
        %3776 = vst.msk [vmem:[%s1101] sm:$0xff] %vm1126, %v3775
        %s3777 = sand.u32 %s670, 1
        %s3778 = scalar_lea.sflag [#allocation4], %s3777
        %s3779 = sand.u32 %s670, 1
        %s3780 = smul.addr %s3779, 8
        %s3781 = scalar_lea.vmem [#allocation26], %s3780
        // Predicated region
        $region193: #{tpu_custom_call.1} parent=131 // pred_check
          %p3782 = pneg %p680
        $region194: #{tpu_custom_call.1} parent=131 // pred_check_branch
          %3784 = sbr.rel (%p3782) target = $region196
        $region195: #{tpu_custom_call.1} parent=131 // pred_region
          %s3786 = ssub.s32 128, 128
          %3787 = vsyncadd %s3778, %s3786
          %s3788 = smul.addr %s54, 128
          %s3789 = scalar_lea.hbm %s28, %s3788
          %s3791 = sshll.u32 %s3781, 4
          %s3792 = int_to_ptr.vmem [resolvable:$true] %s3791
          %3794 = dma.vmem_to_hbm [thread:$0]  %s3792, 128, %s3789, %s3778
        $region196: #{tpu_custom_call.1} parent=131 // pred_fallthru
          _
      $region132: #{tpu_custom_call.1} parent=5 // pred_fallthru
        _
      %p3795 = scmp.le.s32.totalorder 2, %s49
      // Predicated region
      $region197: #{tpu_custom_call.1} parent=5 // pred_check
        %p3796 = pneg %p3795
      $region198: #{tpu_custom_call.1} parent=5 // pred_check_branch
        %3798 = sbr.rel (%p3796) target = $region200
      $region199: #{tpu_custom_call.1} parent=5 // pred_region
        %s3799 = ssub.s32 %s49, 2
        // Predicated region
        $region201: #{tpu_custom_call.1} parent=199 // pred_check
          %p3800 = pneg %p686
        $region202: #{tpu_custom_call.1} parent=199 // pred_check_branch
          %3802 = sbr.rel (%p3800) target = $region204
        $region203: #{tpu_custom_call.1} parent=199 // pred_region
          %s3803 = sand.u32 %s671, 1
          %s3804 = scalar_lea.sflag [#allocation4], %s3803
          %s3805 = sand.u32 %s671, 1
          %s3806 = smul.addr %s3805, 8
          %s3807 = scalar_lea.vmem [#allocation26], %s3806
          %3808 = dma.done %s3804, 128
        $region204: #{tpu_custom_call.1} parent=199 // pred_fallthru
          _
      $region200: #{tpu_custom_call.1} parent=5 // pred_fallthru
        _
    $region6: #{tpu_custom_call.1} parent=1 // loop_footer
      %s53 = sadd.s32 1, %s49
    $region7: #{tpu_custom_call.1} parent=1 // loop_footer_branch
      %48 = sbr.rel target = $region3
    $region8: #{tpu_custom_call.1} parent=1 // loop_exit
      _
    %3809 = vsyncpa [#allocation3], 1
    %s3810 = scalar_lea.sflag [#allocation3], 1
    %3811 = vsyncpa %s3810, 1
    %3812 = vsyncpa [#allocation6], 1
    %s3813 = scalar_lea.sflag [#allocation6], 1
    %3814 = vsyncpa %s3813, 1
    %3815 = vsyncpa [#allocation9], 1
    %3816 = vsyncpa [#allocation12], 1
    %3817 = vsyncpa [#allocation15], 1
    %3818 = vsyncpa [#allocation18], 1
    %3819 = vsyncpa [#allocation21], 1
    %3820 = vsyncpa [#allocation24], 1
    %3821 = vsyncpa [#allocation4], 1
    %s3822 = scalar_lea.sflag [#allocation4], 1
    %3823 = vsyncpa %s3822, 1

</llo_original>
